<compile_context>
chip_gen: v6e
topology: v6e:2x2x1
jax: 0.10.0
libtpu: 0.0.40
codegen_flags: <defaults>
</compile_context>

<pallas_src>
import functools

import jax
import jax.numpy as jnp
from jax.experimental import pallas as pl
from jax.experimental.pallas import tpu as pltpu

EPS = 1e-5
LANE = 128
STATS_ROWS = 8   # per-step partial-stat rows -> sublane-aligned (8, C) out blocks
HALO_W = 8       # left W-halo width so the interior halo-buffer write is aligned


# ----------------------------- budgets / helpers ------------------------------

def _tpu_budgets():
    """(vmem_limit_bytes, target f32 block bytes) for the local TPU generation."""
    cap = 64 << 20
    try:
        cap = int(getattr(pltpu.get_tpu_info(), "vmem_capacity_bytes", cap))
    except Exception:
        pass
    if cap >= (96 << 20):            # v5e / v6e: 128 MiB VMEM -> bigger tiles
        return 100 << 20, 6 << 20
    return 48 << 20, 2 << 20         # v7x: 64 MiB VMEM -> conservative


VMEM_LIMIT, TARGET_BLOCK_BYTES = _tpu_budgets()


def _round_up(x, m):
    return (x + m - 1) // m * m


def _cdim(c):
    """Channel layout policy: keep narrow channels unpadded (full-extent last-dim
    blocks are legal and save HBM bytes); lane-pad only when already >= 128."""
    return c if c < LANE else _round_up(c, LANE)


def _pad_to(a, shape):
    widths = [(0, t - s) for s, t in zip(a.shape, shape)]
    if all(w == (0, 0) for w in widths):
        return a
    return jnp.pad(a, widths)


def _pick_tm(m, c, target_bytes=None):
    """Largest divisor of m (multiple of 8) whose (tm, c) f32 block ~target_bytes."""
    if target_bytes is None:
        target_bytes = TARGET_BLOCK_BYTES
    target = max(8, target_bytes // (4 * max(c, 1)))
    if m <= target:
        return m
    for d in range(min(m, target), 0, -1):
        if m % d == 0 and d % 8 == 0:
            return d
    return m


def _finalize_stats(sum_rows, sq_rows, count, bias):
    """Batch mean / biased var from per-step partial (pre-bias) sums."""
    sums = jnp.sum(sum_rows, axis=0, keepdims=True)
    sqs = jnp.sum(sq_rows, axis=0, keepdims=True)
    mean_nb = sums / count
    var = jnp.maximum(sqs / count - mean_nb * mean_nb, 0.0)
    return mean_nb + bias, var


# ----------------------------- kernels ----------------------------------------

def _write_partial_stats(sum_ref, sq_ref, acc):
    # Per-grid-step partial sums (pre-bias, f32).  Row 0 carries the partial,
    # rows 1..7 are zero; the wrapper reduces with a plain sum.  8-row blocks
    # keep the output BlockSpec sublane-aligned while the grid stays "parallel"
    # (no revisited accumulator block serializing the grid on v7x).
    sum_ref[...] = jnp.zeros(sum_ref.shape, sum_ref.dtype)
    sq_ref[...] = jnp.zeros(sq_ref.shape, sq_ref.dtype)
    sum_ref[0:1, :] = jnp.sum(acc, axis=0, keepdims=True)
    sq_ref[0:1, :] = jnp.sum(acc * acc, axis=0, keepdims=True)


def conv1x1_stats_kernel(x_ref, w_ref, b_ref, y_ref, sum_ref, sq_ref):
    # conv1: (TM, Cin) @ (Cin, C) + bias, BN1-stats epilogue (pre-bias sums).
    acc = jnp.dot(x_ref[...].astype(w_ref.dtype), w_ref[...],
                  preferred_element_type=jnp.float32)
    y_ref[...] = (acc + b_ref[...]).astype(y_ref.dtype)
    _write_partial_stats(sum_ref, sq_ref, acc)


def bn_conv1x1_stats_kernel(x_ref, mean_ref, var_ref, g_ref, beta_ref,
                            w_ref, b_ref, y_ref, sum_ref, sq_ref):
    # conv3: BN2+ReLU prologue (f32), 1x1 matmul (bf16 inputs on fast path),
    # BN3-stats epilogue.
    inv = jax.lax.rsqrt(var_ref[...] + EPS)
    xf = x_ref[...].astype(jnp.float32)
    t = jnp.maximum((xf - mean_ref[...]) * inv * g_ref[...] + beta_ref[...], 0.0)
    acc = jnp.dot(t.astype(w_ref.dtype), w_ref[...],
                  preferred_element_type=jnp.float32)
    y_ref[...] = (acc + b_ref[...]).astype(y_ref.dtype)
    _write_partial_stats(sum_ref, sq_ref, acc)


def bn_conv3x3_stats_kernel(x_ref, mean_ref, var_ref, g_ref, beta_ref,
                            w_ref, b_ref, y_ref, sum_ref, sq_ref, pad_ref,
                            *, stride, Ho, Wo):
    # conv2: BN1+ReLU prologue, halo built in VMEM scratch (8-wide left W-halo
    # so the interior write is sublane-aligned), 3x3 conv as 9 accumulated
    # matmuls over shifted views (no im2col patch), BN2-stats epilogue.
    h, w, c = x_ref.shape[1], x_ref.shape[2], x_ref.shape[3]
    wpad = pad_ref.shape[1]
    cdt = pad_ref.dtype

    # Zero only the halo strips, every step: the grid axis is "parallel", so a
    # program_id==0 scratch init is unsafe under megacore (per-core scratch).
    pad_ref[0:1, :, :] = jnp.zeros((1, wpad, c), cdt)
    pad_ref[h + 1:h + 2, :, :] = jnp.zeros((1, wpad, c), cdt)
    pad_ref[:, HALO_W - 1:HALO_W, :] = jnp.zeros((h + 2, 1, c), cdt)
    pad_ref[:, HALO_W + w:HALO_W + w + 1, :] = jnp.zeros((h + 2, 1, c), cdt)

    inv = jax.lax.rsqrt(var_ref[...] + EPS)
    xv = x_ref[0].astype(jnp.float32)                     # (H, W, C)
    t = jnp.maximum((xv - mean_ref[...]) * inv * g_ref[...] + beta_ref[...], 0.0)
    pad_ref[1:1 + h, HALO_W:HALO_W + w, :] = t.astype(cdt)

    tp = pad_ref[...]                                     # (H+2, W+HALO_W+1, C)
    span_h = stride * (Ho - 1) + 1
    span_w = stride * (Wo - 1) + 1
    acc = None
    for ky in range(3):
        for kx in range(3):
            lhs = tp[ky:ky + span_h:stride,
                     HALO_W - 1 + kx:HALO_W - 1 + kx + span_w:stride, :]
            lhs = lhs.reshape(Ho * Wo, c)
            part = jnp.dot(lhs, w_ref[ky * 3 + kx],
                           preferred_element_type=jnp.float32)
            acc = part if acc is None else acc + part

    y_ref[0] = (acc + b_ref[...]).reshape(Ho, Wo, -1).astype(y_ref.dtype)
    _write_partial_stats(sum_ref, sq_ref, acc)


def bn_add_relu_kernel(x_ref, mean_ref, var_ref, g_ref, beta_ref, res_ref, o_ref):
    # BN3 + residual add + ReLU; the un-pad channel slice is folded into the
    # output block (o_ref may be narrower than x_ref).
    inv = jax.lax.rsqrt(var_ref[...] + EPS)
    y = (x_ref[...].astype(jnp.float32) - mean_ref[...]) * inv * g_ref[...] \
        + beta_ref[...]
    cexp = o_ref.shape[-1]
    o_ref[...] = jnp.maximum(y[:, :cexp] + res_ref[...].astype(jnp.float32), 0.0)


# ----------------------------- pallas_call wrappers ----------------------------

def pallas_conv1x1_stats(x2d, w, b, out_dtype):
    m, cin = x2d.shape
    cout = w.shape[1]
    tm = _pick_tm(m, max(cin, cout))
    grid = m // tm
    return pl.pallas_call(
        conv1x1_stats_kernel,
        out_shape=(jax.ShapeDtypeStruct((m, cout), out_dtype),
                   jax.ShapeDtypeStruct((grid * STATS_ROWS, cout), jnp.float32),
                   jax.ShapeDtypeStruct((grid * STATS_ROWS, cout), jnp.float32)),
        grid=(grid,),
        in_specs=[
            pl.BlockSpec((tm, cin), lambda i: (i, 0)),
            pl.BlockSpec((cin, cout), lambda i: (0, 0)),
            pl.BlockSpec((1, cout), lambda i: (0, 0)),
        ],
        out_specs=(pl.BlockSpec((tm, cout), lambda i: (i, 0)),
                   pl.BlockSpec((STATS_ROWS, cout), lambda i: (i, 0)),
                   pl.BlockSpec((STATS_ROWS, cout), lambda i: (i, 0))),
        compiler_params=pltpu.CompilerParams(
            dimension_semantics=("parallel",),
            vmem_limit_bytes=VMEM_LIMIT),
    )(x2d, w, b)


def pallas_bn_conv1x1_stats(x2d, mean, var, g, beta, w, b, out_dtype):
    m, cin = x2d.shape
    cout = w.shape[1]
    tm = _pick_tm(m, max(cin, cout))
    grid = m // tm
    small_in = pl.BlockSpec((1, cin), lambda i: (0, 0))
    return pl.pallas_call(
        bn_conv1x1_stats_kernel,
        out_shape=(jax.ShapeDtypeStruct((m, cout), out_dtype),
                   jax.ShapeDtypeStruct((grid * STATS_ROWS, cout), jnp.float32),
                   jax.ShapeDtypeStruct((grid * STATS_ROWS, cout), jnp.float32)),
        grid=(grid,),
        in_specs=[
            pl.BlockSpec((tm, cin), lambda i: (i, 0)),
            small_in, small_in, small_in, small_in,
            pl.BlockSpec((cin, cout), lambda i: (0, 0)),
            pl.BlockSpec((1, cout), lambda i: (0, 0)),
        ],
        out_specs=(pl.BlockSpec((tm, cout), lambda i: (i, 0)),
                   pl.BlockSpec((STATS_ROWS, cout), lambda i: (i, 0)),
                   pl.BlockSpec((STATS_ROWS, cout), lambda i: (i, 0))),
        compiler_params=pltpu.CompilerParams(
            dimension_semantics=("parallel",),
            vmem_limit_bytes=VMEM_LIMIT),
    )(x2d, mean, var, g, beta, w, b)


def pallas_bn_conv3x3_stats(x_nhwc, mean, var, g, beta, w_taps, b, stride,
                            out_dtype):
    n, h, w, cin = x_nhwc.shape
    cout = w_taps.shape[2]
    ho = (h + 2 - 3) // stride + 1
    wo = (w + 2 - 3) // stride + 1
    kern = functools.partial(bn_conv3x3_stats_kernel, stride=stride, Ho=ho, Wo=wo)
    small_in = pl.BlockSpec((1, cin), lambda i: (0, 0))
    # TODO(synk): for large H*W, tile spatial rows (grid=(n, H/row_tile)) with a
    # manual-DMA H-halo so the per-step VMEM footprint stays bounded on v7x and
    # the pipeline has more steps to hide DMA behind the matmuls.
    return pl.pallas_call(
        kern,
        out_shape=(jax.ShapeDtypeStruct((n, ho, wo, cout), out_dtype),
                   jax.ShapeDtypeStruct((n * STATS_ROWS, cout), jnp.float32),
                   jax.ShapeDtypeStruct((n * STATS_ROWS, cout), jnp.float32)),
        grid=(n,),
        in_specs=[
            pl.BlockSpec((1, h, w, cin), lambda i: (i, 0, 0, 0)),
            small_in, small_in, small_in, small_in,
            pl.BlockSpec((9, cin, cout), lambda i: (0, 0, 0)),
            pl.BlockSpec((1, cout), lambda i: (0, 0)),
        ],
        out_specs=(pl.BlockSpec((1, ho, wo, cout), lambda i: (i, 0, 0, 0)),
                   pl.BlockSpec((STATS_ROWS, cout), lambda i: (i, 0)),
                   pl.BlockSpec((STATS_ROWS, cout), lambda i: (i, 0))),
        scratch_shapes=[pltpu.VMEM((h + 2, w + HALO_W + 1, cin), w_taps.dtype)],
        compiler_params=pltpu.CompilerParams(
            dimension_semantics=("parallel",),
            vmem_limit_bytes=VMEM_LIMIT),
    )(x_nhwc, mean, var, g, beta, w_taps, b)


def pallas_bn_add_relu(y2d, mean, var, g, beta, res2d):
    m, cp = y2d.shape
    cexp = res2d.shape[1]
    tm = _pick_tm(m, max(cp, cexp))
    small = pl.BlockSpec((1, cp), lambda i: (0, 0))
    return pl.pallas_call(
        bn_add_relu_kernel,
        out_shape=jax.ShapeDtypeStruct((m, cexp), jnp.float32),
        grid=(m // tm,),
        in_specs=[pl.BlockSpec((tm, cp), lambda i: (i, 0)),
                  small, small, small, small,
                  pl.BlockSpec((tm, cexp), lambda i: (i, 0))],
        out_specs=pl.BlockSpec((tm, cexp), lambda i: (i, 0)),
        compiler_params=pltpu.CompilerParams(
            dimension_semantics=("parallel",),
            vmem_limit_bytes=VMEM_LIMIT),
    )(y2d, mean, var, g, beta, res2d)


# ----------------------------- forward pass ------------------------------------

@functools.partial(jax.jit, static_argnames=("stride", "use_bf16"))
def bottleneck_forward(x_nchw, p, *, stride=1, use_bf16=False):
    """Pallas forward for `block` with identity_downsample=None."""
    x = jnp.transpose(x_nchw, (0, 2, 3, 1)).astype(jnp.float32)   # NCHW -> NHWC
    n, h, w, cin = x.shape
    c = p["w1"].shape[1]
    cexp = p["w3"].shape[1]
    if cin != cexp or stride != 1:
        # TODO(synk): identity_downsample branch (conv1x1+BN on the skip path)
        # and stride>1 residual path not implemented.
        raise NotImplementedError("block requires in_channels == out_channels*4 "
                                  "and stride == 1 when identity_downsample is None")

    c_p = _cdim(c)
    cexp_p = _cdim(cexp)
    cdtype = jnp.bfloat16 if use_bf16 else jnp.float32   # activation/matmul HBM dtype

    # params (narrow channels kept unpadded; zero-padded channels stay zero)
    w1 = _pad_to(p["w1"], (cin, c_p)).astype(cdtype)
    b1 = _pad_to(p["b1"], (1, c_p))
    w2 = _pad_to(p["w2"], (3, 3, c_p, c_p)).reshape(9, c_p, c_p).astype(cdtype)
    b2 = _pad_to(p["b2"], (1, c_p))
    w3 = _pad_to(p["w3"], (c_p, cexp_p)).astype(cdtype)
    b3 = _pad_to(p["b3"], (1, cexp_p))
    g1, bb1 = _pad_to(p["g1"], (1, c_p)), _pad_to(p["bb1"], (1, c_p))
    g2, bb2 = _pad_to(p["g2"], (1, c_p)), _pad_to(p["bb2"], (1, c_p))
    g3, bb3 = _pad_to(p["g3"], (1, cexp_p)), _pad_to(p["bb3"], (1, cexp_p))

    m = n * h * w
    x2d = x.reshape(m, cin).astype(cdtype)   # no channel pad; single cast on bf16 path

    # conv1 (1x1) + fused BN1-stats epilogue
    y1, s1, q1 = pallas_conv1x1_stats(x2d, w1, b1, cdtype)
    mean1, var1 = _finalize_stats(s1, q1, m, b1)

    # conv2 (3x3): BN1+ReLU prologue, in-VMEM halo, 9 accumulated matmuls,
    # fused BN2-stats epilogue
    y1_nhwc = y1.reshape(n, h, w, c_p)
    y2, s2, q2 = pallas_bn_conv3x3_stats(y1_nhwc, mean1, var1, g1, bb1,
                                         w2, b2, stride, cdtype)
    _, ho, wo, _ = y2.shape
    m2 = n * ho * wo
    mean2, var2 = _finalize_stats(s2, q2, m2, b2)

    # conv3 (1x1, expand 4x): BN2+ReLU prologue, fused BN3-stats epilogue
    y2_2d = y2.reshape(m2, c_p)
    y3, s3, q3 = pallas_bn_conv1x1_stats(y2_2d, mean2, var2, g2, bb2, w3, b3, cdtype)
    mean3, var3 = _finalize_stats(s3, q3, m2, b3)

    # BN3 + residual add + ReLU (channel un-pad folded into the out block)
    out2d = pallas_bn_add_relu(y3, mean3, var3, g3, bb3, x2d)

    out = out2d.reshape(n, ho, wo, cexp)
    # Consumers that accept NHWC could skip this transpose (saves an HBM pass).
    return jnp.transpose(out, (0, 3, 1, 2))   # NHWC -> NCHW


# ----------------------------- pure-JAX reference -------------------------------

def reference_forward(x_nchw, p, stride=1):
    x = jnp.transpose(x_nchw, (0, 2, 3, 1)).astype(jnp.float32)
    identity = x

    def bn(y, g, b):
        mean = jnp.mean(y, axis=(0, 1, 2), keepdims=True)
        var = jnp.mean((y - mean) ** 2, axis=(0, 1, 2), keepdims=True)
        return (y - mean) * jax.lax.rsqrt(var + EPS) * g.reshape(1, 1, 1, -1) \
            + b.reshape(1, 1, 1, -1)

    y = jnp.einsum("nhwc,cd->nhwd", x, p["w1"]) + p["b1"].reshape(1, 1, 1, -1)
    y = jnp.maximum(bn(y, p["g1"], p["bb1"]), 0.0)

    y = jax.lax.conv_general_dilated(
        y, p["w2"], window_strides=(stride, stride), padding=((1, 1), (1, 1)),
        dimension_numbers=("NHWC", "HWIO", "NHWC")) + p["b2"].reshape(1, 1, 1, -1)
    y = jnp.maximum(bn(y, p["g2"], p["bb2"]), 0.0)

    y = jnp.einsum("nhwc,cd->nhwd", y, p["w3"]) + p["b3"].reshape(1, 1, 1, -1)
    y = bn(y, p["g3"], p["bb3"])
    y = jnp.maximum(y + identity, 0.0)
    return jnp.transpose(y, (0, 3, 1, 2))


# ----------------------------- main ---------------------------------------------

if __name__ == "__main__":
    # block(in_channels=32, out_channels=8, identity_downsample=None, stride=1)
    in_channels, out_channels, expansion = 32, 8, 4
    N, H, W = 2, 8, 8
    stride = 1

    key = jax.random.PRNGKey(0)
    ks = jax.random.split(key, 13)

    def rnd(k, shape, scale=0.1):
        return scale * jax.random.normal(k, shape, dtype=jnp.float32)

    C, Cexp = out_channels, out_channels * expansion
    params = {
        # conv weights stored ready for NHWC compute:
        #   1x1 convs as (Cin, Cout), 3x3 conv as HWIO (3, 3, Cin, Cout)
        "w1": rnd(ks[0], (in_channels, C)),
        "b1": rnd(ks[1], (1, C)),
        "w2": rnd(ks[2], (3, 3, C, C)),
        "b2": rnd(ks[3], (1, C)),
        "w3": rnd(ks[4], (C, Cexp)),
        "b3": rnd(ks[5], (1, Cexp)),
        # BatchNorm affine params (randomized for a non-trivial test)
        "g1": 1.0 + rnd(ks[6], (1, C)),
        "bb1": rnd(ks[7], (1, C)),
        "g2": 1.0 + rnd(ks[8], (1, C)),
        "bb2": rnd(ks[9], (1, C)),
        "g3": 1.0 + rnd(ks[10], (1, Cexp)),
        "bb3": rnd(ks[11], (1, Cexp)),
    }

    x = jax.random.normal(ks[12], (N, in_channels, H, W), dtype=jnp.float32)

    ref = jax.block_until_ready(reference_forward(x, params, stride=stride))

    # f32 path: tight correctness check
    out = jax.block_until_ready(
        bottleneck_forward(x, params, stride=stride, use_bf16=False))
    assert out.shape == (N, Cexp, H // stride, W // stride), out.shape
    assert jnp.allclose(out, ref, rtol=5e-4, atol=5e-4), float(
        jnp.max(jnp.abs(out - ref)))

    # bf16 fast path (bf16 MXU + bf16 intermediate storage): loose sanity check
    out16 = jax.block_until_ready(
        bottleneck_forward(x, params, stride=stride, use_bf16=True))
    assert jnp.allclose(out16, ref, rtol=5e-2, atol=1e-1), float(
        jnp.max(jnp.abs(out16 - ref)))

    print("KERNEL_OK")
</pallas_src>

<mosaic_0001>
module attributes {stable_mosaic.version = 11 : i64} {
  func.func @conv1x1_stats_kernel(%arg0: i32, %arg1: memref<128x32xf32, #tpu.memory_space<vmem>>, %arg2: memref<32x8xf32, #tpu.memory_space<vmem>>, %arg3: memref<1x8xf32, #tpu.memory_space<vmem>>, %arg4: memref<128x8xf32, #tpu.memory_space<vmem>>, %arg5: memref<8x8xf32, #tpu.memory_space<vmem>>, %arg6: memref<8x8xf32, #tpu.memory_space<vmem>>) attributes {dimension_semantics = [#tpu.dimension_semantics<parallel>], iteration_bounds = array<i64: 1>, scalar_prefetch = 0 : i64, scratch_operands = 0 : i64, tpu.core_type = #tpu.core_type<tc>, window_params = [{transform_indices = @transform_0, window_bounds = array<i64: 128, 32>}, {pipeline_mode = #tpu.pipeline_mode<synchronous>, transform_indices = @transform_1, window_bounds = array<i64: 32, 8>}, {pipeline_mode = #tpu.pipeline_mode<synchronous>, transform_indices = @transform_2, window_bounds = array<i64: 1, 8>}, {transform_indices = @transform_3, window_bounds = array<i64: 128, 8>}, {transform_indices = @transform_4, window_bounds = array<i64: 8, 8>}, {transform_indices = @transform_5, window_bounds = array<i64: 8, 8>}]} {
    %c0 = arith.constant 0 : index
    %c0_0 = arith.constant 0 : index
    %0 = vector.load %arg1[%c0, %c0_0] : memref<128x32xf32, #tpu.memory_space<vmem>>, vector<128x32xf32>
    %c0_1 = arith.constant 0 : index
    %c0_2 = arith.constant 0 : index
    %1 = vector.load %arg2[%c0_1, %c0_2] : memref<32x8xf32, #tpu.memory_space<vmem>>, vector<32x8xf32>
    %cst = arith.constant dense<0.000000e+00> : vector<128x8xf32>
    %2 = tpu.matmul %0, %1, %cst {dimension_numbers = #tpu.dot_dimension_numbers<[1], [0], [0], [1], [0, 0, 1, 1], [], []>} : vector<128x32xf32>, vector<32x8xf32>, vector<128x8xf32> -> vector<128x8xf32>
    %c0_3 = arith.constant 0 : index
    %c0_4 = arith.constant 0 : index
    %3 = vector.load %arg3[%c0_3, %c0_4] : memref<1x8xf32, #tpu.memory_space<vmem>>, vector<1x8xf32>
    %4 = vector.broadcast %3 : vector<1x8xf32> to vector<128x8xf32>
    %5 = arith.addf %2, %4 : vector<128x8xf32>
    %c0_5 = arith.constant 0 : index
    %c0_6 = arith.constant 0 : index
    %6 = vector.load %arg4[%c0_5, %c0_6] : memref<128x8xf32, #tpu.memory_space<vmem>>, vector<128x8xf32>
    tpu.vector_store %arg4[%c0_5, %c0_6], %5 {strides = array<i32>} : memref<128x8xf32, #tpu.memory_space<vmem>>, vector<128x8xf32>,
    %cst_7 = arith.constant 0.000000e+00 : f32
    %7 = vector.broadcast %cst_7 : f32 to vector<8x8xf32>
    %c0_8 = arith.constant 0 : index
    %c0_9 = arith.constant 0 : index
    %8 = vector.load %arg5[%c0_8, %c0_9] : memref<8x8xf32, #tpu.memory_space<vmem>>, vector<8x8xf32>
    tpu.vector_store %arg5[%c0_8, %c0_9], %7 {strides = array<i32>} : memref<8x8xf32, #tpu.memory_space<vmem>>, vector<8x8xf32>,
    %cst_10 = arith.constant 0.000000e+00 : f32
    %9 = vector.broadcast %cst_10 : f32 to vector<8x8xf32>
    %c0_11 = arith.constant 0 : index
    %c0_12 = arith.constant 0 : index
    %10 = vector.load %arg6[%c0_11, %c0_12] : memref<8x8xf32, #tpu.memory_space<vmem>>, vector<8x8xf32>
    tpu.vector_store %arg6[%c0_11, %c0_12], %9 {strides = array<i32>} : memref<8x8xf32, #tpu.memory_space<vmem>>, vector<8x8xf32>,
    %cst_13 = arith.constant dense<0.000000e+00> : vector<8xf32>
    %11 = vector.multi_reduction <add>, %2, %cst_13 [0] : vector<128x8xf32> to vector<8xf32>
    %12 = vector.shape_cast %11 : vector<8xf32> to vector<1x8xf32>
    %c0_14 = arith.constant 0 : index
    %c0_15 = arith.constant 0 : index
    %13 = vector.load %arg5[%c0_14, %c0_15] : memref<8x8xf32, #tpu.memory_space<vmem>>, vector<1x8xf32>
    tpu.vector_store %arg5[%c0_14, %c0_15], %12 {strides = array<i32>} : memref<8x8xf32, #tpu.memory_space<vmem>>, vector<1x8xf32>,
    %14 = arith.mulf %2, %2 : vector<128x8xf32>
    %cst_16 = arith.constant dense<0.000000e+00> : vector<8xf32>
    %15 = vector.multi_reduction <add>, %14, %cst_16 [0] : vector<128x8xf32> to vector<8xf32>
    %16 = vector.shape_cast %15 : vector<8xf32> to vector<1x8xf32>
    %c0_17 = arith.constant 0 : index
    %c0_18 = arith.constant 0 : index
    %17 = vector.load %arg6[%c0_17, %c0_18] : memref<8x8xf32, #tpu.memory_space<vmem>>, vector<1x8xf32>
    tpu.vector_store %arg6[%c0_17, %c0_18], %16 {strides = array<i32>} : memref<8x8xf32, #tpu.memory_space<vmem>>, vector<1x8xf32>,
    return
  }
  func.func @transform_0(%arg0: i32) -> (i32, i32) {
    %c0_i32 = arith.constant 0 : i32
    %c0_i32_0 = arith.constant 0 : i32
    return %arg0, %c0_i32 : i32, i32
  }
  func.func @transform_1(%arg0: i32) -> (i32, i32) {
    %c0_i32 = arith.constant 0 : i32
    %c0_i32_0 = arith.constant 0 : i32
    %c0_i32_1 = arith.constant 0 : i32
    return %c0_i32, %c0_i32_0 : i32, i32
  }
  func.func @transform_2(%arg0: i32) -> (i32, i32) {
    %c0_i32 = arith.constant 0 : i32
    %c0_i32_0 = arith.constant 0 : i32
    %c0_i32_1 = arith.constant 0 : i32
    return %c0_i32, %c0_i32_0 : i32, i32
  }
  func.func @transform_3(%arg0: i32) -> (i32, i32) {
    %c0_i32 = arith.constant 0 : i32
    %c0_i32_0 = arith.constant 0 : i32
    return %arg0, %c0_i32 : i32, i32
  }
  func.func @transform_4(%arg0: i32) -> (i32, i32) {
    %c0_i32 = arith.constant 0 : i32
    %c0_i32_0 = arith.constant 0 : i32
    return %arg0, %c0_i32 : i32, i32
  }
  func.func @transform_5(%arg0: i32) -> (i32, i32) {
    %c0_i32 = arith.constant 0 : i32
    %c0_i32_0 = arith.constant 0 : i32
    return %arg0, %c0_i32 : i32, i32
  }
}

module attributes {stable_mosaic.version = 11 : i64} {
  func.func @bn_conv1x1_stats_kernel(%arg0: i32, %arg1: memref<128x8xf32, #tpu.memory_space<vmem>>, %arg2: memref<1x8xf32, #tpu.memory_space<vmem>>, %arg3: memref<1x8xf32, #tpu.memory_space<vmem>>, %arg4: memref<1x8xf32, #tpu.memory_space<vmem>>, %arg5: memref<1x8xf32, #tpu.memory_space<vmem>>, %arg6: memref<8x32xf32, #tpu.memory_space<vmem>>, %arg7: memref<1x32xf32, #tpu.memory_space<vmem>>, %arg8: memref<128x32xf32, #tpu.memory_space<vmem>>, %arg9: memref<8x32xf32, #tpu.memory_space<vmem>>, %arg10: memref<8x32xf32, #tpu.memory_space<vmem>>) attributes {dimension_semantics = [#tpu.dimension_semantics<parallel>], iteration_bounds = array<i64: 1>, scalar_prefetch = 0 : i64, scratch_operands = 0 : i64, tpu.core_type = #tpu.core_type<tc>, window_params = [{transform_indices = @transform_0, window_bounds = array<i64: 128, 8>}, {pipeline_mode = #tpu.pipeline_mode<synchronous>, transform_indices = @transform_1, window_bounds = array<i64: 1, 8>}, {pipeline_mode = #tpu.pipeline_mode<synchronous>, transform_indices = @transform_2, window_bounds = array<i64: 1, 8>}, {pipeline_mode = #tpu.pipeline_mode<synchronous>, transform_indices = @transform_3, window_bounds = array<i64: 1, 8>}, {pipeline_mode = #tpu.pipeline_mode<synchronous>, transform_indices = @transform_4, window_bounds = array<i64: 1, 8>}, {pipeline_mode = #tpu.pipeline_mode<synchronous>, transform_indices = @transform_5, window_bounds = array<i64: 8, 32>}, {pipeline_mode = #tpu.pipeline_mode<synchronous>, transform_indices = @transform_6, window_bounds = array<i64: 1, 32>}, {transform_indices = @transform_7, window_bounds = array<i64: 128, 32>}, {transform_indices = @transform_8, window_bounds = array<i64: 8, 32>}, {transform_indices = @transform_9, window_bounds = array<i64: 8, 32>}]} {
    %c0 = arith.constant 0 : index
    %c0_0 = arith.constant 0 : index
    %0 = vector.load %arg3[%c0, %c0_0] : memref<1x8xf32, #tpu.memory_space<vmem>>, vector<1x8xf32>
    %cst = arith.constant 9.99999974E-6 : f32
    %1 = vector.broadcast %cst : f32 to vector<1x8xf32>
    %2 = arith.addf %0, %1 : vector<1x8xf32>
    %3 = math.rsqrt %2 : vector<1x8xf32>
    %c0_1 = arith.constant 0 : index
    %c0_2 = arith.constant 0 : index
    %4 = vector.load %arg1[%c0_1, %c0_2] : memref<128x8xf32, #tpu.memory_space<vmem>>, vector<128x8xf32>
    %c0_3 = arith.constant 0 : index
    %c0_4 = arith.constant 0 : index
    %5 = vector.load %arg2[%c0_3, %c0_4] : memref<1x8xf32, #tpu.memory_space<vmem>>, vector<1x8xf32>
    %6 = vector.broadcast %5 : vector<1x8xf32> to vector<128x8xf32>
    %7 = arith.subf %4, %6 : vector<128x8xf32>
    %8 = vector.broadcast %3 : vector<1x8xf32> to vector<128x8xf32>
    %9 = arith.mulf %7, %8 : vector<128x8xf32>
    %c0_5 = arith.constant 0 : index
    %c0_6 = arith.constant 0 : index
    %10 = vector.load %arg4[%c0_5, %c0_6] : memref<1x8xf32, #tpu.memory_space<vmem>>, vector<1x8xf32>
    %11 = vector.broadcast %10 : vector<1x8xf32> to vector<128x8xf32>
    %12 = arith.mulf %9, %11 : vector<128x8xf32>
    %c0_7 = arith.constant 0 : index
    %c0_8 = arith.constant 0 : index
    %13 = vector.load %arg5[%c0_7, %c0_8] : memref<1x8xf32, #tpu.memory_space<vmem>>, vector<1x8xf32>
    %14 = vector.broadcast %13 : vector<1x8xf32> to vector<128x8xf32>
    %15 = arith.addf %12, %14 : vector<128x8xf32>
    %cst_9 = arith.constant 0.000000e+00 : f32
    %16 = vector.broadcast %cst_9 : f32 to vector<128x8xf32>
    %17 = arith.maximumf %15, %16 : vector<128x8xf32>
    %c0_10 = arith.constant 0 : index
    %c0_11 = arith.constant 0 : index
    %18 = vector.load %arg6[%c0_10, %c0_11] : memref<8x32xf32, #tpu.memory_space<vmem>>, vector<8x32xf32>
    %cst_12 = arith.constant dense<0.000000e+00> : vector<128x32xf32>
    %19 = tpu.matmul %17, %18, %cst_12 {dimension_numbers = #tpu.dot_dimension_numbers<[1], [0], [0], [1], [0, 0, 1, 1], [], []>} : vector<128x8xf32>, vector<8x32xf32>, vector<128x32xf32> -> vector<128x32xf32>
    %c0_13 = arith.constant 0 : index
    %c0_14 = arith.constant 0 : index
    %20 = vector.load %arg7[%c0_13, %c0_14] : memref<1x32xf32, #tpu.memory_space<vmem>>, vector<1x32xf32>
    %21 = vector.broadcast %20 : vector<1x32xf32> to vector<128x32xf32>
    %22 = arith.addf %19, %21 : vector<128x32xf32>
    %c0_15 = arith.constant 0 : index
    %c0_16 = arith.constant 0 : index
    %23 = vector.load %arg8[%c0_15, %c0_16] : memref<128x32xf32, #tpu.memory_space<vmem>>, vector<128x32xf32>
    tpu.vector_store %arg8[%c0_15, %c0_16], %22 {strides = array<i32>} : memref<128x32xf32, #tpu.memory_space<vmem>>, vector<128x32xf32>,
    %cst_17 = arith.constant 0.000000e+00 : f32
    %24 = vector.broadcast %cst_17 : f32 to vector<8x32xf32>
    %c0_18 = arith.constant 0 : index
    %c0_19 = arith.constant 0 : index
    %25 = vector.load %arg9[%c0_18, %c0_19] : memref<8x32xf32, #tpu.memory_space<vmem>>, vector<8x32xf32>
    tpu.vector_store %arg9[%c0_18, %c0_19], %24 {strides = array<i32>} : memref<8x32xf32, #tpu.memory_space<vmem>>, vector<8x32xf32>,
    %cst_20 = arith.constant 0.000000e+00 : f32
    %26 = vector.broadcast %cst_20 : f32 to vector<8x32xf32>
    %c0_21 = arith.constant 0 : index
    %c0_22 = arith.constant 0 : index
    %27 = vector.load %arg10[%c0_21, %c0_22] : memref<8x32xf32, #tpu.memory_space<vmem>>, vector<8x32xf32>
    tpu.vector_store %arg10[%c0_21, %c0_22], %26 {strides = array<i32>} : memref<8x32xf32, #tpu.memory_space<vmem>>, vector<8x32xf32>,
    %cst_23 = arith.constant dense<0.000000e+00> : vector<32xf32>
    %28 = vector.multi_reduction <add>, %19, %cst_23 [0] : vector<128x32xf32> to vector<32xf32>
    %29 = vector.shape_cast %28 : vector<32xf32> to vector<1x32xf32>
    %c0_24 = arith.constant 0 : index
    %c0_25 = arith.constant 0 : index
    %30 = vector.load %arg9[%c0_24, %c0_25] : memref<8x32xf32, #tpu.memory_space<vmem>>, vector<1x32xf32>
    tpu.vector_store %arg9[%c0_24, %c0_25], %29 {strides = array<i32>} : memref<8x32xf32, #tpu.memory_space<vmem>>, vector<1x32xf32>,
    %31 = arith.mulf %19, %19 : vector<128x32xf32>
    %cst_26 = arith.constant dense<0.000000e+00> : vector<32xf32>
    %32 = vector.multi_reduction <add>, %31, %cst_26 [0] : vector<128x32xf32> to vector<32xf32>
    %33 = vector.shape_cast %32 : vector<32xf32> to vector<1x32xf32>
    %c0_27 = arith.constant 0 : index
    %c0_28 = arith.constant 0 : index
    %34 = vector.load %arg10[%c0_27, %c0_28] : memref<8x32xf32, #tpu.memory_space<vmem>>, vector<1x32xf32>
    tpu.vector_store %arg10[%c0_27, %c0_28], %33 {strides = array<i32>} : memref<8x32xf32, #tpu.memory_space<vmem>>, vector<1x32xf32>,
    return
  }
  func.func @transform_0(%arg0: i32) -> (i32, i32) {
    %c0_i32 = arith.constant 0 : i32
    %c0_i32_0 = arith.constant 0 : i32
    return %arg0, %c0_i32 : i32, i32
  }
  func.func @transform_1(%arg0: i32) -> (i32, i32) {
    %c0_i32 = arith.constant 0 : i32
    %c0_i32_0 = arith.constant 0 : i32
    %c0_i32_1 = arith.constant 0 : i32
    return %c0_i32, %c0_i32_0 : i32, i32
  }
  func.func @transform_2(%arg0: i32) -> (i32, i32) {
    %c0_i32 = arith.constant 0 : i32
    %c0_i32_0 = arith.constant 0 : i32
    %c0_i32_1 = arith.constant 0 : i32
    return %c0_i32, %c0_i32_0 : i32, i32
  }
  func.func @transform_3(%arg0: i32) -> (i32, i32) {
    %c0_i32 = arith.constant 0 : i32
    %c0_i32_0 = arith.constant 0 : i32
    %c0_i32_1 = arith.constant 0 : i32
    return %c0_i32, %c0_i32_0 : i32, i32
  }
  func.func @transform_4(%arg0: i32) -> (i32, i32) {
    %c0_i32 = arith.constant 0 : i32
    %c0_i32_0 = arith.constant 0 : i32
    %c0_i32_1 = arith.constant 0 : i32
    return %c0_i32, %c0_i32_0 : i32, i32
  }
  func.func @transform_5(%arg0: i32) -> (i32, i32) {
    %c0_i32 = arith.constant 0 : i32
    %c0_i32_0 = arith.constant 0 : i32
    %c0_i32_1 = arith.constant 0 : i32
    return %c0_i32, %c0_i32_0 : i32, i32
  }
  func.func @transform_6(%arg0: i32) -> (i32, i32) {
    %c0_i32 = arith.constant 0 : i32
    %c0_i32_0 = arith.constant 0 : i32
    %c0_i32_1 = arith.constant 0 : i32
    return %c0_i32, %c0_i32_0 : i32, i32
  }
  func.func @transform_7(%arg0: i32) -> (i32, i32) {
    %c0_i32 = arith.constant 0 : i32
    %c0_i32_0 = arith.constant 0 : i32
    return %arg0, %c0_i32 : i32, i32
  }
  func.func @transform_8(%arg0: i32) -> (i32, i32) {
    %c0_i32 = arith.constant 0 : i32
    %c0_i32_0 = arith.constant 0 : i32
    return %arg0, %c0_i32 : i32, i32
  }
  func.func @transform_9(%arg0: i32) -> (i32, i32) {
    %c0_i32 = arith.constant 0 : i32
    %c0_i32_0 = arith.constant 0 : i32
    return %arg0, %c0_i32 : i32, i32
  }
}

module attributes {stable_mosaic.version = 11 : i64} {
  func.func @bn_conv3x3_stats_kernel(%arg0: i32, %arg1: memref<1x8x8x8xf32, #tpu.memory_space<vmem>>, %arg2: memref<1x8xf32, #tpu.memory_space<vmem>>, %arg3: memref<1x8xf32, #tpu.memory_space<vmem>>, %arg4: memref<1x8xf32, #tpu.memory_space<vmem>>, %arg5: memref<1x8xf32, #tpu.memory_space<vmem>>, %arg6: memref<9x8x8xf32, #tpu.memory_space<vmem>>, %arg7: memref<1x8xf32, #tpu.memory_space<vmem>>, %arg8: memref<1x8x8x8xf32, #tpu.memory_space<vmem>>, %arg9: memref<8x8xf32, #tpu.memory_space<vmem>>, %arg10: memref<8x8xf32, #tpu.memory_space<vmem>>, %arg11: memref<10x17x8xf32, #tpu.memory_space<vmem>>) attributes {dimension_semantics = [#tpu.dimension_semantics<parallel>], iteration_bounds = array<i64: 2>, scalar_prefetch = 0 : i64, scratch_operands = 1 : i64, tpu.core_type = #tpu.core_type<tc>, window_params = [{transform_indices = @transform_0, window_bounds = array<i64: 1, 8, 8, 8>}, {pipeline_mode = #tpu.pipeline_mode<synchronous>, transform_indices = @transform_1, window_bounds = array<i64: 1, 8>}, {pipeline_mode = #tpu.pipeline_mode<synchronous>, transform_indices = @transform_2, window_bounds = array<i64: 1, 8>}, {pipeline_mode = #tpu.pipeline_mode<synchronous>, transform_indices = @transform_3, window_bounds = array<i64: 1, 8>}, {pipeline_mode = #tpu.pipeline_mode<synchronous>, transform_indices = @transform_4, window_bounds = array<i64: 1, 8>}, {pipeline_mode = #tpu.pipeline_mode<synchronous>, transform_indices = @transform_5, window_bounds = array<i64: 9, 8, 8>}, {pipeline_mode = #tpu.pipeline_mode<synchronous>, transform_indices = @transform_6, window_bounds = array<i64: 1, 8>}, {transform_indices = @transform_7, window_bounds = array<i64: 1, 8, 8, 8>}, {transform_indices = @transform_8, window_bounds = array<i64: 8, 8>}, {transform_indices = @transform_9, window_bounds = array<i64: 8, 8>}]} {
    %cst = arith.constant 0.000000e+00 : f32
    %0 = vector.broadcast %cst : f32 to vector<1x17x8xf32>
    %c0 = arith.constant 0 : index
    %c0_0 = arith.constant 0 : index
    %c0_1 = arith.constant 0 : index
    %1 = vector.load %arg11[%c0, %c0_0, %c0_1] : memref<10x17x8xf32, #tpu.memory_space<vmem>>, vector<1x17x8xf32>
    tpu.vector_store %arg11[%c0, %c0_0, %c0_1], %0 {strides = array<i32>} : memref<10x17x8xf32, #tpu.memory_space<vmem>>, vector<1x17x8xf32>,
    %cst_2 = arith.constant 0.000000e+00 : f32
    %2 = vector.broadcast %cst_2 : f32 to vector<1x17x8xf32>
    %c9 = arith.constant 9 : index
    %c0_3 = arith.constant 0 : index
    %c0_4 = arith.constant 0 : index
    %3 = vector.load %arg11[%c9, %c0_3, %c0_4] : memref<10x17x8xf32, #tpu.memory_space<vmem>>, vector<1x17x8xf32>
    tpu.vector_store %arg11[%c9, %c0_3, %c0_4], %2 {strides = array<i32>} : memref<10x17x8xf32, #tpu.memory_space<vmem>>, vector<1x17x8xf32>,
    %cst_5 = arith.constant 0.000000e+00 : f32
    %4 = vector.broadcast %cst_5 : f32 to vector<10x1x8xf32>
    %c0_6 = arith.constant 0 : index
    %c7 = arith.constant 7 : index
    %c0_7 = arith.constant 0 : index
    %5 = vector.load %arg11[%c0_6, %c7, %c0_7] : memref<10x17x8xf32, #tpu.memory_space<vmem>>, vector<10x1x8xf32>
    tpu.vector_store %arg11[%c0_6, %c7, %c0_7], %4 {strides = array<i32>} : memref<10x17x8xf32, #tpu.memory_space<vmem>>, vector<10x1x8xf32>,
    %cst_8 = arith.constant 0.000000e+00 : f32
    %6 = vector.broadcast %cst_8 : f32 to vector<10x1x8xf32>
    %c0_9 = arith.constant 0 : index
    %c16 = arith.constant 16 : index
    %c0_10 = arith.constant 0 : index
    %7 = vector.load %arg11[%c0_9, %c16, %c0_10] : memref<10x17x8xf32, #tpu.memory_space<vmem>>, vector<10x1x8xf32>
    tpu.vector_store %arg11[%c0_9, %c16, %c0_10], %6 {strides = array<i32>} : memref<10x17x8xf32, #tpu.memory_space<vmem>>, vector<10x1x8xf32>,
    %c0_11 = arith.constant 0 : index
    %c0_12 = arith.constant 0 : index
    %8 = vector.load %arg3[%c0_11, %c0_12] : memref<1x8xf32, #tpu.memory_space<vmem>>, vector<1x8xf32>
    %cst_13 = arith.constant 9.99999974E-6 : f32
    %9 = vector.broadcast %cst_13 : f32 to vector<1x8xf32>
    %10 = arith.addf %8, %9 : vector<1x8xf32>
    %11 = math.rsqrt %10 : vector<1x8xf32>
    %c0_14 = arith.constant 0 : index
    %c0_15 = arith.constant 0 : index
    %c0_16 = arith.constant 0 : index
    %c0_17 = arith.constant 0 : index
    %12 = vector.load %arg1[%c0_14, %c0_15, %c0_16, %c0_17] : memref<1x8x8x8xf32, #tpu.memory_space<vmem>>, vector<1x8x8x8xf32>
    %13 = vector.shape_cast %12 : vector<1x8x8x8xf32> to vector<8x8x8xf32>
    %c0_18 = arith.constant 0 : index
    %c0_19 = arith.constant 0 : index
    %14 = vector.load %arg2[%c0_18, %c0_19] : memref<1x8xf32, #tpu.memory_space<vmem>>, vector<1x8xf32>
    %15 = vector.shape_cast %14 : vector<1x8xf32> to vector<1x1x8xf32>
    %16 = vector.broadcast %15 : vector<1x1x8xf32> to vector<8x8x8xf32>
    %17 = arith.subf %13, %16 : vector<8x8x8xf32>
    %18 = vector.shape_cast %11 : vector<1x8xf32> to vector<1x1x8xf32>
    %19 = vector.broadcast %18 : vector<1x1x8xf32> to vector<8x8x8xf32>
    %20 = arith.mulf %17, %19 : vector<8x8x8xf32>
    %c0_20 = arith.constant 0 : index
    %c0_21 = arith.constant 0 : index
    %21 = vector.load %arg4[%c0_20, %c0_21] : memref<1x8xf32, #tpu.memory_space<vmem>>, vector<1x8xf32>
    %22 = vector.shape_cast %21 : vector<1x8xf32> to vector<1x1x8xf32>
    %23 = vector.broadcast %22 : vector<1x1x8xf32> to vector<8x8x8xf32>
    %24 = arith.mulf %20, %23 : vector<8x8x8xf32>
    %c0_22 = arith.constant 0 : index
    %c0_23 = arith.constant 0 : index
    %25 = vector.load %arg5[%c0_22, %c0_23] : memref<1x8xf32, #tpu.memory_space<vmem>>, vector<1x8xf32>
    %26 = vector.shape_cast %25 : vector<1x8xf32> to vector<1x1x8xf32>
    %27 = vector.broadcast %26 : vector<1x1x8xf32> to vector<8x8x8xf32>
    %28 = arith.addf %24, %27 : vector<8x8x8xf32>
    %cst_24 = arith.constant 0.000000e+00 : f32
    %29 = vector.broadcast %cst_24 : f32 to vector<8x8x8xf32>
    %30 = arith.maximumf %28, %29 : vector<8x8x8xf32>
    %c1 = arith.constant 1 : index
    %c8 = arith.constant 8 : index
    %c0_25 = arith.constant 0 : index
    %31 = vector.load %arg11[%c1, %c8, %c0_25] : memref<10x17x8xf32, #tpu.memory_space<vmem>>, vector<8x8x8xf32>
    tpu.vector_store %arg11[%c1, %c8, %c0_25], %30 {strides = array<i32>} : memref<10x17x8xf32, #tpu.memory_space<vmem>>, vector<8x8x8xf32>,
    %c0_26 = arith.constant 0 : index
    %c0_27 = arith.constant 0 : index
    %c0_28 = arith.constant 0 : index
    %32 = vector.load %arg11[%c0_26, %c0_27, %c0_28] : memref<10x17x8xf32, #tpu.memory_space<vmem>>, vector<10x17x8xf32>
    %33 = vector.extract_strided_slice %32 {offsets = [0, 7, 0], sizes = [8, 8, 8], strides = [1, 1, 1]} : vector<10x17x8xf32> to vector<8x8x8xf32>
    %34 = vector.shape_cast %33 : vector<8x8x8xf32> to vector<64x8xf32>
    %c0_29 = arith.constant 0 : index
    %c0_30 = arith.constant 0 : index
    %c0_31 = arith.constant 0 : index
    %35 = vector.load %arg6[%c0_29, %c0_30, %c0_31] : memref<9x8x8xf32, #tpu.memory_space<vmem>>, vector<1x8x8xf32>
    %36 = vector.shape_cast %35 : vector<1x8x8xf32> to vector<8x8xf32>
    %cst_32 = arith.constant dense<0.000000e+00> : vector<64x8xf32>
    %37 = tpu.matmul %34, %36, %cst_32 {dimension_numbers = #tpu.dot_dimension_numbers<[1], [0], [0], [1], [0, 0, 1, 1], [], []>} : vector<64x8xf32>, vector<8x8xf32>, vector<64x8xf32> -> vector<64x8xf32>
    %38 = vector.extract_strided_slice %32 {offsets = [0, 8, 0], sizes = [8, 8, 8], strides = [1, 1, 1]} : vector<10x17x8xf32> to vector<8x8x8xf32>
    %39 = vector.shape_cast %38 : vector<8x8x8xf32> to vector<64x8xf32>
    %c1_33 = arith.constant 1 : index
    %c0_34 = arith.constant 0 : index
    %c0_35 = arith.constant 0 : index
    %40 = vector.load %arg6[%c1_33, %c0_34, %c0_35] : memref<9x8x8xf32, #tpu.memory_space<vmem>>, vector<1x8x8xf32>
    %41 = vector.shape_cast %40 : vector<1x8x8xf32> to vector<8x8xf32>
    %cst_36 = arith.constant dense<0.000000e+00> : vector<64x8xf32>
    %42 = tpu.matmul %39, %41, %cst_36 {dimension_numbers = #tpu.dot_dimension_numbers<[1], [0], [0], [1], [0, 0, 1, 1], [], []>} : vector<64x8xf32>, vector<8x8xf32>, vector<64x8xf32> -> vector<64x8xf32>
    %43 = arith.addf %37, %42 : vector<64x8xf32>
    %44 = vector.extract_strided_slice %32 {offsets = [0, 9, 0], sizes = [8, 8, 8], strides = [1, 1, 1]} : vector<10x17x8xf32> to vector<8x8x8xf32>
    %45 = vector.shape_cast %44 : vector<8x8x8xf32> to vector<64x8xf32>
    %c2 = arith.constant 2 : index
    %c0_37 = arith.constant 0 : index
    %c0_38 = arith.constant 0 : index
    %46 = vector.load %arg6[%c2, %c0_37, %c0_38] : memref<9x8x8xf32, #tpu.memory_space<vmem>>, vector<1x8x8xf32>
    %47 = vector.shape_cast %46 : vector<1x8x8xf32> to vector<8x8xf32>
    %cst_39 = arith.constant dense<0.000000e+00> : vector<64x8xf32>
    %48 = tpu.matmul %45, %47, %cst_39 {dimension_numbers = #tpu.dot_dimension_numbers<[1], [0], [0], [1], [0, 0, 1, 1], [], []>} : vector<64x8xf32>, vector<8x8xf32>, vector<64x8xf32> -> vector<64x8xf32>
    %49 = arith.addf %43, %48 : vector<64x8xf32>
    %50 = vector.extract_strided_slice %32 {offsets = [1, 7, 0], sizes = [8, 8, 8], strides = [1, 1, 1]} : vector<10x17x8xf32> to vector<8x8x8xf32>
    %51 = vector.shape_cast %50 : vector<8x8x8xf32> to vector<64x8xf32>
    %c3 = arith.constant 3 : index
    %c0_40 = arith.constant 0 : index
    %c0_41 = arith.constant 0 : index
    %52 = vector.load %arg6[%c3, %c0_40, %c0_41] : memref<9x8x8xf32, #tpu.memory_space<vmem>>, vector<1x8x8xf32>
    %53 = vector.shape_cast %52 : vector<1x8x8xf32> to vector<8x8xf32>
    %cst_42 = arith.constant dense<0.000000e+00> : vector<64x8xf32>
    %54 = tpu.matmul %51, %53, %cst_42 {dimension_numbers = #tpu.dot_dimension_numbers<[1], [0], [0], [1], [0, 0, 1, 1], [], []>} : vector<64x8xf32>, vector<8x8xf32>, vector<64x8xf32> -> vector<64x8xf32>
    %55 = arith.addf %49, %54 : vector<64x8xf32>
    %56 = vector.extract_strided_slice %32 {offsets = [1, 8, 0], sizes = [8, 8, 8], strides = [1, 1, 1]} : vector<10x17x8xf32> to vector<8x8x8xf32>
    %57 = vector.shape_cast %56 : vector<8x8x8xf32> to vector<64x8xf32>
    %c4 = arith.constant 4 : index
    %c0_43 = arith.constant 0 : index
    %c0_44 = arith.constant 0 : index
    %58 = vector.load %arg6[%c4, %c0_43, %c0_44] : memref<9x8x8xf32, #tpu.memory_space<vmem>>, vector<1x8x8xf32>
    %59 = vector.shape_cast %58 : vector<1x8x8xf32> to vector<8x8xf32>
    %cst_45 = arith.constant dense<0.000000e+00> : vector<64x8xf32>
    %60 = tpu.matmul %57, %59, %cst_45 {dimension_numbers = #tpu.dot_dimension_numbers<[1], [0], [0], [1], [0, 0, 1, 1], [], []>} : vector<64x8xf32>, vector<8x8xf32>, vector<64x8xf32> -> vector<64x8xf32>
    %61 = arith.addf %55, %60 : vector<64x8xf32>
    %62 = vector.extract_strided_slice %32 {offsets = [1, 9, 0], sizes = [8, 8, 8], strides = [1, 1, 1]} : vector<10x17x8xf32> to vector<8x8x8xf32>
    %63 = vector.shape_cast %62 : vector<8x8x8xf32> to vector<64x8xf32>
    %c5 = arith.constant 5 : index
    %c0_46 = arith.constant 0 : index
    %c0_47 = arith.constant 0 : index
    %64 = vector.load %arg6[%c5, %c0_46, %c0_47] : memref<9x8x8xf32, #tpu.memory_space<vmem>>, vector<1x8x8xf32>
    %65 = vector.shape_cast %64 : vector<1x8x8xf32> to vector<8x8xf32>
    %cst_48 = arith.constant dense<0.000000e+00> : vector<64x8xf32>
    %66 = tpu.matmul %63, %65, %cst_48 {dimension_numbers = #tpu.dot_dimension_numbers<[1], [0], [0], [1], [0, 0, 1, 1], [], []>} : vector<64x8xf32>, vector<8x8xf32>, vector<64x8xf32> -> vector<64x8xf32>
    %67 = arith.addf %61, %66 : vector<64x8xf32>
    %68 = vector.extract_strided_slice %32 {offsets = [2, 7, 0], sizes = [8, 8, 8], strides = [1, 1, 1]} : vector<10x17x8xf32> to vector<8x8x8xf32>
    %69 = vector.shape_cast %68 : vector<8x8x8xf32> to vector<64x8xf32>
    %c6 = arith.constant 6 : index
    %c0_49 = arith.constant 0 : index
    %c0_50 = arith.constant 0 : index
    %70 = vector.load %arg6[%c6, %c0_49, %c0_50] : memref<9x8x8xf32, #tpu.memory_space<vmem>>, vector<1x8x8xf32>
    %71 = vector.shape_cast %70 : vector<1x8x8xf32> to vector<8x8xf32>
    %cst_51 = arith.constant dense<0.000000e+00> : vector<64x8xf32>
    %72 = tpu.matmul %69, %71, %cst_51 {dimension_numbers = #tpu.dot_dimension_numbers<[1], [0], [0], [1], [0, 0, 1, 1], [], []>} : vector<64x8xf32>, vector<8x8xf32>, vector<64x8xf32> -> vector<64x8xf32>
    %73 = arith.addf %67, %72 : vector<64x8xf32>
    %74 = vector.extract_strided_slice %32 {offsets = [2, 8, 0], sizes = [8, 8, 8], strides = [1, 1, 1]} : vector<10x17x8xf32> to vector<8x8x8xf32>
    %75 = vector.shape_cast %74 : vector<8x8x8xf32> to vector<64x8xf32>
    %c7_52 = arith.constant 7 : index
    %c0_53 = arith.constant 0 : index
    %c0_54 = arith.constant 0 : index
    %76 = vector.load %arg6[%c7_52, %c0_53, %c0_54] : memref<9x8x8xf32, #tpu.memory_space<vmem>>, vector<1x8x8xf32>
    %77 = vector.shape_cast %76 : vector<1x8x8xf32> to vector<8x8xf32>
    %cst_55 = arith.constant dense<0.000000e+00> : vector<64x8xf32>
    %78 = tpu.matmul %75, %77, %cst_55 {dimension_numbers = #tpu.dot_dimension_numbers<[1], [0], [0], [1], [0, 0, 1, 1], [], []>} : vector<64x8xf32>, vector<8x8xf32>, vector<64x8xf32> -> vector<64x8xf32>
    %79 = arith.addf %73, %78 : vector<64x8xf32>
    %80 = vector.extract_strided_slice %32 {offsets = [2, 9, 0], sizes = [8, 8, 8], strides = [1, 1, 1]} : vector<10x17x8xf32> to vector<8x8x8xf32>
    %81 = vector.shape_cast %80 : vector<8x8x8xf32> to vector<64x8xf32>
    %c8_56 = arith.constant 8 : index
    %c0_57 = arith.constant 0 : index
    %c0_58 = arith.constant 0 : index
    %82 = vector.load %arg6[%c8_56, %c0_57, %c0_58] : memref<9x8x8xf32, #tpu.memory_space<vmem>>, vector<1x8x8xf32>
    %83 = vector.shape_cast %82 : vector<1x8x8xf32> to vector<8x8xf32>
    %cst_59 = arith.constant dense<0.000000e+00> : vector<64x8xf32>
    %84 = tpu.matmul %81, %83, %cst_59 {dimension_numbers = #tpu.dot_dimension_numbers<[1], [0], [0], [1], [0, 0, 1, 1], [], []>} : vector<64x8xf32>, vector<8x8xf32>, vector<64x8xf32> -> vector<64x8xf32>
    %85 = arith.addf %79, %84 : vector<64x8xf32>
    %c0_60 = arith.constant 0 : index
    %c0_61 = arith.constant 0 : index
    %86 = vector.load %arg7[%c0_60, %c0_61] : memref<1x8xf32, #tpu.memory_space<vmem>>, vector<1x8xf32>
    %87 = vector.broadcast %86 : vector<1x8xf32> to vector<64x8xf32>
    %88 = arith.addf %85, %87 : vector<64x8xf32>
    %89 = vector.shape_cast %88 : vector<64x8xf32> to vector<8x8x8xf32>
    %c0_62 = arith.constant 0 : index
    %c0_63 = arith.constant 0 : index
    %c0_64 = arith.constant 0 : index
    %c0_65 = arith.constant 0 : index
    %90 = vector.load %arg8[%c0_62, %c0_63, %c0_64, %c0_65] : memref<1x8x8x8xf32, #tpu.memory_space<vmem>>, vector<1x8x8x8xf32>
    %91 = vector.shape_cast %90 : vector<1x8x8x8xf32> to vector<8x8x8xf32>
    %92 = vector.shape_cast %89 : vector<8x8x8xf32> to vector<1x8x8x8xf32>
    tpu.vector_store %arg8[%c0_62, %c0_63, %c0_64, %c0_65], %92 {strides = array<i32>} : memref<1x8x8x8xf32, #tpu.memory_space<vmem>>, vector<1x8x8x8xf32>,
    %cst_66 = arith.constant 0.000000e+00 : f32
    %93 = vector.broadcast %cst_66 : f32 to vector<8x8xf32>
    %c0_67 = arith.constant 0 : index
    %c0_68 = arith.constant 0 : index
    %94 = vector.load %arg9[%c0_67, %c0_68] : memref<8x8xf32, #tpu.memory_space<vmem>>, vector<8x8xf32>
    tpu.vector_store %arg9[%c0_67, %c0_68], %93 {strides = array<i32>} : memref<8x8xf32, #tpu.memory_space<vmem>>, vector<8x8xf32>,
    %cst_69 = arith.constant 0.000000e+00 : f32
    %95 = vector.broadcast %cst_69 : f32 to vector<8x8xf32>
    %c0_70 = arith.constant 0 : index
    %c0_71 = arith.constant 0 : index
    %96 = vector.load %arg10[%c0_70, %c0_71] : memref<8x8xf32, #tpu.memory_space<vmem>>, vector<8x8xf32>
    tpu.vector_store %arg10[%c0_70, %c0_71], %95 {strides = array<i32>} : memref<8x8xf32, #tpu.memory_space<vmem>>, vector<8x8xf32>,
    %cst_72 = arith.constant dense<0.000000e+00> : vector<8xf32>
    %97 = vector.multi_reduction <add>, %85, %cst_72 [0] : vector<64x8xf32> to vector<8xf32>
    %98 = vector.shape_cast %97 : vector<8xf32> to vector<1x8xf32>
    %c0_73 = arith.constant 0 : index
    %c0_74 = arith.constant 0 : index
    %99 = vector.load %arg9[%c0_73, %c0_74] : memref<8x8xf32, #tpu.memory_space<vmem>>, vector<1x8xf32>
    tpu.vector_store %arg9[%c0_73, %c0_74], %98 {strides = array<i32>} : memref<8x8xf32, #tpu.memory_space<vmem>>, vector<1x8xf32>,
    %100 = arith.mulf %85, %85 : vector<64x8xf32>
    %cst_75 = arith.constant dense<0.000000e+00> : vector<8xf32>
    %101 = vector.multi_reduction <add>, %100, %cst_75 [0] : vector<64x8xf32> to vector<8xf32>
    %102 = vector.shape_cast %101 : vector<8xf32> to vector<1x8xf32>
    %c0_76 = arith.constant 0 : index
    %c0_77 = arith.constant 0 : index
    %103 = vector.load %arg10[%c0_76, %c0_77] : memref<8x8xf32, #tpu.memory_space<vmem>>, vector<1x8xf32>
    tpu.vector_store %arg10[%c0_76, %c0_77], %102 {strides = array<i32>} : memref<8x8xf32, #tpu.memory_space<vmem>>, vector<1x8xf32>,
    return
  }
  func.func @transform_0(%arg0: i32) -> (i32, i32, i32, i32) {
    %c0_i32 = arith.constant 0 : i32
    %c0_i32_0 = arith.constant 0 : i32
    %c0_i32_1 = arith.constant 0 : i32
    %c0_i32_2 = arith.constant 0 : i32
    return %arg0, %c0_i32, %c0_i32_0, %c0_i32_1 : i32, i32, i32, i32
  }
  func.func @transform_1(%arg0: i32) -> (i32, i32) {
    %c0_i32 = arith.constant 0 : i32
    %c0_i32_0 = arith.constant 0 : i32
    %c0_i32_1 = arith.constant 0 : i32
    return %c0_i32, %c0_i32_0 : i32, i32
  }
  func.func @transform_2(%arg0: i32) -> (i32, i32) {
    %c0_i32 = arith.constant 0 : i32
    %c0_i32_0 = arith.constant 0 : i32
    %c0_i32_1 = arith.constant 0 : i32
    return %c0_i32, %c0_i32_0 : i32, i32
  }
  func.func @transform_3(%arg0: i32) -> (i32, i32) {
    %c0_i32 = arith.constant 0 : i32
    %c0_i32_0 = arith.constant 0 : i32
    %c0_i32_1 = arith.constant 0 : i32
    return %c0_i32, %c0_i32_0 : i32, i32
  }
  func.func @transform_4(%arg0: i32) -> (i32, i32) {
    %c0_i32 = arith.constant 0 : i32
    %c0_i32_0 = arith.constant 0 : i32
    %c0_i32_1 = arith.constant 0 : i32
    return %c0_i32, %c0_i32_0 : i32, i32
  }
  func.func @transform_5(%arg0: i32) -> (i32, i32, i32) {
    %c0_i32 = arith.constant 0 : i32
    %c0_i32_0 = arith.constant 0 : i32
    %c0_i32_1 = arith.constant 0 : i32
    %c0_i32_2 = arith.constant 0 : i32
    return %c0_i32, %c0_i32_0, %c0_i32_1 : i32, i32, i32
  }
  func.func @transform_6(%arg0: i32) -> (i32, i32) {
    %c0_i32 = arith.constant 0 : i32
    %c0_i32_0 = arith.constant 0 : i32
    %c0_i32_1 = arith.constant 0 : i32
    return %c0_i32, %c0_i32_0 : i32, i32
  }
  func.func @transform_7(%arg0: i32) -> (i32, i32, i32, i32) {
    %c0_i32 = arith.constant 0 : i32
    %c0_i32_0 = arith.constant 0 : i32
    %c0_i32_1 = arith.constant 0 : i32
    %c0_i32_2 = arith.constant 0 : i32
    return %arg0, %c0_i32, %c0_i32_0, %c0_i32_1 : i32, i32, i32, i32
  }
  func.func @transform_8(%arg0: i32) -> (i32, i32) {
    %c0_i32 = arith.constant 0 : i32
    %c0_i32_0 = arith.constant 0 : i32
    return %arg0, %c0_i32 : i32, i32
  }
  func.func @transform_9(%arg0: i32) -> (i32, i32) {
    %c0_i32 = arith.constant 0 : i32
    %c0_i32_0 = arith.constant 0 : i32
    return %arg0, %c0_i32 : i32, i32
  }
}

module attributes {stable_mosaic.version = 11 : i64} {
  func.func @bn_add_relu_kernel(%arg0: i32, %arg1: memref<128x32xf32, #tpu.memory_space<vmem>>, %arg2: memref<1x32xf32, #tpu.memory_space<vmem>>, %arg3: memref<1x32xf32, #tpu.memory_space<vmem>>, %arg4: memref<1x32xf32, #tpu.memory_space<vmem>>, %arg5: memref<1x32xf32, #tpu.memory_space<vmem>>, %arg6: memref<128x32xf32, #tpu.memory_space<vmem>>, %arg7: memref<128x32xf32, #tpu.memory_space<vmem>>) attributes {dimension_semantics = [#tpu.dimension_semantics<parallel>], iteration_bounds = array<i64: 1>, scalar_prefetch = 0 : i64, scratch_operands = 0 : i64, tpu.core_type = #tpu.core_type<tc>, window_params = [{transform_indices = @transform_0, window_bounds = array<i64: 128, 32>}, {pipeline_mode = #tpu.pipeline_mode<synchronous>, transform_indices = @transform_1, window_bounds = array<i64: 1, 32>}, {pipeline_mode = #tpu.pipeline_mode<synchronous>, transform_indices = @transform_2, window_bounds = array<i64: 1, 32>}, {pipeline_mode = #tpu.pipeline_mode<synchronous>, transform_indices = @transform_3, window_bounds = array<i64: 1, 32>}, {pipeline_mode = #tpu.pipeline_mode<synchronous>, transform_indices = @transform_4, window_bounds = array<i64: 1, 32>}, {transform_indices = @transform_5, window_bounds = array<i64: 128, 32>}, {transform_indices = @transform_6, window_bounds = array<i64: 128, 32>}]} {
    %c0 = arith.constant 0 : index
    %c0_0 = arith.constant 0 : index
    %0 = vector.load %arg3[%c0, %c0_0] : memref<1x32xf32, #tpu.memory_space<vmem>>, vector<1x32xf32>
    %cst = arith.constant 9.99999974E-6 : f32
    %1 = vector.broadcast %cst : f32 to vector<1x32xf32>
    %2 = arith.addf %0, %1 : vector<1x32xf32>
    %3 = math.rsqrt %2 : vector<1x32xf32>
    %c0_1 = arith.constant 0 : index
    %c0_2 = arith.constant 0 : index
    %4 = vector.load %arg1[%c0_1, %c0_2] : memref<128x32xf32, #tpu.memory_space<vmem>>, vector<128x32xf32>
    %c0_3 = arith.constant 0 : index
    %c0_4 = arith.constant 0 : index
    %5 = vector.load %arg2[%c0_3, %c0_4] : memref<1x32xf32, #tpu.memory_space<vmem>>, vector<1x32xf32>
    %6 = vector.broadcast %5 : vector<1x32xf32> to vector<128x32xf32>
    %7 = arith.subf %4, %6 : vector<128x32xf32>
    %8 = vector.broadcast %3 : vector<1x32xf32> to vector<128x32xf32>
    %9 = arith.mulf %7, %8 : vector<128x32xf32>
    %c0_5 = arith.constant 0 : index
    %c0_6 = arith.constant 0 : index
    %10 = vector.load %arg4[%c0_5, %c0_6] : memref<1x32xf32, #tpu.memory_space<vmem>>, vector<1x32xf32>
    %11 = vector.broadcast %10 : vector<1x32xf32> to vector<128x32xf32>
    %12 = arith.mulf %9, %11 : vector<128x32xf32>
    %c0_7 = arith.constant 0 : index
    %c0_8 = arith.constant 0 : index
    %13 = vector.load %arg5[%c0_7, %c0_8] : memref<1x32xf32, #tpu.memory_space<vmem>>, vector<1x32xf32>
    %14 = vector.broadcast %13 : vector<1x32xf32> to vector<128x32xf32>
    %15 = arith.addf %12, %14 : vector<128x32xf32>
    %c0_9 = arith.constant 0 : index
    %c0_10 = arith.constant 0 : index
    %16 = vector.load %arg6[%c0_9, %c0_10] : memref<128x32xf32, #tpu.memory_space<vmem>>, vector<128x32xf32>
    %17 = arith.addf %15, %16 : vector<128x32xf32>
    %cst_11 = arith.constant 0.000000e+00 : f32
    %18 = vector.broadcast %cst_11 : f32 to vector<128x32xf32>
    %19 = arith.maximumf %17, %18 : vector<128x32xf32>
    %c0_12 = arith.constant 0 : index
    %c0_13 = arith.constant 0 : index
    %20 = vector.load %arg7[%c0_12, %c0_13] : memref<128x32xf32, #tpu.memory_space<vmem>>, vector<128x32xf32>
    tpu.vector_store %arg7[%c0_12, %c0_13], %19 {strides = array<i32>} : memref<128x32xf32, #tpu.memory_space<vmem>>, vector<128x32xf32>,
    return
  }
  func.func @transform_0(%arg0: i32) -> (i32, i32) {
    %c0_i32 = arith.constant 0 : i32
    %c0_i32_0 = arith.constant 0 : i32
    return %arg0, %c0_i32 : i32, i32
  }
  func.func @transform_1(%arg0: i32) -> (i32, i32) {
    %c0_i32 = arith.constant 0 : i32
    %c0_i32_0 = arith.constant 0 : i32
    %c0_i32_1 = arith.constant 0 : i32
    return %c0_i32, %c0_i32_0 : i32, i32
  }
  func.func @transform_2(%arg0: i32) -> (i32, i32) {
    %c0_i32 = arith.constant 0 : i32
    %c0_i32_0 = arith.constant 0 : i32
    %c0_i32_1 = arith.constant 0 : i32
    return %c0_i32, %c0_i32_0 : i32, i32
  }
  func.func @transform_3(%arg0: i32) -> (i32, i32) {
    %c0_i32 = arith.constant 0 : i32
    %c0_i32_0 = arith.constant 0 : i32
    %c0_i32_1 = arith.constant 0 : i32
    return %c0_i32, %c0_i32_0 : i32, i32
  }
  func.func @transform_4(%arg0: i32) -> (i32, i32) {
    %c0_i32 = arith.constant 0 : i32
    %c0_i32_0 = arith.constant 0 : i32
    %c0_i32_1 = arith.constant 0 : i32
    return %c0_i32, %c0_i32_0 : i32, i32
  }
  func.func @transform_5(%arg0: i32) -> (i32, i32) {
    %c0_i32 = arith.constant 0 : i32
    %c0_i32_0 = arith.constant 0 : i32
    return %arg0, %c0_i32 : i32, i32
  }
  func.func @transform_6(%arg0: i32) -> (i32, i32) {
    %c0_i32 = arith.constant 0 : i32
    %c0_i32_0 = arith.constant 0 : i32
    return %arg0, %c0_i32 : i32, i32
  }
}

</mosaic_0001>

<llo_original>
// kernel: bottleneck_forward.4
$region0: #{bottleneck_forward.4}
  #allocation0 [shape = 'u32[]', space=smem, size = 0x4, offset = 0x4, fixed_abs, tag = 'smem constant byte address 0x4 - core index']
  #allocation1 [shape = 'u32[144,128]{1,0:T(1,128)}', space=vmem, size = 0x12000, scoped, tag = 'internal scratch']
  %s0 = inlined_call_operand.hbm [shape: f32[128,32], index: 0, kind: input, shape index: {}]
  %s1 = inlined_call_operand.vmem [shape: f32[32,8], index: 1, kind: input, shape index: {}]
  %s2 = inlined_call_operand.vmem [shape: f32[1,8], index: 2, kind: input, shape index: {}]
  %s3 = inlined_call_operand.vmem [shape: f32[128,8], index: 3, kind: output, shape index: {0}]
  %s4 = inlined_call_operand.vmem [shape: f32[8,8], index: 4, kind: output, shape index: {1}]
  %s5 = inlined_call_operand.vmem [shape: f32[8,8], index: 5, kind: output, shape index: {2}]
  %6 = xla_tuple %s3, %s4, %s5
  %s7 = sld [smem:[#allocation0]]
  $region42: #{bottleneck_forward.4} parent=0
    _
  %s9 = ssub.s32 1, %s7
  %s10 = scalar_select 0, %s9, %s7
  $region1: #{bottleneck_forward.4} parent=0
    #allocation2 [shape = 'u8[65536]{0}', space=vmem, size = 0x10000, scoped, tag = 'input window, operand 0, single buffered']
    #allocation3 [shape = 's32[1]{0}', space=sflag, size = 0x4, scoped, tag = 'scoped memory for bottleneck_forward.4']
    %11 = vsyncpa [#allocation3], 0
    // Predicated region
    $region2: #{bottleneck_forward.4} parent=1 // pred_check
      _
    $region3: #{bottleneck_forward.4} parent=1 // pred_check_branch
      %13 = sbr.rel (0) target = $region5
    $region4: #{bottleneck_forward.4} parent=1 // pred_region
      %s15 = ssub.s32 2048, 2048
      %16 = vsyncadd [#allocation3], %s15
      %s17 = sshll.u32 [#allocation2], 4
      %s18 = int_to_ptr.vmem [resolvable:$true] %s17
      %23 = dma.hbm_to_vmem [thread:$0]  %s0, 2048, %s18, [#allocation3], 128, 128, 8
    $region5: #{bottleneck_forward.4} parent=1 // pred_fallthru
      _
    // Predicated region
    $region6: #{bottleneck_forward.4} parent=1 // pred_check
      _
    $region7: #{bottleneck_forward.4} parent=1 // pred_check_branch
      %25 = sbr.rel (0) target = $region9
    $region8: #{bottleneck_forward.4} parent=1 // pred_region
      _
    $region9: #{bottleneck_forward.4} parent=1 // pred_fallthru
      _
    // Predicated region
    $region10: #{bottleneck_forward.4} parent=1 // pred_check
      _
    $region11: #{bottleneck_forward.4} parent=1 // pred_check_branch
      %27 = sbr.rel (0) target = $region13
    $region12: #{bottleneck_forward.4} parent=1 // pred_region
      _
    $region13: #{bottleneck_forward.4} parent=1 // pred_fallthru
      _
    // Predicated region
    $region14: #{bottleneck_forward.4} parent=1 // pred_check
      _
    $region15: #{bottleneck_forward.4} parent=1 // pred_check_branch
      %29 = sbr.rel (0) target = $region17
    $region16: #{bottleneck_forward.4} parent=1 // pred_region
      %30 = dma.done [#allocation3], 2048
    $region17: #{bottleneck_forward.4} parent=1 // pred_fallthru
      _
    %v31 = vld [vmem:[#allocation2] sm:$0xff]
    %v32 = vld [vmem:[#allocation2 + $0x8] sm:$0xff]
    %v33 = vld [vmem:[#allocation2 + $0x10] sm:$0xff]
    %v34 = vld [vmem:[#allocation2 + $0x18] sm:$0xff]
    %v35 = vld [vmem:[#allocation2 + $0x20] sm:$0xff]
    %v36 = vld [vmem:[#allocation2 + $0x28] sm:$0xff]
    %v37 = vld [vmem:[#allocation2 + $0x30] sm:$0xff]
    %v38 = vld [vmem:[#allocation2 + $0x38] sm:$0xff]
    %v39 = vld [vmem:[#allocation2 + $0x40] sm:$0xff]
    %v40 = vld [vmem:[#allocation2 + $0x48] sm:$0xff]
    %v41 = vld [vmem:[#allocation2 + $0x50] sm:$0xff]
    %v42 = vld [vmem:[#allocation2 + $0x58] sm:$0xff]
    %v43 = vld [vmem:[#allocation2 + $0x60] sm:$0xff]
    %v44 = vld [vmem:[#allocation2 + $0x68] sm:$0xff]
    %v45 = vld [vmem:[#allocation2 + $0x70] sm:$0xff]
    %v46 = vld [vmem:[#allocation2 + $0x78] sm:$0xff]
    %v47 = vld [vmem:[%s1] sm:$0xff]
    %v48 = vld [vmem:[%s1 + $0x8] sm:$0xff]
    %v49 = vld [vmem:[%s1 + $0x10] sm:$0xff]
    %v50 = vld [vmem:[%s1 + $0x18] sm:$0xff]
    %vm51 = vcmask 261120
    %v53 = vsel %vm51, %v31, 0
    %v56 = vsel %vm51, %v32, 0
    %v59 = vsel %vm51, %v33, 0
    %v62 = vsel %vm51, %v34, 0
    %v65 = vsel %vm51, %v35, 0
    %v68 = vsel %vm51, %v36, 0
    %v71 = vsel %vm51, %v37, 0
    %v74 = vsel %vm51, %v38, 0
    %v77 = vsel %vm51, %v39, 0
    %v80 = vsel %vm51, %v40, 0
    %v83 = vsel %vm51, %v41, 0
    %v86 = vsel %vm51, %v42, 0
    %v89 = vsel %vm51, %v43, 0
    %v92 = vsel %vm51, %v44, 0
    %v95 = vsel %vm51, %v45, 0
    %v98 = vsel %vm51, %v46, 0
    %100 = vmatprep.subr.mxu0 0.0
    %101 = vmatpush1.msra.mxu0 0.0
    %102 = vmatprep.subr.mxu0 0.0
    %103 = vmatpush1.msra.mxu0 0.0
    %104 = vmatprep.subr.mxu0 0.0
    %105 = vmatpush1.msra.mxu0 0.0
    %106 = vmatprep.subr.mxu0 0.0
    %107 = vmatpush1.msra.mxu0 0.0
    %108 = vmatprep.subr.mxu0 0.0
    %109 = vmatpush1.msra.mxu0 0.0
    %110 = vmatprep.subr.mxu0 0.0
    %111 = vmatpush1.msra.mxu0 0.0
    %112 = vmatprep.subr.mxu0 0.0
    %113 = vmatpush1.msra.mxu0 0.0
    %114 = vmatprep.subr.mxu0 0.0
    %115 = vmatpush1.msra.mxu0 0.0
    %116 = vmatprep.subr.mxu0 0.0
    %117 = vmatpush1.msra.mxu0 0.0
    %118 = vmatprep.subr.mxu0 0.0
    %119 = vmatpush1.msra.mxu0 0.0
    %120 = vmatprep.subr.mxu0 0.0
    %121 = vmatpush1.msra.mxu0 0.0
    %122 = vmatprep.subr.mxu0 0.0
    %123 = vmatpush1.msra.mxu0 0.0
    %124 = vmatprep.subr.mxu0 0.0
    %125 = vmatpush1.msra.mxu0 %v50
    %126 = vmatprep.subr.mxu0 0.0
    %127 = vmatpush1.msra.mxu0 %v49
    %128 = vmatprep.subr.mxu0 0.0
    %129 = vmatpush1.msra.mxu0 %v48
    %130 = vmatprep.subr.mxu0 0.0
    %131 = vmatpush1.msra.mxu0 %v47
    %132 = vmatprep.subr.mxu0 0.0
    %133 = vmatpush2.msra.mxu0 0.0
    %134 = vmatprep.subr.mxu0 0.0
    %135 = vmatpush2.msra.mxu0 0.0
    %136 = vmatprep.subr.mxu0 0.0
    %137 = vmatpush2.msra.mxu0 0.0
    %138 = vmatprep.subr.mxu0 0.0
    %139 = vmatpush2.msra.mxu0 0.0
    %140 = vmatprep.subr.mxu0 0.0
    %141 = vmatpush2.msra.mxu0 0.0
    %142 = vmatprep.subr.mxu0 0.0
    %143 = vmatpush2.msra.mxu0 0.0
    %144 = vmatprep.subr.mxu0 0.0
    %145 = vmatpush2.msra.mxu0 0.0
    %146 = vmatprep.subr.mxu0 0.0
    %147 = vmatpush2.msra.mxu0 0.0
    %148 = vmatprep.subr.mxu0 0.0
    %149 = vmatpush2.msra.mxu0 0.0
    %150 = vmatprep.subr.mxu0 0.0
    %151 = vmatpush2.msra.mxu0 0.0
    %152 = vmatprep.subr.mxu0 0.0
    %153 = vmatpush2.msra.mxu0 0.0
    %154 = vmatprep.subr.mxu0 0.0
    %155 = vmatpush2.msra.mxu0 0.0
    %156 = vmatprep.subr.mxu0 0.0
    %157 = vmatpush2.msra.mxu0 0.0
    %158 = vmatprep.subr.mxu0 0.0
    %159 = vmatpush2.msra.mxu0 0.0
    %160 = vmatprep.subr.mxu0 0.0
    %161 = vmatpush2.msra.mxu0 0.0
    %162 = vmatprep.subr.mxu0 0.0
    %163 = vmatpush2.msra.mxu0 0.0
    %164 = vmatprep.mubr.f32.mxu0 0.0
    %165 = vmatmul.mubr.f32.gmra.mxu0 %v53
    %v166 = vpop.f32.mrf.mxu0
    %v167 = vadd.f32 0.0, %v166
    %v168 = vpop.f32.mrf.mxu0
    %169 = vmatprep.mubr.f32.mxu0 0.0
    %170 = vmatmul.mubr.f32.gmra.mxu0 %v56
    %v171 = vpop.f32.mrf.mxu0
    %v172 = vadd.f32 0.0, %v171
    %v173 = vpop.f32.mrf.mxu0
    %174 = vmatprep.mubr.f32.mxu0 0.0
    %175 = vmatmul.mubr.f32.gmra.mxu0 %v59
    %v176 = vpop.f32.mrf.mxu0
    %v177 = vadd.f32 0.0, %v176
    %v178 = vpop.f32.mrf.mxu0
    %179 = vmatprep.mubr.f32.mxu0 0.0
    %180 = vmatmul.mubr.f32.gmra.mxu0 %v62
    %v181 = vpop.f32.mrf.mxu0
    %v182 = vadd.f32 0.0, %v181
    %v183 = vpop.f32.mrf.mxu0
    %184 = vmatprep.mubr.f32.mxu0 0.0
    %185 = vmatmul.mubr.f32.gmra.mxu0 %v65
    %v186 = vpop.f32.mrf.mxu0
    %v187 = vadd.f32 0.0, %v186
    %v188 = vpop.f32.mrf.mxu0
    %189 = vmatprep.mubr.f32.mxu0 0.0
    %190 = vmatmul.mubr.f32.gmra.mxu0 %v68
    %v191 = vpop.f32.mrf.mxu0
    %v192 = vadd.f32 0.0, %v191
    %v193 = vpop.f32.mrf.mxu0
    %194 = vmatprep.mubr.f32.mxu0 0.0
    %195 = vmatmul.mubr.f32.gmra.mxu0 %v71
    %v196 = vpop.f32.mrf.mxu0
    %v197 = vadd.f32 0.0, %v196
    %v198 = vpop.f32.mrf.mxu0
    %199 = vmatprep.mubr.f32.mxu0 0.0
    %200 = vmatmul.mubr.f32.gmra.mxu0 %v74
    %v201 = vpop.f32.mrf.mxu0
    %v202 = vadd.f32 0.0, %v201
    %v203 = vpop.f32.mrf.mxu0
    %204 = vmatprep.mubr.f32.mxu0 0.0
    %205 = vmatmul.mubr.f32.gmra.mxu0 %v77
    %v206 = vpop.f32.mrf.mxu0
    %v207 = vadd.f32 0.0, %v206
    %v208 = vpop.f32.mrf.mxu0
    %209 = vmatprep.mubr.f32.mxu0 0.0
    %210 = vmatmul.mubr.f32.gmra.mxu0 %v80
    %v211 = vpop.f32.mrf.mxu0
    %v212 = vadd.f32 0.0, %v211
    %v213 = vpop.f32.mrf.mxu0
    %214 = vmatprep.mubr.f32.mxu0 0.0
    %215 = vmatmul.mubr.f32.gmra.mxu0 %v83
    %v216 = vpop.f32.mrf.mxu0
    %v217 = vadd.f32 0.0, %v216
    %v218 = vpop.f32.mrf.mxu0
    %219 = vmatprep.mubr.f32.mxu0 0.0
    %220 = vmatmul.mubr.f32.gmra.mxu0 %v86
    %v221 = vpop.f32.mrf.mxu0
    %v222 = vadd.f32 0.0, %v221
    %v223 = vpop.f32.mrf.mxu0
    %224 = vmatprep.mubr.f32.mxu0 0.0
    %225 = vmatmul.mubr.f32.gmra.mxu0 %v89
    %v226 = vpop.f32.mrf.mxu0
    %v227 = vadd.f32 0.0, %v226
    %v228 = vpop.f32.mrf.mxu0
    %229 = vmatprep.mubr.f32.mxu0 0.0
    %230 = vmatmul.mubr.f32.gmra.mxu0 %v92
    %v231 = vpop.f32.mrf.mxu0
    %v232 = vadd.f32 0.0, %v231
    %v233 = vpop.f32.mrf.mxu0
    %234 = vmatprep.mubr.f32.mxu0 0.0
    %235 = vmatmul.mubr.f32.gmra.mxu0 %v95
    %v236 = vpop.f32.mrf.mxu0
    %v237 = vadd.f32 0.0, %v236
    %v238 = vpop.f32.mrf.mxu0
    %239 = vmatprep.mubr.f32.mxu0 0.0
    %240 = vmatmul.mubr.f32.gmra.mxu0 %v98
    %v241 = vpop.f32.mrf.mxu0
    %v242 = vadd.f32 0.0, %v241
    %v243 = vpop.f32.mrf.mxu0
    %244 = vdwg.mxu0
    %v245 = vld [vmem:[%s2] sm:$0x1]
    %v247 = vlaneseq
    %v248 = vshrl.u32 %v247, 7
    %v249 = vsub.s32 0, %v248
    %v250 = vrot.slane %v245, %v249
    %v252 = vadd.f32 %v167, %v250
    %v253 = vadd.f32 %v172, %v250
    %v254 = vadd.f32 %v177, %v250
    %v255 = vadd.f32 %v182, %v250
    %v256 = vadd.f32 %v187, %v250
    %v257 = vadd.f32 %v192, %v250
    %v258 = vadd.f32 %v197, %v250
    %v259 = vadd.f32 %v202, %v250
    %v260 = vadd.f32 %v207, %v250
    %v261 = vadd.f32 %v212, %v250
    %v262 = vadd.f32 %v217, %v250
    %v263 = vadd.f32 %v222, %v250
    %v264 = vadd.f32 %v227, %v250
    %v265 = vadd.f32 %v232, %v250
    %v266 = vadd.f32 %v237, %v250
    %v267 = vadd.f32 %v242, %v250
    %vm268 = vcmask 64512
    %269 = vst.msk [vmem:[%s3] sm:$0xff] %vm268, %v252
    %270 = vst.msk [vmem:[%s3 + $0x8] sm:$0xff] %vm268, %v253
    %271 = vst.msk [vmem:[%s3 + $0x10] sm:$0xff] %vm268, %v254
    %272 = vst.msk [vmem:[%s3 + $0x18] sm:$0xff] %vm268, %v255
    %273 = vst.msk [vmem:[%s3 + $0x20] sm:$0xff] %vm268, %v256
    %274 = vst.msk [vmem:[%s3 + $0x28] sm:$0xff] %vm268, %v257
    %275 = vst.msk [vmem:[%s3 + $0x30] sm:$0xff] %vm268, %v258
    %276 = vst.msk [vmem:[%s3 + $0x38] sm:$0xff] %vm268, %v259
    %277 = vst.msk [vmem:[%s3 + $0x40] sm:$0xff] %vm268, %v260
    %278 = vst.msk [vmem:[%s3 + $0x48] sm:$0xff] %vm268, %v261
    %279 = vst.msk [vmem:[%s3 + $0x50] sm:$0xff] %vm268, %v262
    %280 = vst.msk [vmem:[%s3 + $0x58] sm:$0xff] %vm268, %v263
    %281 = vst.msk [vmem:[%s3 + $0x60] sm:$0xff] %vm268, %v264
    %282 = vst.msk [vmem:[%s3 + $0x68] sm:$0xff] %vm268, %v265
    %283 = vst.msk [vmem:[%s3 + $0x70] sm:$0xff] %vm268, %v266
    %284 = vst.msk [vmem:[%s3 + $0x78] sm:$0xff] %vm268, %v267
    %285 = vst.msk [vmem:[%s4] sm:$0xff] %vm268, 0.0
    %286 = vst.msk [vmem:[%s5] sm:$0xff] %vm268, 0.0
    %v287 = vsel %vm268, %v167, 0.0
    %v288 = vsel %vm268, %v172, 0.0
    %v289 = vadd.f32 %v287, %v288
    %v290 = vsel %vm268, %v177, 0.0
    %v291 = vadd.f32 %v289, %v290
    %v292 = vsel %vm268, %v182, 0.0
    %v293 = vadd.f32 %v291, %v292
    %v294 = vsel %vm268, %v187, 0.0
    %v295 = vadd.f32 %v293, %v294
    %v296 = vsel %vm268, %v192, 0.0
    %v297 = vadd.f32 %v295, %v296
    %v298 = vsel %vm268, %v197, 0.0
    %v299 = vadd.f32 %v297, %v298
    %v300 = vsel %vm268, %v202, 0.0
    %v301 = vadd.f32 %v299, %v300
    %v302 = vsel %vm268, %v207, 0.0
    %v303 = vadd.f32 %v301, %v302
    %v304 = vsel %vm268, %v212, 0.0
    %v305 = vadd.f32 %v303, %v304
    %v306 = vsel %vm268, %v217, 0.0
    %v307 = vadd.f32 %v305, %v306
    %v308 = vsel %vm268, %v222, 0.0
    %v309 = vadd.f32 %v307, %v308
    %v310 = vsel %vm268, %v227, 0.0
    %v311 = vadd.f32 %v309, %v310
    %v312 = vsel %vm268, %v232, 0.0
    %v313 = vadd.f32 %v311, %v312
    %v314 = vsel %vm268, %v237, 0.0
    %v315 = vadd.f32 %v313, %v314
    %v316 = vsel %vm268, %v242, 0.0
    %v317 = vadd.f32 %v315, %v316
    %v318 = vrot.slane %v317, 4
    %v319 = vadd.f32 %v317, %v318
    %v320 = vrot.slane %v319, 2
    %v321 = vadd.f32 %v319, %v320
    %v322 = vrot.slane %v321, 1
    %v323 = vadd.f32 %v321, %v322
    %vm324 = vcmask 57344
    %325 = vst.msk [vmem:[%s4] sm:$0x1] %vm324, %v323
    %v326 = vmul.f32 %v167, %v167
    %v327 = vmul.f32 %v172, %v172
    %v328 = vmul.f32 %v177, %v177
    %v329 = vmul.f32 %v182, %v182
    %v330 = vmul.f32 %v187, %v187
    %v331 = vmul.f32 %v192, %v192
    %v332 = vmul.f32 %v197, %v197
    %v333 = vmul.f32 %v202, %v202
    %v334 = vmul.f32 %v207, %v207
    %v335 = vmul.f32 %v212, %v212
    %v336 = vmul.f32 %v217, %v217
    %v337 = vmul.f32 %v222, %v222
    %v338 = vmul.f32 %v227, %v227
    %v339 = vmul.f32 %v232, %v232
    %v340 = vmul.f32 %v237, %v237
    %v341 = vmul.f32 %v242, %v242
    %v342 = vsel %vm268, %v326, 0.0
    %v343 = vsel %vm268, %v327, 0.0
    %v344 = vadd.f32 %v342, %v343
    %v345 = vsel %vm268, %v328, 0.0
    %v346 = vadd.f32 %v344, %v345
    %v347 = vsel %vm268, %v329, 0.0
    %v348 = vadd.f32 %v346, %v347
    %v349 = vsel %vm268, %v330, 0.0
    %v350 = vadd.f32 %v348, %v349
    %v351 = vsel %vm268, %v331, 0.0
    %v352 = vadd.f32 %v350, %v351
    %v353 = vsel %vm268, %v332, 0.0
    %v354 = vadd.f32 %v352, %v353
    %v355 = vsel %vm268, %v333, 0.0
    %v356 = vadd.f32 %v354, %v355
    %v357 = vsel %vm268, %v334, 0.0
    %v358 = vadd.f32 %v356, %v357
    %v359 = vsel %vm268, %v335, 0.0
    %v360 = vadd.f32 %v358, %v359
    %v361 = vsel %vm268, %v336, 0.0
    %v362 = vadd.f32 %v360, %v361
    %v363 = vsel %vm268, %v337, 0.0
    %v364 = vadd.f32 %v362, %v363
    %v365 = vsel %vm268, %v338, 0.0
    %v366 = vadd.f32 %v364, %v365
    %v367 = vsel %vm268, %v339, 0.0
    %v368 = vadd.f32 %v366, %v367
    %v369 = vsel %vm268, %v340, 0.0
    %v370 = vadd.f32 %v368, %v369
    %v371 = vsel %vm268, %v341, 0.0
    %v372 = vadd.f32 %v370, %v371
    %v373 = vrot.slane %v372, 4
    %v374 = vadd.f32 %v372, %v373
    %v375 = vrot.slane %v374, 2
    %v376 = vadd.f32 %v374, %v375
    %v377 = vrot.slane %v376, 1
    %v378 = vadd.f32 %v376, %v377
    %379 = vst.msk [vmem:[%s5] sm:$0x1] %vm324, %v378
    // Predicated region
    $region18: #{bottleneck_forward.4} parent=1 // pred_check
      _
    $region19: #{bottleneck_forward.4} parent=1 // pred_check_branch
      %381 = sbr.rel (0) target = $region21
    $region20: #{bottleneck_forward.4} parent=1 // pred_region
      _
    $region21: #{bottleneck_forward.4} parent=1 // pred_fallthru
      _
    // Predicated region
    $region22: #{bottleneck_forward.4} parent=1 // pred_check
      _
    $region23: #{bottleneck_forward.4} parent=1 // pred_check_branch
      %383 = sbr.rel (0) target = $region25
    $region24: #{bottleneck_forward.4} parent=1 // pred_region
      _
    $region25: #{bottleneck_forward.4} parent=1 // pred_fallthru
      _
    // Predicated region
    $region26: #{bottleneck_forward.4} parent=1 // pred_check
      _
    $region27: #{bottleneck_forward.4} parent=1 // pred_check_branch
      %385 = sbr.rel (0) target = $region29
    $region28: #{bottleneck_forward.4} parent=1 // pred_region
      _
    $region29: #{bottleneck_forward.4} parent=1 // pred_fallthru
      _
    // Predicated region
    $region30: #{bottleneck_forward.4} parent=1 // pred_check
      _
    $region31: #{bottleneck_forward.4} parent=1 // pred_check_branch
      %387 = sbr.rel (0) target = $region33
    $region32: #{bottleneck_forward.4} parent=1 // pred_region
      _
    $region33: #{bottleneck_forward.4} parent=1 // pred_fallthru
      _
    // Predicated region
    $region34: #{bottleneck_forward.4} parent=1 // pred_check
      _
    $region35: #{bottleneck_forward.4} parent=1 // pred_check_branch
      %389 = sbr.rel (0) target = $region37
    $region36: #{bottleneck_forward.4} parent=1 // pred_region
      _
    $region37: #{bottleneck_forward.4} parent=1 // pred_fallthru
      _
    // Predicated region
    $region38: #{bottleneck_forward.4} parent=1 // pred_check
      _
    $region39: #{bottleneck_forward.4} parent=1 // pred_check_branch
      %391 = sbr.rel (0) target = $region41
    $region40: #{bottleneck_forward.4} parent=1 // pred_region
      _
    $region41: #{bottleneck_forward.4} parent=1 // pred_fallthru
      _
    %392 = vsyncpa [#allocation3], 1

// kernel: bottleneck_forward.7
$region0: #{bottleneck_forward.7}
  #allocation0 [shape = 'u32[]', space=smem, size = 0x4, offset = 0x4, fixed_abs, tag = 'smem constant byte address 0x4 - core index']
  #allocation1 [shape = 'u32[144,128]{1,0:T(1,128)}', space=vmem, size = 0x12000, scoped, tag = 'internal scratch']
  %s0 = inlined_call_operand.vmem [shape: f32[128,32], index: 0, kind: input, shape index: {}]
  %s1 = inlined_call_operand.vmem [shape: f32[1,32], index: 1, kind: input, shape index: {}]
  %s2 = inlined_call_operand.vmem [shape: f32[1,32], index: 2, kind: input, shape index: {}]
  %s3 = inlined_call_operand.vmem [shape: f32[1,32], index: 3, kind: input, shape index: {}]
  %s4 = inlined_call_operand.vmem [shape: f32[1,32], index: 4, kind: input, shape index: {}]
  %s5 = inlined_call_operand.vmem [shape: f32[128,32], index: 5, kind: input, shape index: {}]
  %s6 = inlined_call_operand.hbm [shape: f32[128,32], index: 6, kind: output, shape index: {}]
  %s7 = sld [smem:[#allocation0]]
  $region34: #{bottleneck_forward.7} parent=0
    _
  %s9 = ssub.s32 1, %s7
  %s10 = scalar_select 0, %s9, %s7
  $region1: #{bottleneck_forward.7} parent=0
    #allocation2 [shape = 'u8[65536]{0}', space=vmem, size = 0x10000, scoped, tag = 'output window, operand 0, single buffered']
    #allocation3 [shape = 's32[1]{0}', space=sflag, size = 0x4, scoped, tag = 'scoped memory for bottleneck_forward.7']
    %11 = vsyncpa [#allocation3], 0
    // Predicated region
    $region2: #{bottleneck_forward.7} parent=1 // pred_check
      _
    $region3: #{bottleneck_forward.7} parent=1 // pred_check_branch
      %13 = sbr.rel (0) target = $region5
    $region4: #{bottleneck_forward.7} parent=1 // pred_region
      _
    $region5: #{bottleneck_forward.7} parent=1 // pred_fallthru
      _
    // Predicated region
    $region6: #{bottleneck_forward.7} parent=1 // pred_check
      _
    $region7: #{bottleneck_forward.7} parent=1 // pred_check_branch
      %15 = sbr.rel (0) target = $region9
    $region8: #{bottleneck_forward.7} parent=1 // pred_region
      _
    $region9: #{bottleneck_forward.7} parent=1 // pred_fallthru
      _
    // Predicated region
    $region10: #{bottleneck_forward.7} parent=1 // pred_check
      _
    $region11: #{bottleneck_forward.7} parent=1 // pred_check_branch
      %17 = sbr.rel (0) target = $region13
    $region12: #{bottleneck_forward.7} parent=1 // pred_region
      _
    $region13: #{bottleneck_forward.7} parent=1 // pred_fallthru
      _
    // Predicated region
    $region14: #{bottleneck_forward.7} parent=1 // pred_check
      _
    $region15: #{bottleneck_forward.7} parent=1 // pred_check_branch
      %19 = sbr.rel (0) target = $region17
    $region16: #{bottleneck_forward.7} parent=1 // pred_region
      _
    $region17: #{bottleneck_forward.7} parent=1 // pred_fallthru
      _
    // Predicated region
    $region18: #{bottleneck_forward.7} parent=1 // pred_check
      _
    $region19: #{bottleneck_forward.7} parent=1 // pred_check_branch
      %21 = sbr.rel (0) target = $region21
    $region20: #{bottleneck_forward.7} parent=1 // pred_region
      _
    $region21: #{bottleneck_forward.7} parent=1 // pred_fallthru
      _
    // Predicated region
    $region22: #{bottleneck_forward.7} parent=1 // pred_check
      _
    $region23: #{bottleneck_forward.7} parent=1 // pred_check_branch
      %23 = sbr.rel (0) target = $region25
    $region24: #{bottleneck_forward.7} parent=1 // pred_region
      _
    $region25: #{bottleneck_forward.7} parent=1 // pred_fallthru
      _
    %v24 = vld [vmem:[%s2] sm:$0x1]
    %v25 = vadd.f32 %v24, 1e-05
    %v26 = vrsqrt.pop %v25
    %v27 = vld [vmem:[%s0] sm:$0xff]
    %v28 = vld [vmem:[%s0 + $0x8] sm:$0xff]
    %v29 = vld [vmem:[%s0 + $0x10] sm:$0xff]
    %v30 = vld [vmem:[%s0 + $0x18] sm:$0xff]
    %v31 = vld [vmem:[%s0 + $0x20] sm:$0xff]
    %v32 = vld [vmem:[%s0 + $0x28] sm:$0xff]
    %v33 = vld [vmem:[%s0 + $0x30] sm:$0xff]
    %v34 = vld [vmem:[%s0 + $0x38] sm:$0xff]
    %v35 = vld [vmem:[%s0 + $0x40] sm:$0xff]
    %v36 = vld [vmem:[%s0 + $0x48] sm:$0xff]
    %v37 = vld [vmem:[%s0 + $0x50] sm:$0xff]
    %v38 = vld [vmem:[%s0 + $0x58] sm:$0xff]
    %v39 = vld [vmem:[%s0 + $0x60] sm:$0xff]
    %v40 = vld [vmem:[%s0 + $0x68] sm:$0xff]
    %v41 = vld [vmem:[%s0 + $0x70] sm:$0xff]
    %v42 = vld [vmem:[%s0 + $0x78] sm:$0xff]
    %v43 = vld [vmem:[%s1] sm:$0x1]
    %v45 = vlaneseq
    %v46 = vshrl.u32 %v45, 7
    %v47 = vsub.s32 0, %v46
    %v48 = vrot.slane %v43, %v47
    %v50 = vsub.f32 %v27, %v48
    %v51 = vsub.f32 %v28, %v48
    %v52 = vsub.f32 %v29, %v48
    %v53 = vsub.f32 %v30, %v48
    %v54 = vsub.f32 %v31, %v48
    %v55 = vsub.f32 %v32, %v48
    %v56 = vsub.f32 %v33, %v48
    %v57 = vsub.f32 %v34, %v48
    %v58 = vsub.f32 %v35, %v48
    %v59 = vsub.f32 %v36, %v48
    %v60 = vsub.f32 %v37, %v48
    %v61 = vsub.f32 %v38, %v48
    %v62 = vsub.f32 %v39, %v48
    %v63 = vsub.f32 %v40, %v48
    %v64 = vsub.f32 %v41, %v48
    %v65 = vsub.f32 %v42, %v48
    %v67 = vlaneseq
    %v68 = vshrl.u32 %v67, 7
    %v69 = vsub.s32 0, %v68
    %v70 = vrot.slane %v26, %v69
    %v72 = vmul.f32 %v50, %v70
    %v73 = vmul.f32 %v51, %v70
    %v74 = vmul.f32 %v52, %v70
    %v75 = vmul.f32 %v53, %v70
    %v76 = vmul.f32 %v54, %v70
    %v77 = vmul.f32 %v55, %v70
    %v78 = vmul.f32 %v56, %v70
    %v79 = vmul.f32 %v57, %v70
    %v80 = vmul.f32 %v58, %v70
    %v81 = vmul.f32 %v59, %v70
    %v82 = vmul.f32 %v60, %v70
    %v83 = vmul.f32 %v61, %v70
    %v84 = vmul.f32 %v62, %v70
    %v85 = vmul.f32 %v63, %v70
    %v86 = vmul.f32 %v64, %v70
    %v87 = vmul.f32 %v65, %v70
    %v88 = vld [vmem:[%s3] sm:$0x1]
    %v90 = vlaneseq
    %v91 = vshrl.u32 %v90, 7
    %v92 = vsub.s32 0, %v91
    %v93 = vrot.slane %v88, %v92
    %v95 = vmul.f32 %v72, %v93
    %v96 = vmul.f32 %v73, %v93
    %v97 = vmul.f32 %v74, %v93
    %v98 = vmul.f32 %v75, %v93
    %v99 = vmul.f32 %v76, %v93
    %v100 = vmul.f32 %v77, %v93
    %v101 = vmul.f32 %v78, %v93
    %v102 = vmul.f32 %v79, %v93
    %v103 = vmul.f32 %v80, %v93
    %v104 = vmul.f32 %v81, %v93
    %v105 = vmul.f32 %v82, %v93
    %v106 = vmul.f32 %v83, %v93
    %v107 = vmul.f32 %v84, %v93
    %v108 = vmul.f32 %v85, %v93
    %v109 = vmul.f32 %v86, %v93
    %v110 = vmul.f32 %v87, %v93
    %v111 = vld [vmem:[%s4] sm:$0x1]
    %v113 = vlaneseq
    %v114 = vshrl.u32 %v113, 7
    %v115 = vsub.s32 0, %v114
    %v116 = vrot.slane %v111, %v115
    %v118 = vadd.f32 %v95, %v116
    %v119 = vadd.f32 %v96, %v116
    %v120 = vadd.f32 %v97, %v116
    %v121 = vadd.f32 %v98, %v116
    %v122 = vadd.f32 %v99, %v116
    %v123 = vadd.f32 %v100, %v116
    %v124 = vadd.f32 %v101, %v116
    %v125 = vadd.f32 %v102, %v116
    %v126 = vadd.f32 %v103, %v116
    %v127 = vadd.f32 %v104, %v116
    %v128 = vadd.f32 %v105, %v116
    %v129 = vadd.f32 %v106, %v116
    %v130 = vadd.f32 %v107, %v116
    %v131 = vadd.f32 %v108, %v116
    %v132 = vadd.f32 %v109, %v116
    %v133 = vadd.f32 %v110, %v116
    %v134 = vld [vmem:[%s5] sm:$0xff]
    %v135 = vld [vmem:[%s5 + $0x8] sm:$0xff]
    %v136 = vld [vmem:[%s5 + $0x10] sm:$0xff]
    %v137 = vld [vmem:[%s5 + $0x18] sm:$0xff]
    %v138 = vld [vmem:[%s5 + $0x20] sm:$0xff]
    %v139 = vld [vmem:[%s5 + $0x28] sm:$0xff]
    %v140 = vld [vmem:[%s5 + $0x30] sm:$0xff]
    %v141 = vld [vmem:[%s5 + $0x38] sm:$0xff]
    %v142 = vld [vmem:[%s5 + $0x40] sm:$0xff]
    %v143 = vld [vmem:[%s5 + $0x48] sm:$0xff]
    %v144 = vld [vmem:[%s5 + $0x50] sm:$0xff]
    %v145 = vld [vmem:[%s5 + $0x58] sm:$0xff]
    %v146 = vld [vmem:[%s5 + $0x60] sm:$0xff]
    %v147 = vld [vmem:[%s5 + $0x68] sm:$0xff]
    %v148 = vld [vmem:[%s5 + $0x70] sm:$0xff]
    %v149 = vld [vmem:[%s5 + $0x78] sm:$0xff]
    %v150 = vadd.f32 %v118, %v134
    %v151 = vadd.f32 %v119, %v135
    %v152 = vadd.f32 %v120, %v136
    %v153 = vadd.f32 %v121, %v137
    %v154 = vadd.f32 %v122, %v138
    %v155 = vadd.f32 %v123, %v139
    %v156 = vadd.f32 %v124, %v140
    %v157 = vadd.f32 %v125, %v141
    %v158 = vadd.f32 %v126, %v142
    %v159 = vadd.f32 %v127, %v143
    %v160 = vadd.f32 %v128, %v144
    %v161 = vadd.f32 %v129, %v145
    %v162 = vadd.f32 %v130, %v146
    %v163 = vadd.f32 %v131, %v147
    %v164 = vadd.f32 %v132, %v148
    %v165 = vadd.f32 %v133, %v149
    %v166 = vmax.f32 %v150, 0.0
    %v167 = vmax.f32 %v151, 0.0
    %v168 = vmax.f32 %v152, 0.0
    %v169 = vmax.f32 %v153, 0.0
    %v170 = vmax.f32 %v154, 0.0
    %v171 = vmax.f32 %v155, 0.0
    %v172 = vmax.f32 %v156, 0.0
    %v173 = vmax.f32 %v157, 0.0
    %v174 = vmax.f32 %v158, 0.0
    %v175 = vmax.f32 %v159, 0.0
    %v176 = vmax.f32 %v160, 0.0
    %v177 = vmax.f32 %v161, 0.0
    %v178 = vmax.f32 %v162, 0.0
    %v179 = vmax.f32 %v163, 0.0
    %v180 = vmax.f32 %v164, 0.0
    %v181 = vmax.f32 %v165, 0.0
    %vm182 = vcmask 261120
    %183 = vst.msk [vmem:[#allocation2] sm:$0xff] %vm182, %v166
    %184 = vst.msk [vmem:[#allocation2 + $0x8] sm:$0xff] %vm182, %v167
    %185 = vst.msk [vmem:[#allocation2 + $0x10] sm:$0xff] %vm182, %v168
    %186 = vst.msk [vmem:[#allocation2 + $0x18] sm:$0xff] %vm182, %v169
    %187 = vst.msk [vmem:[#allocation2 + $0x20] sm:$0xff] %vm182, %v170
    %188 = vst.msk [vmem:[#allocation2 + $0x28] sm:$0xff] %vm182, %v171
    %189 = vst.msk [vmem:[#allocation2 + $0x30] sm:$0xff] %vm182, %v172
    %190 = vst.msk [vmem:[#allocation2 + $0x38] sm:$0xff] %vm182, %v173
    %191 = vst.msk [vmem:[#allocation2 + $0x40] sm:$0xff] %vm182, %v174
    %192 = vst.msk [vmem:[#allocation2 + $0x48] sm:$0xff] %vm182, %v175
    %193 = vst.msk [vmem:[#allocation2 + $0x50] sm:$0xff] %vm182, %v176
    %194 = vst.msk [vmem:[#allocation2 + $0x58] sm:$0xff] %vm182, %v177
    %195 = vst.msk [vmem:[#allocation2 + $0x60] sm:$0xff] %vm182, %v178
    %196 = vst.msk [vmem:[#allocation2 + $0x68] sm:$0xff] %vm182, %v179
    %197 = vst.msk [vmem:[#allocation2 + $0x70] sm:$0xff] %vm182, %v180
    %198 = vst.msk [vmem:[#allocation2 + $0x78] sm:$0xff] %vm182, %v181
    // Predicated region
    $region26: #{bottleneck_forward.7} parent=1 // pred_check
      _
    $region27: #{bottleneck_forward.7} parent=1 // pred_check_branch
      %200 = sbr.rel (0) target = $region29
    $region28: #{bottleneck_forward.7} parent=1 // pred_region
      %s202 = ssub.s32 2048, 2048
      %203 = vsyncadd [#allocation3], %s202
      %s204 = sshll.u32 [#allocation2], 4
      %s205 = int_to_ptr.vmem [resolvable:$true] %s204
      %210 = dma.vmem_to_hbm [thread:$0]  %s205, 2048, %s6, [#allocation3], 128, 128, 8
    $region29: #{bottleneck_forward.7} parent=1 // pred_fallthru
      _
    // Predicated region
    $region30: #{bottleneck_forward.7} parent=1 // pred_check
      _
    $region31: #{bottleneck_forward.7} parent=1 // pred_check_branch
      %212 = sbr.rel (0) target = $region33
    $region32: #{bottleneck_forward.7} parent=1 // pred_region
      %213 = dma.done [#allocation3], 2048
    $region33: #{bottleneck_forward.7} parent=1 // pred_fallthru
      _
    %214 = vsyncpa [#allocation3], 1

// kernel: bottleneck_forward.6
$region0: #{bottleneck_forward.6}
  #allocation0 [shape = 'u32[]', space=smem, size = 0x4, offset = 0x4, fixed_abs, tag = 'smem constant byte address 0x4 - core index']
  #allocation1 [shape = 'u32[144,128]{1,0:T(1,128)}', space=vmem, size = 0x12000, scoped, tag = 'internal scratch']
  %s0 = inlined_call_operand.vmem [shape: f32[128,8], index: 0, kind: input, shape index: {}]
  %s1 = inlined_call_operand.vmem [shape: f32[1,8], index: 1, kind: input, shape index: {}]
  %s2 = inlined_call_operand.vmem [shape: f32[1,8], index: 2, kind: input, shape index: {}]
  %s3 = inlined_call_operand.vmem [shape: f32[1,8], index: 3, kind: input, shape index: {}]
  %s4 = inlined_call_operand.vmem [shape: f32[1,8], index: 4, kind: input, shape index: {}]
  %s5 = inlined_call_operand.vmem [shape: f32[8,32], index: 5, kind: input, shape index: {}]
  %s6 = inlined_call_operand.vmem [shape: f32[1,32], index: 6, kind: input, shape index: {}]
  %s7 = inlined_call_operand.vmem [shape: f32[128,32], index: 7, kind: output, shape index: {0}]
  %s8 = inlined_call_operand.vmem [shape: f32[8,32], index: 8, kind: output, shape index: {1}]
  %s9 = inlined_call_operand.vmem [shape: f32[8,32], index: 9, kind: output, shape index: {2}]
  %10 = xla_tuple %s7, %s8, %s9
  %s11 = sld [smem:[#allocation0]]
  $region54: #{bottleneck_forward.6} parent=0
    _
  %s13 = ssub.s32 1, %s11
  %s14 = scalar_select 0, %s13, %s11
  // Predicated region
  $region2: #{bottleneck_forward.6} parent=0 // pred_check
    _
  $region3: #{bottleneck_forward.6} parent=0 // pred_check_branch
    %16 = sbr.rel (0) target = $region5
  $region4: #{bottleneck_forward.6} parent=0 // pred_region
    _
  $region5: #{bottleneck_forward.6} parent=0 // pred_fallthru
    _
  // Predicated region
  $region6: #{bottleneck_forward.6} parent=0 // pred_check
    _
  $region7: #{bottleneck_forward.6} parent=0 // pred_check_branch
    %18 = sbr.rel (0) target = $region9
  $region8: #{bottleneck_forward.6} parent=0 // pred_region
    _
  $region9: #{bottleneck_forward.6} parent=0 // pred_fallthru
    _
  // Predicated region
  $region10: #{bottleneck_forward.6} parent=0 // pred_check
    _
  $region11: #{bottleneck_forward.6} parent=0 // pred_check_branch
    %20 = sbr.rel (0) target = $region13
  $region12: #{bottleneck_forward.6} parent=0 // pred_region
    _
  $region13: #{bottleneck_forward.6} parent=0 // pred_fallthru
    _
  // Predicated region
  $region14: #{bottleneck_forward.6} parent=0 // pred_check
    _
  $region15: #{bottleneck_forward.6} parent=0 // pred_check_branch
    %22 = sbr.rel (0) target = $region17
  $region16: #{bottleneck_forward.6} parent=0 // pred_region
    _
  $region17: #{bottleneck_forward.6} parent=0 // pred_fallthru
    _
  // Predicated region
  $region18: #{bottleneck_forward.6} parent=0 // pred_check
    _
  $region19: #{bottleneck_forward.6} parent=0 // pred_check_branch
    %24 = sbr.rel (0) target = $region21
  $region20: #{bottleneck_forward.6} parent=0 // pred_region
    _
  $region21: #{bottleneck_forward.6} parent=0 // pred_fallthru
    _
  // Predicated region
  $region22: #{bottleneck_forward.6} parent=0 // pred_check
    _
  $region23: #{bottleneck_forward.6} parent=0 // pred_check_branch
    %26 = sbr.rel (0) target = $region25
  $region24: #{bottleneck_forward.6} parent=0 // pred_region
    _
  $region25: #{bottleneck_forward.6} parent=0 // pred_fallthru
    _
  // Predicated region
  $region26: #{bottleneck_forward.6} parent=0 // pred_check
    _
  $region27: #{bottleneck_forward.6} parent=0 // pred_check_branch
    %28 = sbr.rel (0) target = $region29
  $region28: #{bottleneck_forward.6} parent=0 // pred_region
    _
  $region29: #{bottleneck_forward.6} parent=0 // pred_fallthru
    _
  %v29 = vld [vmem:[%s2] sm:$0x1]
  %v30 = vadd.f32 %v29, 1e-05
  %v31 = vrsqrt.pop %v30
  %v32 = vld [vmem:[%s0] sm:$0xff]
  %v33 = vld [vmem:[%s0 + $0x8] sm:$0xff]
  %v34 = vld [vmem:[%s0 + $0x10] sm:$0xff]
  %v35 = vld [vmem:[%s0 + $0x18] sm:$0xff]
  %v36 = vld [vmem:[%s0 + $0x20] sm:$0xff]
  %v37 = vld [vmem:[%s0 + $0x28] sm:$0xff]
  %v38 = vld [vmem:[%s0 + $0x30] sm:$0xff]
  %v39 = vld [vmem:[%s0 + $0x38] sm:$0xff]
  %v40 = vld [vmem:[%s0 + $0x40] sm:$0xff]
  %v41 = vld [vmem:[%s0 + $0x48] sm:$0xff]
  %v42 = vld [vmem:[%s0 + $0x50] sm:$0xff]
  %v43 = vld [vmem:[%s0 + $0x58] sm:$0xff]
  %v44 = vld [vmem:[%s0 + $0x60] sm:$0xff]
  %v45 = vld [vmem:[%s0 + $0x68] sm:$0xff]
  %v46 = vld [vmem:[%s0 + $0x70] sm:$0xff]
  %v47 = vld [vmem:[%s0 + $0x78] sm:$0xff]
  %v48 = vld [vmem:[%s1] sm:$0x1]
  %v50 = vlaneseq
  %v51 = vshrl.u32 %v50, 7
  %v52 = vsub.s32 0, %v51
  %v53 = vrot.slane %v48, %v52
  %v55 = vsub.f32 %v32, %v53
  %v56 = vsub.f32 %v33, %v53
  %v57 = vsub.f32 %v34, %v53
  %v58 = vsub.f32 %v35, %v53
  %v59 = vsub.f32 %v36, %v53
  %v60 = vsub.f32 %v37, %v53
  %v61 = vsub.f32 %v38, %v53
  %v62 = vsub.f32 %v39, %v53
  %v63 = vsub.f32 %v40, %v53
  %v64 = vsub.f32 %v41, %v53
  %v65 = vsub.f32 %v42, %v53
  %v66 = vsub.f32 %v43, %v53
  %v67 = vsub.f32 %v44, %v53
  %v68 = vsub.f32 %v45, %v53
  %v69 = vsub.f32 %v46, %v53
  %v70 = vsub.f32 %v47, %v53
  %v72 = vlaneseq
  %v73 = vshrl.u32 %v72, 7
  %v74 = vsub.s32 0, %v73
  %v75 = vrot.slane %v31, %v74
  %v77 = vmul.f32 %v55, %v75
  %v78 = vmul.f32 %v56, %v75
  %v79 = vmul.f32 %v57, %v75
  %v80 = vmul.f32 %v58, %v75
  %v81 = vmul.f32 %v59, %v75
  %v82 = vmul.f32 %v60, %v75
  %v83 = vmul.f32 %v61, %v75
  %v84 = vmul.f32 %v62, %v75
  %v85 = vmul.f32 %v63, %v75
  %v86 = vmul.f32 %v64, %v75
  %v87 = vmul.f32 %v65, %v75
  %v88 = vmul.f32 %v66, %v75
  %v89 = vmul.f32 %v67, %v75
  %v90 = vmul.f32 %v68, %v75
  %v91 = vmul.f32 %v69, %v75
  %v92 = vmul.f32 %v70, %v75
  %v93 = vld [vmem:[%s3] sm:$0x1]
  %v95 = vlaneseq
  %v96 = vshrl.u32 %v95, 7
  %v97 = vsub.s32 0, %v96
  %v98 = vrot.slane %v93, %v97
  %v100 = vmul.f32 %v77, %v98
  %v101 = vmul.f32 %v78, %v98
  %v102 = vmul.f32 %v79, %v98
  %v103 = vmul.f32 %v80, %v98
  %v104 = vmul.f32 %v81, %v98
  %v105 = vmul.f32 %v82, %v98
  %v106 = vmul.f32 %v83, %v98
  %v107 = vmul.f32 %v84, %v98
  %v108 = vmul.f32 %v85, %v98
  %v109 = vmul.f32 %v86, %v98
  %v110 = vmul.f32 %v87, %v98
  %v111 = vmul.f32 %v88, %v98
  %v112 = vmul.f32 %v89, %v98
  %v113 = vmul.f32 %v90, %v98
  %v114 = vmul.f32 %v91, %v98
  %v115 = vmul.f32 %v92, %v98
  %v116 = vld [vmem:[%s4] sm:$0x1]
  %v118 = vlaneseq
  %v119 = vshrl.u32 %v118, 7
  %v120 = vsub.s32 0, %v119
  %v121 = vrot.slane %v116, %v120
  %v123 = vadd.f32 %v100, %v121
  %v124 = vadd.f32 %v101, %v121
  %v125 = vadd.f32 %v102, %v121
  %v126 = vadd.f32 %v103, %v121
  %v127 = vadd.f32 %v104, %v121
  %v128 = vadd.f32 %v105, %v121
  %v129 = vadd.f32 %v106, %v121
  %v130 = vadd.f32 %v107, %v121
  %v131 = vadd.f32 %v108, %v121
  %v132 = vadd.f32 %v109, %v121
  %v133 = vadd.f32 %v110, %v121
  %v134 = vadd.f32 %v111, %v121
  %v135 = vadd.f32 %v112, %v121
  %v136 = vadd.f32 %v113, %v121
  %v137 = vadd.f32 %v114, %v121
  %v138 = vadd.f32 %v115, %v121
  %v139 = vmax.f32 %v123, 0.0
  %v140 = vmax.f32 %v124, 0.0
  %v141 = vmax.f32 %v125, 0.0
  %v142 = vmax.f32 %v126, 0.0
  %v143 = vmax.f32 %v127, 0.0
  %v144 = vmax.f32 %v128, 0.0
  %v145 = vmax.f32 %v129, 0.0
  %v146 = vmax.f32 %v130, 0.0
  %v147 = vmax.f32 %v131, 0.0
  %v148 = vmax.f32 %v132, 0.0
  %v149 = vmax.f32 %v133, 0.0
  %v150 = vmax.f32 %v134, 0.0
  %v151 = vmax.f32 %v135, 0.0
  %v152 = vmax.f32 %v136, 0.0
  %v153 = vmax.f32 %v137, 0.0
  %v154 = vmax.f32 %v138, 0.0
  %v155 = vld [vmem:[%s5] sm:$0xff]
  %vm156 = vcmask 64512
  %v158 = vsel %vm156, %v139, 0
  %v161 = vsel %vm156, %v140, 0
  %v164 = vsel %vm156, %v141, 0
  %v167 = vsel %vm156, %v142, 0
  %v170 = vsel %vm156, %v143, 0
  %v173 = vsel %vm156, %v144, 0
  %v176 = vsel %vm156, %v145, 0
  %v179 = vsel %vm156, %v146, 0
  %v182 = vsel %vm156, %v147, 0
  %v185 = vsel %vm156, %v148, 0
  %v188 = vsel %vm156, %v149, 0
  %v191 = vsel %vm156, %v150, 0
  %v194 = vsel %vm156, %v151, 0
  %v197 = vsel %vm156, %v152, 0
  %v200 = vsel %vm156, %v153, 0
  %v203 = vsel %vm156, %v154, 0
  %205 = vmatprep.subr.mxu0 0.0
  %206 = vmatpush1.msra.mxu0 0.0
  %207 = vmatprep.subr.mxu0 0.0
  %208 = vmatpush1.msra.mxu0 0.0
  %209 = vmatprep.subr.mxu0 0.0
  %210 = vmatpush1.msra.mxu0 0.0
  %211 = vmatprep.subr.mxu0 0.0
  %212 = vmatpush1.msra.mxu0 0.0
  %213 = vmatprep.subr.mxu0 0.0
  %214 = vmatpush1.msra.mxu0 0.0
  %215 = vmatprep.subr.mxu0 0.0
  %216 = vmatpush1.msra.mxu0 0.0
  %217 = vmatprep.subr.mxu0 0.0
  %218 = vmatpush1.msra.mxu0 0.0
  %219 = vmatprep.subr.mxu0 0.0
  %220 = vmatpush1.msra.mxu0 0.0
  %221 = vmatprep.subr.mxu0 0.0
  %222 = vmatpush1.msra.mxu0 0.0
  %223 = vmatprep.subr.mxu0 0.0
  %224 = vmatpush1.msra.mxu0 0.0
  %225 = vmatprep.subr.mxu0 0.0
  %226 = vmatpush1.msra.mxu0 0.0
  %227 = vmatprep.subr.mxu0 0.0
  %228 = vmatpush1.msra.mxu0 0.0
  %229 = vmatprep.subr.mxu0 0.0
  %230 = vmatpush1.msra.mxu0 0.0
  %231 = vmatprep.subr.mxu0 0.0
  %232 = vmatpush1.msra.mxu0 0.0
  %233 = vmatprep.subr.mxu0 0.0
  %234 = vmatpush1.msra.mxu0 0.0
  %235 = vmatprep.subr.mxu0 0.0
  %236 = vmatpush1.msra.mxu0 %v155
  %237 = vmatprep.subr.mxu0 0.0
  %238 = vmatpush2.msra.mxu0 0.0
  %239 = vmatprep.subr.mxu0 0.0
  %240 = vmatpush2.msra.mxu0 0.0
  %241 = vmatprep.subr.mxu0 0.0
  %242 = vmatpush2.msra.mxu0 0.0
  %243 = vmatprep.subr.mxu0 0.0
  %244 = vmatpush2.msra.mxu0 0.0
  %245 = vmatprep.subr.mxu0 0.0
  %246 = vmatpush2.msra.mxu0 0.0
  %247 = vmatprep.subr.mxu0 0.0
  %248 = vmatpush2.msra.mxu0 0.0
  %249 = vmatprep.subr.mxu0 0.0
  %250 = vmatpush2.msra.mxu0 0.0
  %251 = vmatprep.subr.mxu0 0.0
  %252 = vmatpush2.msra.mxu0 0.0
  %253 = vmatprep.subr.mxu0 0.0
  %254 = vmatpush2.msra.mxu0 0.0
  %255 = vmatprep.subr.mxu0 0.0
  %256 = vmatpush2.msra.mxu0 0.0
  %257 = vmatprep.subr.mxu0 0.0
  %258 = vmatpush2.msra.mxu0 0.0
  %259 = vmatprep.subr.mxu0 0.0
  %260 = vmatpush2.msra.mxu0 0.0
  %261 = vmatprep.subr.mxu0 0.0
  %262 = vmatpush2.msra.mxu0 0.0
  %263 = vmatprep.subr.mxu0 0.0
  %264 = vmatpush2.msra.mxu0 0.0
  %265 = vmatprep.subr.mxu0 0.0
  %266 = vmatpush2.msra.mxu0 0.0
  %267 = vmatprep.subr.mxu0 0.0
  %268 = vmatpush2.msra.mxu0 0.0
  %269 = vmatprep.mubr.f32.mxu0 0.0
  %270 = vmatmul.mubr.f32.gmra.mxu0 %v158
  %v271 = vpop.f32.mrf.mxu0
  %v272 = vadd.f32 0.0, %v271
  %v273 = vpop.f32.mrf.mxu0
  %274 = vmatprep.mubr.f32.mxu0 0.0
  %275 = vmatmul.mubr.f32.gmra.mxu0 %v161
  %v276 = vpop.f32.mrf.mxu0
  %v277 = vadd.f32 0.0, %v276
  %v278 = vpop.f32.mrf.mxu0
  %279 = vmatprep.mubr.f32.mxu0 0.0
  %280 = vmatmul.mubr.f32.gmra.mxu0 %v164
  %v281 = vpop.f32.mrf.mxu0
  %v282 = vadd.f32 0.0, %v281
  %v283 = vpop.f32.mrf.mxu0
  %284 = vmatprep.mubr.f32.mxu0 0.0
  %285 = vmatmul.mubr.f32.gmra.mxu0 %v167
  %v286 = vpop.f32.mrf.mxu0
  %v287 = vadd.f32 0.0, %v286
  %v288 = vpop.f32.mrf.mxu0
  %289 = vmatprep.mubr.f32.mxu0 0.0
  %290 = vmatmul.mubr.f32.gmra.mxu0 %v170
  %v291 = vpop.f32.mrf.mxu0
  %v292 = vadd.f32 0.0, %v291
  %v293 = vpop.f32.mrf.mxu0
  %294 = vmatprep.mubr.f32.mxu0 0.0
  %295 = vmatmul.mubr.f32.gmra.mxu0 %v173
  %v296 = vpop.f32.mrf.mxu0
  %v297 = vadd.f32 0.0, %v296
  %v298 = vpop.f32.mrf.mxu0
  %299 = vmatprep.mubr.f32.mxu0 0.0
  %300 = vmatmul.mubr.f32.gmra.mxu0 %v176
  %v301 = vpop.f32.mrf.mxu0
  %v302 = vadd.f32 0.0, %v301
  %v303 = vpop.f32.mrf.mxu0
  %304 = vmatprep.mubr.f32.mxu0 0.0
  %305 = vmatmul.mubr.f32.gmra.mxu0 %v179
  %v306 = vpop.f32.mrf.mxu0
  %v307 = vadd.f32 0.0, %v306
  %v308 = vpop.f32.mrf.mxu0
  %309 = vmatprep.mubr.f32.mxu0 0.0
  %310 = vmatmul.mubr.f32.gmra.mxu0 %v182
  %v311 = vpop.f32.mrf.mxu0
  %v312 = vadd.f32 0.0, %v311
  %v313 = vpop.f32.mrf.mxu0
  %314 = vmatprep.mubr.f32.mxu0 0.0
  %315 = vmatmul.mubr.f32.gmra.mxu0 %v185
  %v316 = vpop.f32.mrf.mxu0
  %v317 = vadd.f32 0.0, %v316
  %v318 = vpop.f32.mrf.mxu0
  %319 = vmatprep.mubr.f32.mxu0 0.0
  %320 = vmatmul.mubr.f32.gmra.mxu0 %v188
  %v321 = vpop.f32.mrf.mxu0
  %v322 = vadd.f32 0.0, %v321
  %v323 = vpop.f32.mrf.mxu0
  %324 = vmatprep.mubr.f32.mxu0 0.0
  %325 = vmatmul.mubr.f32.gmra.mxu0 %v191
  %v326 = vpop.f32.mrf.mxu0
  %v327 = vadd.f32 0.0, %v326
  %v328 = vpop.f32.mrf.mxu0
  %329 = vmatprep.mubr.f32.mxu0 0.0
  %330 = vmatmul.mubr.f32.gmra.mxu0 %v194
  %v331 = vpop.f32.mrf.mxu0
  %v332 = vadd.f32 0.0, %v331
  %v333 = vpop.f32.mrf.mxu0
  %334 = vmatprep.mubr.f32.mxu0 0.0
  %335 = vmatmul.mubr.f32.gmra.mxu0 %v197
  %v336 = vpop.f32.mrf.mxu0
  %v337 = vadd.f32 0.0, %v336
  %v338 = vpop.f32.mrf.mxu0
  %339 = vmatprep.mubr.f32.mxu0 0.0
  %340 = vmatmul.mubr.f32.gmra.mxu0 %v200
  %v341 = vpop.f32.mrf.mxu0
  %v342 = vadd.f32 0.0, %v341
  %v343 = vpop.f32.mrf.mxu0
  %344 = vmatprep.mubr.f32.mxu0 0.0
  %345 = vmatmul.mubr.f32.gmra.mxu0 %v203
  %v346 = vpop.f32.mrf.mxu0
  %v347 = vadd.f32 0.0, %v346
  %v348 = vpop.f32.mrf.mxu0
  %349 = vdwg.mxu0
  %v350 = vld [vmem:[%s6] sm:$0x1]
  %v352 = vlaneseq
  %v353 = vshrl.u32 %v352, 7
  %v354 = vsub.s32 0, %v353
  %v355 = vrot.slane %v350, %v354
  %v357 = vadd.f32 %v272, %v355
  %v358 = vadd.f32 %v277, %v355
  %v359 = vadd.f32 %v282, %v355
  %v360 = vadd.f32 %v287, %v355
  %v361 = vadd.f32 %v292, %v355
  %v362 = vadd.f32 %v297, %v355
  %v363 = vadd.f32 %v302, %v355
  %v364 = vadd.f32 %v307, %v355
  %v365 = vadd.f32 %v312, %v355
  %v366 = vadd.f32 %v317, %v355
  %v367 = vadd.f32 %v322, %v355
  %v368 = vadd.f32 %v327, %v355
  %v369 = vadd.f32 %v332, %v355
  %v370 = vadd.f32 %v337, %v355
  %v371 = vadd.f32 %v342, %v355
  %v372 = vadd.f32 %v347, %v355
  %vm373 = vcmask 261120
  %374 = vst.msk [vmem:[%s7] sm:$0xff] %vm373, %v357
  %375 = vst.msk [vmem:[%s7 + $0x8] sm:$0xff] %vm373, %v358
  %376 = vst.msk [vmem:[%s7 + $0x10] sm:$0xff] %vm373, %v359
  %377 = vst.msk [vmem:[%s7 + $0x18] sm:$0xff] %vm373, %v360
  %378 = vst.msk [vmem:[%s7 + $0x20] sm:$0xff] %vm373, %v361
  %379 = vst.msk [vmem:[%s7 + $0x28] sm:$0xff] %vm373, %v362
  %380 = vst.msk [vmem:[%s7 + $0x30] sm:$0xff] %vm373, %v363
  %381 = vst.msk [vmem:[%s7 + $0x38] sm:$0xff] %vm373, %v364
  %382 = vst.msk [vmem:[%s7 + $0x40] sm:$0xff] %vm373, %v365
  %383 = vst.msk [vmem:[%s7 + $0x48] sm:$0xff] %vm373, %v366
  %384 = vst.msk [vmem:[%s7 + $0x50] sm:$0xff] %vm373, %v367
  %385 = vst.msk [vmem:[%s7 + $0x58] sm:$0xff] %vm373, %v368
  %386 = vst.msk [vmem:[%s7 + $0x60] sm:$0xff] %vm373, %v369
  %387 = vst.msk [vmem:[%s7 + $0x68] sm:$0xff] %vm373, %v370
  %388 = vst.msk [vmem:[%s7 + $0x70] sm:$0xff] %vm373, %v371
  %389 = vst.msk [vmem:[%s7 + $0x78] sm:$0xff] %vm373, %v372
  %390 = vst.msk [vmem:[%s8] sm:$0xff] %vm373, 0.0
  %391 = vst.msk [vmem:[%s9] sm:$0xff] %vm373, 0.0
  %v392 = vsel %vm373, %v272, 0.0
  %v393 = vsel %vm373, %v277, 0.0
  %v394 = vadd.f32 %v392, %v393
  %v395 = vsel %vm373, %v282, 0.0
  %v396 = vadd.f32 %v394, %v395
  %v397 = vsel %vm373, %v287, 0.0
  %v398 = vadd.f32 %v396, %v397
  %v399 = vsel %vm373, %v292, 0.0
  %v400 = vadd.f32 %v398, %v399
  %v401 = vsel %vm373, %v297, 0.0
  %v402 = vadd.f32 %v400, %v401
  %v403 = vsel %vm373, %v302, 0.0
  %v404 = vadd.f32 %v402, %v403
  %v405 = vsel %vm373, %v307, 0.0
  %v406 = vadd.f32 %v404, %v405
  %v407 = vsel %vm373, %v312, 0.0
  %v408 = vadd.f32 %v406, %v407
  %v409 = vsel %vm373, %v317, 0.0
  %v410 = vadd.f32 %v408, %v409
  %v411 = vsel %vm373, %v322, 0.0
  %v412 = vadd.f32 %v410, %v411
  %v413 = vsel %vm373, %v327, 0.0
  %v414 = vadd.f32 %v412, %v413
  %v415 = vsel %vm373, %v332, 0.0
  %v416 = vadd.f32 %v414, %v415
  %v417 = vsel %vm373, %v337, 0.0
  %v418 = vadd.f32 %v416, %v417
  %v419 = vsel %vm373, %v342, 0.0
  %v420 = vadd.f32 %v418, %v419
  %v421 = vsel %vm373, %v347, 0.0
  %v422 = vadd.f32 %v420, %v421
  %v423 = vrot.slane %v422, 4
  %v424 = vadd.f32 %v422, %v423
  %v425 = vrot.slane %v424, 2
  %v426 = vadd.f32 %v424, %v425
  %v427 = vrot.slane %v426, 1
  %v428 = vadd.f32 %v426, %v427
  %vm429 = vcmask 253952
  %430 = vst.msk [vmem:[%s8] sm:$0x1] %vm429, %v428
  %v431 = vmul.f32 %v272, %v272
  %v432 = vmul.f32 %v277, %v277
  %v433 = vmul.f32 %v282, %v282
  %v434 = vmul.f32 %v287, %v287
  %v435 = vmul.f32 %v292, %v292
  %v436 = vmul.f32 %v297, %v297
  %v437 = vmul.f32 %v302, %v302
  %v438 = vmul.f32 %v307, %v307
  %v439 = vmul.f32 %v312, %v312
  %v440 = vmul.f32 %v317, %v317
  %v441 = vmul.f32 %v322, %v322
  %v442 = vmul.f32 %v327, %v327
  %v443 = vmul.f32 %v332, %v332
  %v444 = vmul.f32 %v337, %v337
  %v445 = vmul.f32 %v342, %v342
  %v446 = vmul.f32 %v347, %v347
  %v447 = vsel %vm373, %v431, 0.0
  %v448 = vsel %vm373, %v432, 0.0
  %v449 = vadd.f32 %v447, %v448
  %v450 = vsel %vm373, %v433, 0.0
  %v451 = vadd.f32 %v449, %v450
  %v452 = vsel %vm373, %v434, 0.0
  %v453 = vadd.f32 %v451, %v452
  %v454 = vsel %vm373, %v435, 0.0
  %v455 = vadd.f32 %v453, %v454
  %v456 = vsel %vm373, %v436, 0.0
  %v457 = vadd.f32 %v455, %v456
  %v458 = vsel %vm373, %v437, 0.0
  %v459 = vadd.f32 %v457, %v458
  %v460 = vsel %vm373, %v438, 0.0
  %v461 = vadd.f32 %v459, %v460
  %v462 = vsel %vm373, %v439, 0.0
  %v463 = vadd.f32 %v461, %v462
  %v464 = vsel %vm373, %v440, 0.0
  %v465 = vadd.f32 %v463, %v464
  %v466 = vsel %vm373, %v441, 0.0
  %v467 = vadd.f32 %v465, %v466
  %v468 = vsel %vm373, %v442, 0.0
  %v469 = vadd.f32 %v467, %v468
  %v470 = vsel %vm373, %v443, 0.0
  %v471 = vadd.f32 %v469, %v470
  %v472 = vsel %vm373, %v444, 0.0
  %v473 = vadd.f32 %v471, %v472
  %v474 = vsel %vm373, %v445, 0.0
  %v475 = vadd.f32 %v473, %v474
  %v476 = vsel %vm373, %v446, 0.0
  %v477 = vadd.f32 %v475, %v476
  %v478 = vrot.slane %v477, 4
  %v479 = vadd.f32 %v477, %v478
  %v480 = vrot.slane %v479, 2
  %v481 = vadd.f32 %v479, %v480
  %v482 = vrot.slane %v481, 1
  %v483 = vadd.f32 %v481, %v482
  %484 = vst.msk [vmem:[%s9] sm:$0x1] %vm429, %v483
  // Predicated region
  $region30: #{bottleneck_forward.6} parent=0 // pred_check
    _
  $region31: #{bottleneck_forward.6} parent=0 // pred_check_branch
    %486 = sbr.rel (0) target = $region33
  $region32: #{bottleneck_forward.6} parent=0 // pred_region
    _
  $region33: #{bottleneck_forward.6} parent=0 // pred_fallthru
    _
  // Predicated region
  $region34: #{bottleneck_forward.6} parent=0 // pred_check
    _
  $region35: #{bottleneck_forward.6} parent=0 // pred_check_branch
    %488 = sbr.rel (0) target = $region37
  $region36: #{bottleneck_forward.6} parent=0 // pred_region
    _
  $region37: #{bottleneck_forward.6} parent=0 // pred_fallthru
    _
  // Predicated region
  $region38: #{bottleneck_forward.6} parent=0 // pred_check
    _
  $region39: #{bottleneck_forward.6} parent=0 // pred_check_branch
    %490 = sbr.rel (0) target = $region41
  $region40: #{bottleneck_forward.6} parent=0 // pred_region
    _
  $region41: #{bottleneck_forward.6} parent=0 // pred_fallthru
    _
  // Predicated region
  $region42: #{bottleneck_forward.6} parent=0 // pred_check
    _
  $region43: #{bottleneck_forward.6} parent=0 // pred_check_branch
    %492 = sbr.rel (0) target = $region45
  $region44: #{bottleneck_forward.6} parent=0 // pred_region
    _
  $region45: #{bottleneck_forward.6} parent=0 // pred_fallthru
    _
  // Predicated region
  $region46: #{bottleneck_forward.6} parent=0 // pred_check
    _
  $region47: #{bottleneck_forward.6} parent=0 // pred_check_branch
    %494 = sbr.rel (0) target = $region49
  $region48: #{bottleneck_forward.6} parent=0 // pred_region
    _
  $region49: #{bottleneck_forward.6} parent=0 // pred_fallthru
    _
  // Predicated region
  $region50: #{bottleneck_forward.6} parent=0 // pred_check
    _
  $region51: #{bottleneck_forward.6} parent=0 // pred_check_branch
    %496 = sbr.rel (0) target = $region53
  $region52: #{bottleneck_forward.6} parent=0 // pred_region
    _
  $region53: #{bottleneck_forward.6} parent=0 // pred_fallthru
    _

// kernel: bottleneck_forward.5
$region0: #{bottleneck_forward.5}
  #allocation0 [shape = 'u32[]', space=smem, size = 0x4, offset = 0x4, fixed_abs, tag = 'smem constant byte address 0x4 - core index']
  #allocation1 [shape = 'u32[144,128]{1,0:T(1,128)}', space=vmem, size = 0x12000, scoped, tag = 'internal scratch']
  #allocation2 [shape = 'f32[10,17,8]{2,1,0:T(8,128)}', space=vmem, size = 0x1e000, scoped, tag = 'scratch operand']
  %s0 = inlined_call_operand.vmem [shape: f32[2,8,8,8], index: 0, kind: input, shape index: {}]
  %s1 = inlined_call_operand.vmem [shape: f32[1,8], index: 1, kind: input, shape index: {}]
  %s2 = inlined_call_operand.vmem [shape: f32[1,8], index: 2, kind: input, shape index: {}]
  %s3 = inlined_call_operand.vmem [shape: f32[1,8], index: 3, kind: input, shape index: {}]
  %s4 = inlined_call_operand.vmem [shape: f32[1,8], index: 4, kind: input, shape index: {}]
  %s5 = inlined_call_operand.vmem [shape: f32[9,8,8], index: 5, kind: input, shape index: {}]
  %s6 = inlined_call_operand.vmem [shape: f32[1,8], index: 6, kind: input, shape index: {}]
  %s7 = inlined_call_operand.vmem [shape: f32[2,8,8,8], index: 7, kind: output, shape index: {0}]
  %s8 = inlined_call_operand.vmem [shape: f32[16,8], index: 8, kind: output, shape index: {1}]
  %s9 = inlined_call_operand.vmem [shape: f32[16,8], index: 9, kind: output, shape index: {2}]
  %10 = xla_tuple %s7, %s8, %s9
  %s11 = sld [smem:[#allocation0]]
  $region77: #{bottleneck_forward.5} parent=0
    _
  %s13 = ssub.s32 1, %s11
  %s14 = scalar_select 0, %s13, %s11
  loop: start=0, step=1, limit=4
  $region2: #{bottleneck_forward.5} parent=0 // loop_pre_header
    _
  $region3: #{bottleneck_forward.5} parent=0 // loop_header
    %s16 = sphi 0, %s20
    %p17 = scmp.ge.s32.totalorder %s16, 4
    %s26 = sphi 0, %s28
    %s29 = sphi 0, %s26
    %s30 = sphi 0, %s29
    %s46 = sphi 0, %s30
    %s50 = sphi 0, %s50
    %s52 = sphi 0, %s50
    %s53 = sphi 0, %s52
    %s67 = sphi 0, %s53
    %s71 = sphi 0, %s71
    %s73 = sphi 0, %s71
    %s74 = sphi 0, %s73
    %s88 = sphi 0, %s74
    %s92 = sphi 0, %s92
    %s94 = sphi 0, %s92
    %s95 = sphi 0, %s94
    %s109 = sphi 0, %s95
    %s113 = sphi 0, %s113
    %s115 = sphi 0, %s113
    %s116 = sphi 0, %s115
    %s130 = sphi 0, %s116
    %s134 = sphi 0, %s134
    %s136 = sphi 0, %s134
    %s137 = sphi 0, %s136
    %s151 = sphi 0, %s137
    %s155 = sphi 0, %s155
    %s157 = sphi 0, %s155
    %s158 = sphi 0, %s157
    %s172 = sphi 0, %s158
    %s178 = sphi 0, %s180
    %s181 = sphi 0, %s178
    %s182 = sphi 0, %s181
    %s198 = sphi 0, %s182
    %s204 = sphi 0, %s206
    %s207 = sphi 0, %s204
    %s208 = sphi 0, %s207
    %s224 = sphi 0, %s208
    %s230 = sphi 0, %s232
    %s233 = sphi 0, %s230
    %s234 = sphi 0, %s233
    %s250 = sphi 0, %s234
  $region4: #{bottleneck_forward.5} parent=0 // loop_header_branch
    %19 = sbr.rel (%p17) target = $region8
  $region5: #{bottleneck_forward.5} parent=0 // loop_body
    %s21 = ssub.s32 %s16, 1
    %s22 = ssub.s32 %s16, 2
    %s23 = sadd.s32 %s16, 1
    %s24 = ssub.s32 %s16, %s23
    %p25 = scmp.eq.s32.totalorder %s24, 0
    %s27 = sadd.s32 %s26, 1
    %s28 = scalar_select %p25, %s26, %s27
    %p31 = pneg %p25
    %p32 = scmp.eq.s32.totalorder %s16, 1
    %p33 = por %p31, %p32
    %p34 = scmp.ne.s32.totalorder %s26, %s29
    %p35 = scmp.eq.s32.totalorder %s16, 0
    %p36 = por %p34, %p35
    %p37 = scmp.ne.s32.totalorder %s26, %s29
    %p38 = scmp.eq.s32.totalorder %s21, 1
    %p39 = por %p37, %p38
    %p40 = scmp.ne.s32.totalorder %s29, %s30
    %p41 = scmp.eq.s32.totalorder %s21, 0
    %p42 = por %p40, %p41
    %p43 = scmp.ne.s32.totalorder %s29, %s30
    %p44 = scmp.eq.s32.totalorder %s22, 1
    %p45 = por %p43, %p44
    %p47 = scmp.ne.s32.totalorder %s30, %s46
    %p48 = scmp.eq.s32.totalorder %s22, 0
    %p49 = por %p47, %p48
    %s51 = sadd.s32 %s50, 1
    %p54 = scmp.eq.s32.totalorder %s16, 1
    %p55 = scmp.ne.s32.totalorder %s50, %s52
    %p56 = scmp.eq.s32.totalorder %s16, 0
    %p57 = por %p55, %p56
    %p58 = scmp.ne.s32.totalorder %s50, %s52
    %p59 = scmp.eq.s32.totalorder %s21, 1
    %p60 = por %p58, %p59
    %p61 = scmp.ne.s32.totalorder %s52, %s53
    %p62 = scmp.eq.s32.totalorder %s21, 0
    %p63 = por %p61, %p62
    %p64 = scmp.ne.s32.totalorder %s52, %s53
    %p65 = scmp.eq.s32.totalorder %s22, 1
    %p66 = por %p64, %p65
    %p68 = scmp.ne.s32.totalorder %s53, %s67
    %p69 = scmp.eq.s32.totalorder %s22, 0
    %p70 = por %p68, %p69
    %s72 = sadd.s32 %s71, 1
    %p75 = scmp.eq.s32.totalorder %s16, 1
    %p76 = scmp.ne.s32.totalorder %s71, %s73
    %p77 = scmp.eq.s32.totalorder %s16, 0
    %p78 = por %p76, %p77
    %p79 = scmp.ne.s32.totalorder %s71, %s73
    %p80 = scmp.eq.s32.totalorder %s21, 1
    %p81 = por %p79, %p80
    %p82 = scmp.ne.s32.totalorder %s73, %s74
    %p83 = scmp.eq.s32.totalorder %s21, 0
    %p84 = por %p82, %p83
    %p85 = scmp.ne.s32.totalorder %s73, %s74
    %p86 = scmp.eq.s32.totalorder %s22, 1
    %p87 = por %p85, %p86
    %p89 = scmp.ne.s32.totalorder %s74, %s88
    %p90 = scmp.eq.s32.totalorder %s22, 0
    %p91 = por %p89, %p90
    %s93 = sadd.s32 %s92, 1
    %p96 = scmp.eq.s32.totalorder %s16, 1
    %p97 = scmp.ne.s32.totalorder %s92, %s94
    %p98 = scmp.eq.s32.totalorder %s16, 0
    %p99 = por %p97, %p98
    %p100 = scmp.ne.s32.totalorder %s92, %s94
    %p101 = scmp.eq.s32.totalorder %s21, 1
    %p102 = por %p100, %p101
    %p103 = scmp.ne.s32.totalorder %s94, %s95
    %p104 = scmp.eq.s32.totalorder %s21, 0
    %p105 = por %p103, %p104
    %p106 = scmp.ne.s32.totalorder %s94, %s95
    %p107 = scmp.eq.s32.totalorder %s22, 1
    %p108 = por %p106, %p107
    %p110 = scmp.ne.s32.totalorder %s95, %s109
    %p111 = scmp.eq.s32.totalorder %s22, 0
    %p112 = por %p110, %p111
    %s114 = sadd.s32 %s113, 1
    %p117 = scmp.eq.s32.totalorder %s16, 1
    %p118 = scmp.ne.s32.totalorder %s113, %s115
    %p119 = scmp.eq.s32.totalorder %s16, 0
    %p120 = por %p118, %p119
    %p121 = scmp.ne.s32.totalorder %s113, %s115
    %p122 = scmp.eq.s32.totalorder %s21, 1
    %p123 = por %p121, %p122
    %p124 = scmp.ne.s32.totalorder %s115, %s116
    %p125 = scmp.eq.s32.totalorder %s21, 0
    %p126 = por %p124, %p125
    %p127 = scmp.ne.s32.totalorder %s115, %s116
    %p128 = scmp.eq.s32.totalorder %s22, 1
    %p129 = por %p127, %p128
    %p131 = scmp.ne.s32.totalorder %s116, %s130
    %p132 = scmp.eq.s32.totalorder %s22, 0
    %p133 = por %p131, %p132
    %s135 = sadd.s32 %s134, 1
    %p138 = scmp.eq.s32.totalorder %s16, 1
    %p139 = scmp.ne.s32.totalorder %s134, %s136
    %p140 = scmp.eq.s32.totalorder %s16, 0
    %p141 = por %p139, %p140
    %p142 = scmp.ne.s32.totalorder %s134, %s136
    %p143 = scmp.eq.s32.totalorder %s21, 1
    %p144 = por %p142, %p143
    %p145 = scmp.ne.s32.totalorder %s136, %s137
    %p146 = scmp.eq.s32.totalorder %s21, 0
    %p147 = por %p145, %p146
    %p148 = scmp.ne.s32.totalorder %s136, %s137
    %p149 = scmp.eq.s32.totalorder %s22, 1
    %p150 = por %p148, %p149
    %p152 = scmp.ne.s32.totalorder %s137, %s151
    %p153 = scmp.eq.s32.totalorder %s22, 0
    %p154 = por %p152, %p153
    %s156 = sadd.s32 %s155, 1
    %p159 = scmp.eq.s32.totalorder %s16, 1
    %p160 = scmp.ne.s32.totalorder %s155, %s157
    %p161 = scmp.eq.s32.totalorder %s16, 0
    %p162 = por %p160, %p161
    %p163 = scmp.ne.s32.totalorder %s155, %s157
    %p164 = scmp.eq.s32.totalorder %s21, 1
    %p165 = por %p163, %p164
    %p166 = scmp.ne.s32.totalorder %s157, %s158
    %p167 = scmp.eq.s32.totalorder %s21, 0
    %p168 = por %p166, %p167
    %p169 = scmp.ne.s32.totalorder %s157, %s158
    %p170 = scmp.eq.s32.totalorder %s22, 1
    %p171 = por %p169, %p170
    %p173 = scmp.ne.s32.totalorder %s158, %s172
    %p174 = scmp.eq.s32.totalorder %s22, 0
    %p175 = por %p173, %p174
    %s176 = ssub.s32 %s16, %s23
    %p177 = scmp.eq.s32.totalorder %s176, 0
    %s179 = sadd.s32 %s178, 1
    %s180 = scalar_select %p177, %s178, %s179
    %p183 = pneg %p177
    %p184 = scmp.eq.s32.totalorder %s16, 1
    %p185 = por %p183, %p184
    %p186 = scmp.ne.s32.totalorder %s178, %s181
    %p187 = scmp.eq.s32.totalorder %s16, 0
    %p188 = por %p186, %p187
    %p189 = scmp.ne.s32.totalorder %s178, %s181
    %p190 = scmp.eq.s32.totalorder %s21, 1
    %p191 = por %p189, %p190
    %p192 = scmp.ne.s32.totalorder %s181, %s182
    %p193 = scmp.eq.s32.totalorder %s21, 0
    %p194 = por %p192, %p193
    %p195 = scmp.ne.s32.totalorder %s181, %s182
    %p196 = scmp.eq.s32.totalorder %s22, 1
    %p197 = por %p195, %p196
    %p199 = scmp.ne.s32.totalorder %s182, %s198
    %p200 = scmp.eq.s32.totalorder %s22, 0
    %p201 = por %p199, %p200
    %s202 = ssub.s32 %s16, %s23
    %p203 = scmp.eq.s32.totalorder %s202, 0
    %s205 = sadd.s32 %s204, 1
    %s206 = scalar_select %p203, %s204, %s205
    %p209 = pneg %p203
    %p210 = scmp.eq.s32.totalorder %s16, 1
    %p211 = por %p209, %p210
    %p212 = scmp.ne.s32.totalorder %s204, %s207
    %p213 = scmp.eq.s32.totalorder %s16, 0
    %p214 = por %p212, %p213
    %p215 = scmp.ne.s32.totalorder %s204, %s207
    %p216 = scmp.eq.s32.totalorder %s21, 1
    %p217 = por %p215, %p216
    %p218 = scmp.ne.s32.totalorder %s207, %s208
    %p219 = scmp.eq.s32.totalorder %s21, 0
    %p220 = por %p218, %p219
    %p221 = scmp.ne.s32.totalorder %s207, %s208
    %p222 = scmp.eq.s32.totalorder %s22, 1
    %p223 = por %p221, %p222
    %p225 = scmp.ne.s32.totalorder %s208, %s224
    %p226 = scmp.eq.s32.totalorder %s22, 0
    %p227 = por %p225, %p226
    %s228 = ssub.s32 %s16, %s23
    %p229 = scmp.eq.s32.totalorder %s228, 0
    %s231 = sadd.s32 %s230, 1
    %s232 = scalar_select %p229, %s230, %s231
    %p235 = pneg %p229
    %p236 = scmp.eq.s32.totalorder %s16, 1
    %p237 = por %p235, %p236
    %p238 = scmp.ne.s32.totalorder %s230, %s233
    %p239 = scmp.eq.s32.totalorder %s16, 0
    %p240 = por %p238, %p239
    %p241 = scmp.ne.s32.totalorder %s230, %s233
    %p242 = scmp.eq.s32.totalorder %s21, 1
    %p243 = por %p241, %p242
    %p244 = scmp.ne.s32.totalorder %s233, %s234
    %p245 = scmp.eq.s32.totalorder %s21, 0
    %p246 = por %p244, %p245
    %p247 = scmp.ne.s32.totalorder %s233, %s234
    %p248 = scmp.eq.s32.totalorder %s22, 1
    %p249 = por %p247, %p248
    %p251 = scmp.ne.s32.totalorder %s234, %s250
    %p252 = scmp.eq.s32.totalorder %s22, 0
    %p253 = por %p251, %p252
    %p254 = scmp.le.s32.totalorder 1, %s16
    %p255 = scmp.lt.s32.totalorder %s16, 3
    %p256 = pnand %p254, %p255
    %p257 = pneg %p256
    // Predicated region
    $region9: #{bottleneck_forward.5} parent=5 // pred_check
      _
    $region10: #{bottleneck_forward.5} parent=5 // pred_check_branch
      %259 = sbr.rel (%p256) target = $region12
    $region11: #{bottleneck_forward.5} parent=5 // pred_region
      %s260 = ssub.s32 %s16, 1
      // Predicated region
      $region13: #{bottleneck_forward.5} parent=11 // pred_check
        %p261 = pneg %p63
      $region14: #{bottleneck_forward.5} parent=11 // pred_check_branch
        %263 = sbr.rel (%p261) target = $region16
      $region15: #{bottleneck_forward.5} parent=11 // pred_region
        _
      $region16: #{bottleneck_forward.5} parent=11 // pred_fallthru
        _
      // Predicated region
      $region17: #{bottleneck_forward.5} parent=11 // pred_check
        %p264 = pneg %p84
      $region18: #{bottleneck_forward.5} parent=11 // pred_check_branch
        %266 = sbr.rel (%p264) target = $region20
      $region19: #{bottleneck_forward.5} parent=11 // pred_region
        _
      $region20: #{bottleneck_forward.5} parent=11 // pred_fallthru
        _
      // Predicated region
      $region21: #{bottleneck_forward.5} parent=11 // pred_check
        %p267 = pneg %p105
      $region22: #{bottleneck_forward.5} parent=11 // pred_check_branch
        %269 = sbr.rel (%p267) target = $region24
      $region23: #{bottleneck_forward.5} parent=11 // pred_region
        _
      $region24: #{bottleneck_forward.5} parent=11 // pred_fallthru
        _
      // Predicated region
      $region25: #{bottleneck_forward.5} parent=11 // pred_check
        %p270 = pneg %p126
      $region26: #{bottleneck_forward.5} parent=11 // pred_check_branch
        %272 = sbr.rel (%p270) target = $region28
      $region27: #{bottleneck_forward.5} parent=11 // pred_region
        _
      $region28: #{bottleneck_forward.5} parent=11 // pred_fallthru
        _
      // Predicated region
      $region29: #{bottleneck_forward.5} parent=11 // pred_check
        %p273 = pneg %p147
      $region30: #{bottleneck_forward.5} parent=11 // pred_check_branch
        %275 = sbr.rel (%p273) target = $region32
      $region31: #{bottleneck_forward.5} parent=11 // pred_region
        _
      $region32: #{bottleneck_forward.5} parent=11 // pred_fallthru
        _
      // Predicated region
      $region33: #{bottleneck_forward.5} parent=11 // pred_check
        %p276 = pneg %p168
      $region34: #{bottleneck_forward.5} parent=11 // pred_check_branch
        %278 = sbr.rel (%p276) target = $region36
      $region35: #{bottleneck_forward.5} parent=11 // pred_region
        _
      $region36: #{bottleneck_forward.5} parent=11 // pred_fallthru
        _
    $region12: #{bottleneck_forward.5} parent=5 // pred_fallthru
      _
    %p279 = scmp.lt.s32.totalorder %s16, 2
    // Predicated region
    $region37: #{bottleneck_forward.5} parent=5 // pred_check
      %p280 = pneg %p279
    $region38: #{bottleneck_forward.5} parent=5 // pred_check_branch
      %282 = sbr.rel (%p280) target = $region40
    $region39: #{bottleneck_forward.5} parent=5 // pred_region
      // Predicated region
      $region41: #{bottleneck_forward.5} parent=39 // pred_check
        %p283 = pneg %p36
      $region42: #{bottleneck_forward.5} parent=39 // pred_check_branch
        %285 = sbr.rel (%p283) target = $region44
      $region43: #{bottleneck_forward.5} parent=39 // pred_region
        %p286 = scmp.lt.s32.totalorder %s16, 1
        %s287 = scalar_select %p286, %s16, 1
        %s288 = smul.addr %s287, 8
        %s289 = smul.addr %s288, 8
        %s290 = scalar_lea.vmem %s0, %s289
      $region44: #{bottleneck_forward.5} parent=39 // pred_fallthru
        _
    $region40: #{bottleneck_forward.5} parent=5 // pred_fallthru
      _
    %p291 = scmp.le.s32.totalorder 1, %s16
    %p292 = scmp.lt.s32.totalorder %s16, 3
    %p293 = pnand %p291, %p292
    %p294 = pneg %p293
    // Predicated region
    $region45: #{bottleneck_forward.5} parent=5 // pred_check
      _
    $region46: #{bottleneck_forward.5} parent=5 // pred_check_branch
      %296 = sbr.rel (%p293) target = $region48
    $region47: #{bottleneck_forward.5} parent=5 // pred_region
      %s297 = ssub.s32 %s16, 1
      %p298 = scmp.lt.s32.totalorder %s21, 1
      %s299 = scalar_select %p298, %s21, 1
      %s300 = smul.addr %s299, 8
      %s301 = smul.addr %s300, 8
      %s302 = scalar_lea.vmem %s0, %s301
      %p303 = pneg %p42
      %p304 = pneg %p39
      %p305 = pneg %p63
      %p306 = pneg %p60
      %p307 = pneg %p84
      %p308 = pneg %p81
      %p309 = pneg %p105
      %p310 = pneg %p102
      %p311 = pneg %p126
      %p312 = pneg %p123
      %p313 = pneg %p147
      %p314 = pneg %p144
      %p315 = pneg %p168
      %p316 = pneg %p165
      %p317 = pneg %p194
      %p318 = pneg %p191
      %p319 = scmp.lt.s32.totalorder %s21, 1
      %s320 = scalar_select %p319, %s21, 1
      %s321 = smul.addr %s320, 8
      %s322 = smul.addr %s321, 8
      %s323 = scalar_lea.vmem %s7, %s322
      %p324 = pneg %p220
      %p325 = pneg %p217
      %p326 = scmp.lt.s32.totalorder %s21, 1
      %s327 = scalar_select %p326, %s21, 1
      %s328 = smul.addr %s327, 8
      %s329 = scalar_lea.vmem %s8, %s328
      %p330 = pneg %p246
      %p331 = pneg %p243
      %p332 = scmp.lt.s32.totalorder %s21, 1
      %s333 = scalar_select %p332, %s21, 1
      %s334 = smul.addr %s333, 8
      %s335 = scalar_lea.vmem %s9, %s334
      %p336 = scmp.lt.s32.totalorder %s21, 1
      %s337 = scalar_select %p336, %s21, 1
      %s338 = smul.addr %s337, 8
      %s339 = smul.addr %s338, 8
      %s340 = scalar_lea.vmem %s0, %s339
      %p341 = scmp.lt.s32.totalorder %s21, 1
      %s342 = scalar_select %p341, %s21, 1
      %s343 = smul.addr %s342, 8
      %s344 = smul.addr %s343, 8
      %s345 = scalar_lea.vmem %s7, %s344
      %p346 = scmp.lt.s32.totalorder %s21, 1
      %s347 = scalar_select %p346, %s21, 1
      %s348 = smul.addr %s347, 8
      %s349 = scalar_lea.vmem %s8, %s348
      %p350 = scmp.lt.s32.totalorder %s21, 1
      %s351 = scalar_select %p350, %s21, 1
      %s352 = smul.addr %s351, 8
      %s353 = scalar_lea.vmem %s9, %s352
      %vm354 = vcmask 64512
      %355 = vst.msk [vmem:[#allocation2] sm:$0xff] %vm354, 0.0
      %356 = vst.msk [vmem:[#allocation2 + $0x8] sm:$0xff] %vm354, 0.0
      %vm357 = vcmask 57344
      %358 = vst.msk [vmem:[#allocation2 + $0x10] sm:$0x1] %vm357, 0.0
      %s359 = scalar_lea.vmem [#allocation2], 216
      %360 = vst.msk [vmem:[%s359] sm:$0xff] %vm354, 0.0
      %361 = vst.msk [vmem:[%s359 + $0x8] sm:$0xff] %vm354, 0.0
      %362 = vst.msk [vmem:[%s359 + $0x10] sm:$0x1] %vm357, 0.0
      %363 = vst.msk [vmem:[#allocation2 + $0x7] sm:$0x1] %vm357, 0.0
      %364 = vst.msk [vmem:[#allocation2 + $0x1f] sm:$0x1] %vm357, 0.0
      %365 = vst.msk [vmem:[#allocation2 + $0x37] sm:$0x1] %vm357, 0.0
      %366 = vst.msk [vmem:[#allocation2 + $0x4f] sm:$0x1] %vm357, 0.0
      %367 = vst.msk [vmem:[#allocation2 + $0x67] sm:$0x1] %vm357, 0.0
      %368 = vst.msk [vmem:[#allocation2 + $0x7f] sm:$0x1] %vm357, 0.0
      %369 = vst.msk [vmem:[#allocation2 + $0x97] sm:$0x1] %vm357, 0.0
      %370 = vst.msk [vmem:[#allocation2 + $0xaf] sm:$0x1] %vm357, 0.0
      %371 = vst.msk [vmem:[#allocation2 + $0xc7] sm:$0x1] %vm357, 0.0
      %372 = vst.msk [vmem:[#allocation2 + $0xdf] sm:$0x1] %vm357, 0.0
      %373 = vst.msk [vmem:[#allocation2 + $0x10] sm:$0x1] %vm357, 0.0
      %374 = vst.msk [vmem:[#allocation2 + $0x28] sm:$0x1] %vm357, 0.0
      %375 = vst.msk [vmem:[#allocation2 + $0x40] sm:$0x1] %vm357, 0.0
      %376 = vst.msk [vmem:[#allocation2 + $0x58] sm:$0x1] %vm357, 0.0
      %377 = vst.msk [vmem:[#allocation2 + $0x70] sm:$0x1] %vm357, 0.0
      %378 = vst.msk [vmem:[#allocation2 + $0x88] sm:$0x1] %vm357, 0.0
      %379 = vst.msk [vmem:[#allocation2 + $0xa0] sm:$0x1] %vm357, 0.0
      %380 = vst.msk [vmem:[#allocation2 + $0xb8] sm:$0x1] %vm357, 0.0
      %381 = vst.msk [vmem:[#allocation2 + $0xd0] sm:$0x1] %vm357, 0.0
      %382 = vst.msk [vmem:[#allocation2 + $0xe8] sm:$0x1] %vm357, 0.0
      %v383 = vld [vmem:[%s2] sm:$0x1]
      %v384 = vadd.f32 %v383, 1e-05
      %v385 = vrsqrt.pop %v384
      %v386 = vld [vmem:[%s340] sm:$0xff]
      %v387 = vld [vmem:[%s340 + $0x8] sm:$0xff]
      %v388 = vld [vmem:[%s340 + $0x10] sm:$0xff]
      %v389 = vld [vmem:[%s340 + $0x18] sm:$0xff]
      %v390 = vld [vmem:[%s340 + $0x20] sm:$0xff]
      %v391 = vld [vmem:[%s340 + $0x28] sm:$0xff]
      %v392 = vld [vmem:[%s340 + $0x30] sm:$0xff]
      %v393 = vld [vmem:[%s340 + $0x38] sm:$0xff]
      %v394 = vld [vmem:[%s1] sm:$0x1]
      %v396 = vlaneseq
      %v397 = vshrl.u32 %v396, 7
      %v398 = vsub.s32 0, %v397
      %v399 = vrot.slane %v394, %v398
      %v401 = vsub.f32 %v386, %v399
      %v402 = vsub.f32 %v387, %v399
      %v403 = vsub.f32 %v388, %v399
      %v404 = vsub.f32 %v389, %v399
      %v405 = vsub.f32 %v390, %v399
      %v406 = vsub.f32 %v391, %v399
      %v407 = vsub.f32 %v392, %v399
      %v408 = vsub.f32 %v393, %v399
      %v410 = vlaneseq
      %v411 = vshrl.u32 %v410, 7
      %v412 = vsub.s32 0, %v411
      %v413 = vrot.slane %v385, %v412
      %v415 = vmul.f32 %v401, %v413
      %v416 = vmul.f32 %v402, %v413
      %v417 = vmul.f32 %v403, %v413
      %v418 = vmul.f32 %v404, %v413
      %v419 = vmul.f32 %v405, %v413
      %v420 = vmul.f32 %v406, %v413
      %v421 = vmul.f32 %v407, %v413
      %v422 = vmul.f32 %v408, %v413
      %v423 = vld [vmem:[%s3] sm:$0x1]
      %v425 = vlaneseq
      %v426 = vshrl.u32 %v425, 7
      %v427 = vsub.s32 0, %v426
      %v428 = vrot.slane %v423, %v427
      %v430 = vmul.f32 %v415, %v428
      %v431 = vmul.f32 %v416, %v428
      %v432 = vmul.f32 %v417, %v428
      %v433 = vmul.f32 %v418, %v428
      %v434 = vmul.f32 %v419, %v428
      %v435 = vmul.f32 %v420, %v428
      %v436 = vmul.f32 %v421, %v428
      %v437 = vmul.f32 %v422, %v428
      %v438 = vld [vmem:[%s4] sm:$0x1]
      %v440 = vlaneseq
      %v441 = vshrl.u32 %v440, 7
      %v442 = vsub.s32 0, %v441
      %v443 = vrot.slane %v438, %v442
      %v445 = vadd.f32 %v430, %v443
      %v446 = vadd.f32 %v431, %v443
      %v447 = vadd.f32 %v432, %v443
      %v448 = vadd.f32 %v433, %v443
      %v449 = vadd.f32 %v434, %v443
      %v450 = vadd.f32 %v435, %v443
      %v451 = vadd.f32 %v436, %v443
      %v452 = vadd.f32 %v437, %v443
      %v453 = vmax.f32 %v445, 0.0
      %v454 = vmax.f32 %v446, 0.0
      %v455 = vmax.f32 %v447, 0.0
      %v456 = vmax.f32 %v448, 0.0
      %v457 = vmax.f32 %v449, 0.0
      %v458 = vmax.f32 %v450, 0.0
      %v459 = vmax.f32 %v451, 0.0
      %v460 = vmax.f32 %v452, 0.0
      %s461 = scalar_lea.vmem [#allocation2], 24
      %462 = vst.msk [vmem:[%s461 + $0x8] sm:$0xff] %vm354, %v453
      %463 = vst.msk [vmem:[%s461 + $0x20] sm:$0xff] %vm354, %v454
      %464 = vst.msk [vmem:[%s461 + $0x38] sm:$0xff] %vm354, %v455
      %465 = vst.msk [vmem:[%s461 + $0x50] sm:$0xff] %vm354, %v456
      %466 = vst.msk [vmem:[%s461 + $0x68] sm:$0xff] %vm354, %v457
      %467 = vst.msk [vmem:[%s461 + $0x80] sm:$0xff] %vm354, %v458
      %468 = vst.msk [vmem:[%s461 + $0x98] sm:$0xff] %vm354, %v459
      %469 = vst.msk [vmem:[%s461 + $0xb0] sm:$0xff] %vm354, %v460
      %v470 = vld [vmem:[#allocation2] sm:$0xff]
      %v471 = vld [vmem:[#allocation2 + $0x8] sm:$0xff]
      %v472 = vld [vmem:[#allocation2 + $0x10] sm:$0x1]
      %v473 = vld [vmem:[#allocation2 + $0x18] sm:$0xff]
      %v474 = vld [vmem:[#allocation2 + $0x20] sm:$0xff]
      %v475 = vld [vmem:[#allocation2 + $0x28] sm:$0x1]
      %v476 = vld [vmem:[#allocation2 + $0x30] sm:$0xff]
      %v477 = vld [vmem:[#allocation2 + $0x38] sm:$0xff]
      %v478 = vld [vmem:[#allocation2 + $0x40] sm:$0x1]
      %v479 = vld [vmem:[#allocation2 + $0x48] sm:$0xff]
      %v480 = vld [vmem:[#allocation2 + $0x50] sm:$0xff]
      %v481 = vld [vmem:[#allocation2 + $0x58] sm:$0x1]
      %v482 = vld [vmem:[#allocation2 + $0x60] sm:$0xff]
      %v483 = vld [vmem:[#allocation2 + $0x68] sm:$0xff]
      %v484 = vld [vmem:[#allocation2 + $0x70] sm:$0x1]
      %v485 = vld [vmem:[#allocation2 + $0x78] sm:$0xff]
      %v486 = vld [vmem:[#allocation2 + $0x80] sm:$0xff]
      %v487 = vld [vmem:[#allocation2 + $0x88] sm:$0x1]
      %v488 = vld [vmem:[#allocation2 + $0x90] sm:$0xff]
      %v489 = vld [vmem:[#allocation2 + $0x98] sm:$0xff]
      %v490 = vld [vmem:[#allocation2 + $0xa0] sm:$0x1]
      %v491 = vld [vmem:[#allocation2 + $0xa8] sm:$0xff]
      %v492 = vld [vmem:[#allocation2 + $0xb0] sm:$0xff]
      %v493 = vld [vmem:[#allocation2 + $0xb8] sm:$0x1]
      %v494 = vld [vmem:[#allocation2 + $0xc0] sm:$0xff]
      %v495 = vld [vmem:[#allocation2 + $0xc8] sm:$0xff]
      %v496 = vld [vmem:[#allocation2 + $0xd0] sm:$0x1]
      %v497 = vld [vmem:[#allocation2 + $0xd8] sm:$0xff]
      %v498 = vld [vmem:[#allocation2 + $0xe0] sm:$0xff]
      %v499 = vld [vmem:[#allocation2 + $0xe8] sm:$0x1]
      %vm516 = vcmask 1040384
      %v517 = vrot.slane %v470, 7
      %v518 = vrot.slane %v471, 7
      %v519 = vsel %vm516, %v517, %v518
      %v520 = vrot.slane %v473, 7
      %v521 = vrot.slane %v474, 7
      %v522 = vsel %vm516, %v520, %v521
      %v523 = vrot.slane %v476, 7
      %v524 = vrot.slane %v477, 7
      %v525 = vsel %vm516, %v523, %v524
      %v526 = vrot.slane %v479, 7
      %v527 = vrot.slane %v480, 7
      %v528 = vsel %vm516, %v526, %v527
      %v529 = vrot.slane %v482, 7
      %v530 = vrot.slane %v483, 7
      %v531 = vsel %vm516, %v529, %v530
      %v532 = vrot.slane %v485, 7
      %v533 = vrot.slane %v486, 7
      %v534 = vsel %vm516, %v532, %v533
      %v535 = vrot.slane %v488, 7
      %v536 = vrot.slane %v489, 7
      %v537 = vsel %vm516, %v535, %v536
      %v538 = vrot.slane %v491, 7
      %v539 = vrot.slane %v492, 7
      %v540 = vsel %vm516, %v538, %v539
      %v541 = vld [vmem:[%s5] sm:$0xff]
      %s542 = scalar_lea.vmem %s5, 8
      %v543 = vld [vmem:[%s542] sm:$0xff]
      %v544 = vsel %vm354, %v471, 0
      %v546 = vsel %vm354, %v474, 0
      %v548 = vsel %vm354, %v477, 0
      %v550 = vsel %vm354, %v480, 0
      %v552 = vsel %vm354, %v483, 0
      %v554 = vsel %vm354, %v486, 0
      %v556 = vsel %vm354, %v489, 0
      %v558 = vsel %vm354, %v492, 0
      %560 = vmatprep.subr.mxu0 0.0
      %561 = vmatpush1.msra.mxu0 0.0
      %562 = vmatprep.subr.mxu0 0.0
      %563 = vmatpush1.msra.mxu0 0.0
      %564 = vmatprep.subr.mxu0 0.0
      %565 = vmatpush1.msra.mxu0 0.0
      %566 = vmatprep.subr.mxu0 0.0
      %567 = vmatpush1.msra.mxu0 0.0
      %568 = vmatprep.subr.mxu0 0.0
      %569 = vmatpush1.msra.mxu0 0.0
      %570 = vmatprep.subr.mxu0 0.0
      %571 = vmatpush1.msra.mxu0 0.0
      %572 = vmatprep.subr.mxu0 0.0
      %573 = vmatpush1.msra.mxu0 0.0
      %574 = vmatprep.subr.mxu0 0.0
      %575 = vmatpush1.msra.mxu0 0.0
      %576 = vmatprep.subr.mxu0 0.0
      %577 = vmatpush1.msra.mxu0 0.0
      %578 = vmatprep.subr.mxu0 0.0
      %579 = vmatpush1.msra.mxu0 0.0
      %580 = vmatprep.subr.mxu0 0.0
      %581 = vmatpush1.msra.mxu0 0.0
      %582 = vmatprep.subr.mxu0 0.0
      %583 = vmatpush1.msra.mxu0 0.0
      %584 = vmatprep.subr.mxu0 0.0
      %585 = vmatpush1.msra.mxu0 0.0
      %586 = vmatprep.subr.mxu0 0.0
      %587 = vmatpush1.msra.mxu0 0.0
      %588 = vmatprep.subr.mxu0 0.0
      %589 = vmatpush1.msra.mxu0 0.0
      %590 = vmatprep.subr.mxu0 0.0
      %591 = vmatpush1.msra.mxu0 %v543
      %592 = vmatprep.subr.mxu0 0.0
      %593 = vmatpush2.msra.mxu0 0.0
      %594 = vmatprep.subr.mxu0 0.0
      %595 = vmatpush2.msra.mxu0 0.0
      %596 = vmatprep.subr.mxu0 0.0
      %597 = vmatpush2.msra.mxu0 0.0
      %598 = vmatprep.subr.mxu0 0.0
      %599 = vmatpush2.msra.mxu0 0.0
      %600 = vmatprep.subr.mxu0 0.0
      %601 = vmatpush2.msra.mxu0 0.0
      %602 = vmatprep.subr.mxu0 0.0
      %603 = vmatpush2.msra.mxu0 0.0
      %604 = vmatprep.subr.mxu0 0.0
      %605 = vmatpush2.msra.mxu0 0.0
      %606 = vmatprep.subr.mxu0 0.0
      %607 = vmatpush2.msra.mxu0 0.0
      %608 = vmatprep.subr.mxu0 0.0
      %609 = vmatpush2.msra.mxu0 0.0
      %610 = vmatprep.subr.mxu0 0.0
      %611 = vmatpush2.msra.mxu0 0.0
      %612 = vmatprep.subr.mxu0 0.0
      %613 = vmatpush2.msra.mxu0 0.0
      %614 = vmatprep.subr.mxu0 0.0
      %615 = vmatpush2.msra.mxu0 0.0
      %616 = vmatprep.subr.mxu0 0.0
      %617 = vmatpush2.msra.mxu0 0.0
      %618 = vmatprep.subr.mxu0 0.0
      %619 = vmatpush2.msra.mxu0 0.0
      %620 = vmatprep.subr.mxu0 0.0
      %621 = vmatpush2.msra.mxu0 0.0
      %622 = vmatprep.subr.mxu0 0.0
      %623 = vmatpush2.msra.mxu0 0.0
      %624 = vmatprep.mubr.f32.mxu0 0.0
      %625 = vmatmul.mubr.f32.gmra.mxu0 %v544
      %v626 = vpop.f32.mrf.mxu0
      %v627 = vadd.f32 0.0, %v626
      %v628 = vpop.f32.mrf.mxu0
      %629 = vmatprep.mubr.f32.mxu0 0.0
      %630 = vmatmul.mubr.f32.gmra.mxu0 %v546
      %v631 = vpop.f32.mrf.mxu0
      %v632 = vadd.f32 0.0, %v631
      %v633 = vpop.f32.mrf.mxu0
      %634 = vmatprep.mubr.f32.mxu0 0.0
      %635 = vmatmul.mubr.f32.gmra.mxu0 %v548
      %v636 = vpop.f32.mrf.mxu0
      %v637 = vadd.f32 0.0, %v636
      %v638 = vpop.f32.mrf.mxu0
      %639 = vmatprep.mubr.f32.mxu0 0.0
      %640 = vmatmul.mubr.f32.gmra.mxu0 %v550
      %v641 = vpop.f32.mrf.mxu0
      %v642 = vadd.f32 0.0, %v641
      %v643 = vpop.f32.mrf.mxu0
      %644 = vmatprep.mubr.f32.mxu0 0.0
      %645 = vmatmul.mubr.f32.gmra.mxu0 %v552
      %v646 = vpop.f32.mrf.mxu0
      %v647 = vadd.f32 0.0, %v646
      %v648 = vpop.f32.mrf.mxu0
      %649 = vmatprep.mubr.f32.mxu0 0.0
      %650 = vmatmul.mubr.f32.gmra.mxu0 %v554
      %v651 = vpop.f32.mrf.mxu0
      %v652 = vadd.f32 0.0, %v651
      %v653 = vpop.f32.mrf.mxu0
      %654 = vmatprep.mubr.f32.mxu0 0.0
      %655 = vmatmul.mubr.f32.gmra.mxu0 %v556
      %v656 = vpop.f32.mrf.mxu0
      %v657 = vadd.f32 0.0, %v656
      %v658 = vpop.f32.mrf.mxu0
      %659 = vmatprep.mubr.f32.mxu0 0.0
      %660 = vmatmul.mubr.f32.gmra.mxu0 %v558
      %v661 = vpop.f32.mrf.mxu0
      %v662 = vadd.f32 0.0, %v661
      %v663 = vpop.f32.mrf.mxu0
      %664 = vdwg.mxu0
      %v665 = vsel %vm354, %v519, 0
      %v667 = vsel %vm354, %v522, 0
      %v669 = vsel %vm354, %v525, 0
      %v671 = vsel %vm354, %v528, 0
      %v673 = vsel %vm354, %v531, 0
      %v675 = vsel %vm354, %v534, 0
      %v677 = vsel %vm354, %v537, 0
      %v679 = vsel %vm354, %v540, 0
      %681 = vmatprep.subr.mxu0 0.0
      %682 = vmatpush1.msra.mxu0 0.0
      %683 = vmatprep.subr.mxu0 0.0
      %684 = vmatpush1.msra.mxu0 0.0
      %685 = vmatprep.subr.mxu0 0.0
      %686 = vmatpush1.msra.mxu0 0.0
      %687 = vmatprep.subr.mxu0 0.0
      %688 = vmatpush1.msra.mxu0 0.0
      %689 = vmatprep.subr.mxu0 0.0
      %690 = vmatpush1.msra.mxu0 0.0
      %691 = vmatprep.subr.mxu0 0.0
      %692 = vmatpush1.msra.mxu0 0.0
      %693 = vmatprep.subr.mxu0 0.0
      %694 = vmatpush1.msra.mxu0 0.0
      %695 = vmatprep.subr.mxu0 0.0
      %696 = vmatpush1.msra.mxu0 0.0
      %697 = vmatprep.subr.mxu0 0.0
      %698 = vmatpush1.msra.mxu0 0.0
      %699 = vmatprep.subr.mxu0 0.0
      %700 = vmatpush1.msra.mxu0 0.0
      %701 = vmatprep.subr.mxu0 0.0
      %702 = vmatpush1.msra.mxu0 0.0
      %703 = vmatprep.subr.mxu0 0.0
      %704 = vmatpush1.msra.mxu0 0.0
      %705 = vmatprep.subr.mxu0 0.0
      %706 = vmatpush1.msra.mxu0 0.0
      %707 = vmatprep.subr.mxu0 0.0
      %708 = vmatpush1.msra.mxu0 0.0
      %709 = vmatprep.subr.mxu0 0.0
      %710 = vmatpush1.msra.mxu0 0.0
      %711 = vmatprep.subr.mxu0 0.0
      %712 = vmatpush1.msra.mxu0 %v541
      %713 = vmatprep.subr.mxu0 0.0
      %714 = vmatpush2.msra.mxu0 0.0
      %715 = vmatprep.subr.mxu0 0.0
      %716 = vmatpush2.msra.mxu0 0.0
      %717 = vmatprep.subr.mxu0 0.0
      %718 = vmatpush2.msra.mxu0 0.0
      %719 = vmatprep.subr.mxu0 0.0
      %720 = vmatpush2.msra.mxu0 0.0
      %721 = vmatprep.subr.mxu0 0.0
      %722 = vmatpush2.msra.mxu0 0.0
      %723 = vmatprep.subr.mxu0 0.0
      %724 = vmatpush2.msra.mxu0 0.0
      %725 = vmatprep.subr.mxu0 0.0
      %726 = vmatpush2.msra.mxu0 0.0
      %727 = vmatprep.subr.mxu0 0.0
      %728 = vmatpush2.msra.mxu0 0.0
      %729 = vmatprep.subr.mxu0 0.0
      %730 = vmatpush2.msra.mxu0 0.0
      %731 = vmatprep.subr.mxu0 0.0
      %732 = vmatpush2.msra.mxu0 0.0
      %733 = vmatprep.subr.mxu0 0.0
      %734 = vmatpush2.msra.mxu0 0.0
      %735 = vmatprep.subr.mxu0 0.0
      %736 = vmatpush2.msra.mxu0 0.0
      %737 = vmatprep.subr.mxu0 0.0
      %738 = vmatpush2.msra.mxu0 0.0
      %739 = vmatprep.subr.mxu0 0.0
      %740 = vmatpush2.msra.mxu0 0.0
      %741 = vmatprep.subr.mxu0 0.0
      %742 = vmatpush2.msra.mxu0 0.0
      %743 = vmatprep.subr.mxu0 0.0
      %744 = vmatpush2.msra.mxu0 0.0
      %745 = vmatprep.mubr.f32.mxu0 0.0
      %746 = vmatmul.mubr.f32.gmra.mxu0 %v665
      %v747 = vpop.f32.mrf.mxu0
      %v748 = vadd.f32 %v627, %v747
      %v749 = vpop.f32.mrf.mxu0
      %750 = vmatprep.mubr.f32.mxu0 0.0
      %751 = vmatmul.mubr.f32.gmra.mxu0 %v667
      %v752 = vpop.f32.mrf.mxu0
      %v753 = vadd.f32 %v632, %v752
      %v754 = vpop.f32.mrf.mxu0
      %755 = vmatprep.mubr.f32.mxu0 0.0
      %756 = vmatmul.mubr.f32.gmra.mxu0 %v669
      %v757 = vpop.f32.mrf.mxu0
      %v758 = vadd.f32 %v637, %v757
      %v759 = vpop.f32.mrf.mxu0
      %760 = vmatprep.mubr.f32.mxu0 0.0
      %761 = vmatmul.mubr.f32.gmra.mxu0 %v671
      %v762 = vpop.f32.mrf.mxu0
      %v763 = vadd.f32 %v642, %v762
      %v764 = vpop.f32.mrf.mxu0
      %765 = vmatprep.mubr.f32.mxu0 0.0
      %766 = vmatmul.mubr.f32.gmra.mxu0 %v673
      %v767 = vpop.f32.mrf.mxu0
      %v768 = vadd.f32 %v647, %v767
      %v769 = vpop.f32.mrf.mxu0
      %770 = vmatprep.mubr.f32.mxu0 0.0
      %771 = vmatmul.mubr.f32.gmra.mxu0 %v675
      %v772 = vpop.f32.mrf.mxu0
      %v773 = vadd.f32 %v652, %v772
      %v774 = vpop.f32.mrf.mxu0
      %775 = vmatprep.mubr.f32.mxu0 0.0
      %776 = vmatmul.mubr.f32.gmra.mxu0 %v677
      %v777 = vpop.f32.mrf.mxu0
      %v778 = vadd.f32 %v657, %v777
      %v779 = vpop.f32.mrf.mxu0
      %780 = vmatprep.mubr.f32.mxu0 0.0
      %781 = vmatmul.mubr.f32.gmra.mxu0 %v679
      %v782 = vpop.f32.mrf.mxu0
      %v783 = vadd.f32 %v662, %v782
      %v784 = vpop.f32.mrf.mxu0
      %785 = vdwg.mxu0
      %vm794 = vcmask 1046528
      %v795 = vrot.slane %v471, 1
      %v796 = vrot.slane %v472, 1
      %v797 = vsel %vm794, %v795, %v796
      %v798 = vrot.slane %v474, 1
      %v799 = vrot.slane %v475, 1
      %v800 = vsel %vm794, %v798, %v799
      %v801 = vrot.slane %v477, 1
      %v802 = vrot.slane %v478, 1
      %v803 = vsel %vm794, %v801, %v802
      %v804 = vrot.slane %v480, 1
      %v805 = vrot.slane %v481, 1
      %v806 = vsel %vm794, %v804, %v805
      %v807 = vrot.slane %v483, 1
      %v808 = vrot.slane %v484, 1
      %v809 = vsel %vm794, %v807, %v808
      %v810 = vrot.slane %v486, 1
      %v811 = vrot.slane %v487, 1
      %v812 = vsel %vm794, %v810, %v811
      %v813 = vrot.slane %v489, 1
      %v814 = vrot.slane %v490, 1
      %v815 = vsel %vm794, %v813, %v814
      %v816 = vrot.slane %v492, 1
      %v817 = vrot.slane %v493, 1
      %v818 = vsel %vm794, %v816, %v817
      %s819 = scalar_lea.vmem %s5, 16
      %v820 = vld [vmem:[%s819] sm:$0xff]
      %v821 = vsel %vm354, %v797, 0
      %v823 = vsel %vm354, %v800, 0
      %v825 = vsel %vm354, %v803, 0
      %v827 = vsel %vm354, %v806, 0
      %v829 = vsel %vm354, %v809, 0
      %v831 = vsel %vm354, %v812, 0
      %v833 = vsel %vm354, %v815, 0
      %v835 = vsel %vm354, %v818, 0
      %837 = vmatprep.subr.mxu0 0.0
      %838 = vmatpush1.msra.mxu0 0.0
      %839 = vmatprep.subr.mxu0 0.0
      %840 = vmatpush1.msra.mxu0 0.0
      %841 = vmatprep.subr.mxu0 0.0
      %842 = vmatpush1.msra.mxu0 0.0
      %843 = vmatprep.subr.mxu0 0.0
      %844 = vmatpush1.msra.mxu0 0.0
      %845 = vmatprep.subr.mxu0 0.0
      %846 = vmatpush1.msra.mxu0 0.0
      %847 = vmatprep.subr.mxu0 0.0
      %848 = vmatpush1.msra.mxu0 0.0
      %849 = vmatprep.subr.mxu0 0.0
      %850 = vmatpush1.msra.mxu0 0.0
      %851 = vmatprep.subr.mxu0 0.0
      %852 = vmatpush1.msra.mxu0 0.0
      %853 = vmatprep.subr.mxu0 0.0
      %854 = vmatpush1.msra.mxu0 0.0
      %855 = vmatprep.subr.mxu0 0.0
      %856 = vmatpush1.msra.mxu0 0.0
      %857 = vmatprep.subr.mxu0 0.0
      %858 = vmatpush1.msra.mxu0 0.0
      %859 = vmatprep.subr.mxu0 0.0
      %860 = vmatpush1.msra.mxu0 0.0
      %861 = vmatprep.subr.mxu0 0.0
      %862 = vmatpush1.msra.mxu0 0.0
      %863 = vmatprep.subr.mxu0 0.0
      %864 = vmatpush1.msra.mxu0 0.0
      %865 = vmatprep.subr.mxu0 0.0
      %866 = vmatpush1.msra.mxu0 0.0
      %867 = vmatprep.subr.mxu0 0.0
      %868 = vmatpush1.msra.mxu0 %v820
      %869 = vmatprep.subr.mxu0 0.0
      %870 = vmatpush2.msra.mxu0 0.0
      %871 = vmatprep.subr.mxu0 0.0
      %872 = vmatpush2.msra.mxu0 0.0
      %873 = vmatprep.subr.mxu0 0.0
      %874 = vmatpush2.msra.mxu0 0.0
      %875 = vmatprep.subr.mxu0 0.0
      %876 = vmatpush2.msra.mxu0 0.0
      %877 = vmatprep.subr.mxu0 0.0
      %878 = vmatpush2.msra.mxu0 0.0
      %879 = vmatprep.subr.mxu0 0.0
      %880 = vmatpush2.msra.mxu0 0.0
      %881 = vmatprep.subr.mxu0 0.0
      %882 = vmatpush2.msra.mxu0 0.0
      %883 = vmatprep.subr.mxu0 0.0
      %884 = vmatpush2.msra.mxu0 0.0
      %885 = vmatprep.subr.mxu0 0.0
      %886 = vmatpush2.msra.mxu0 0.0
      %887 = vmatprep.subr.mxu0 0.0
      %888 = vmatpush2.msra.mxu0 0.0
      %889 = vmatprep.subr.mxu0 0.0
      %890 = vmatpush2.msra.mxu0 0.0
      %891 = vmatprep.subr.mxu0 0.0
      %892 = vmatpush2.msra.mxu0 0.0
      %893 = vmatprep.subr.mxu0 0.0
      %894 = vmatpush2.msra.mxu0 0.0
      %895 = vmatprep.subr.mxu0 0.0
      %896 = vmatpush2.msra.mxu0 0.0
      %897 = vmatprep.subr.mxu0 0.0
      %898 = vmatpush2.msra.mxu0 0.0
      %899 = vmatprep.subr.mxu0 0.0
      %900 = vmatpush2.msra.mxu0 0.0
      %901 = vmatprep.mubr.f32.mxu0 0.0
      %902 = vmatmul.mubr.f32.gmra.mxu0 %v821
      %v903 = vpop.f32.mrf.mxu0
      %v904 = vadd.f32 0.0, %v903
      %v905 = vpop.f32.mrf.mxu0
      %906 = vmatprep.mubr.f32.mxu0 0.0
      %907 = vmatmul.mubr.f32.gmra.mxu0 %v823
      %v908 = vpop.f32.mrf.mxu0
      %v909 = vadd.f32 0.0, %v908
      %v910 = vpop.f32.mrf.mxu0
      %911 = vmatprep.mubr.f32.mxu0 0.0
      %912 = vmatmul.mubr.f32.gmra.mxu0 %v825
      %v913 = vpop.f32.mrf.mxu0
      %v914 = vadd.f32 0.0, %v913
      %v915 = vpop.f32.mrf.mxu0
      %916 = vmatprep.mubr.f32.mxu0 0.0
      %917 = vmatmul.mubr.f32.gmra.mxu0 %v827
      %v918 = vpop.f32.mrf.mxu0
      %v919 = vadd.f32 0.0, %v918
      %v920 = vpop.f32.mrf.mxu0
      %921 = vmatprep.mubr.f32.mxu0 0.0
      %922 = vmatmul.mubr.f32.gmra.mxu0 %v829
      %v923 = vpop.f32.mrf.mxu0
      %v924 = vadd.f32 0.0, %v923
      %v925 = vpop.f32.mrf.mxu0
      %926 = vmatprep.mubr.f32.mxu0 0.0
      %927 = vmatmul.mubr.f32.gmra.mxu0 %v831
      %v928 = vpop.f32.mrf.mxu0
      %v929 = vadd.f32 0.0, %v928
      %v930 = vpop.f32.mrf.mxu0
      %931 = vmatprep.mubr.f32.mxu0 0.0
      %932 = vmatmul.mubr.f32.gmra.mxu0 %v833
      %v933 = vpop.f32.mrf.mxu0
      %v934 = vadd.f32 0.0, %v933
      %v935 = vpop.f32.mrf.mxu0
      %936 = vmatprep.mubr.f32.mxu0 0.0
      %937 = vmatmul.mubr.f32.gmra.mxu0 %v835
      %v938 = vpop.f32.mrf.mxu0
      %v939 = vadd.f32 0.0, %v938
      %v940 = vpop.f32.mrf.mxu0
      %941 = vdwg.mxu0
      %v942 = vadd.f32 %v748, %v904
      %v943 = vadd.f32 %v753, %v909
      %v944 = vadd.f32 %v758, %v914
      %v945 = vadd.f32 %v763, %v919
      %v946 = vadd.f32 %v768, %v924
      %v947 = vadd.f32 %v773, %v929
      %v948 = vadd.f32 %v778, %v934
      %v949 = vadd.f32 %v783, %v939
      %v952 = vrot.slane %v494, 7
      %v953 = vrot.slane %v495, 7
      %v954 = vsel %vm516, %v952, %v953
      %s955 = scalar_lea.vmem %s5, 24
      %v956 = vld [vmem:[%s955] sm:$0xff]
      %v957 = vsel %vm354, %v954, 0
      %959 = vmatprep.subr.mxu0 0.0
      %960 = vmatpush1.msra.mxu0 0.0
      %961 = vmatprep.subr.mxu0 0.0
      %962 = vmatpush1.msra.mxu0 0.0
      %963 = vmatprep.subr.mxu0 0.0
      %964 = vmatpush1.msra.mxu0 0.0
      %965 = vmatprep.subr.mxu0 0.0
      %966 = vmatpush1.msra.mxu0 0.0
      %967 = vmatprep.subr.mxu0 0.0
      %968 = vmatpush1.msra.mxu0 0.0
      %969 = vmatprep.subr.mxu0 0.0
      %970 = vmatpush1.msra.mxu0 0.0
      %971 = vmatprep.subr.mxu0 0.0
      %972 = vmatpush1.msra.mxu0 0.0
      %973 = vmatprep.subr.mxu0 0.0
      %974 = vmatpush1.msra.mxu0 0.0
      %975 = vmatprep.subr.mxu0 0.0
      %976 = vmatpush1.msra.mxu0 0.0
      %977 = vmatprep.subr.mxu0 0.0
      %978 = vmatpush1.msra.mxu0 0.0
      %979 = vmatprep.subr.mxu0 0.0
      %980 = vmatpush1.msra.mxu0 0.0
      %981 = vmatprep.subr.mxu0 0.0
      %982 = vmatpush1.msra.mxu0 0.0
      %983 = vmatprep.subr.mxu0 0.0
      %984 = vmatpush1.msra.mxu0 0.0
      %985 = vmatprep.subr.mxu0 0.0
      %986 = vmatpush1.msra.mxu0 0.0
      %987 = vmatprep.subr.mxu0 0.0
      %988 = vmatpush1.msra.mxu0 0.0
      %989 = vmatprep.subr.mxu0 0.0
      %990 = vmatpush1.msra.mxu0 %v956
      %991 = vmatprep.subr.mxu0 0.0
      %992 = vmatpush2.msra.mxu0 0.0
      %993 = vmatprep.subr.mxu0 0.0
      %994 = vmatpush2.msra.mxu0 0.0
      %995 = vmatprep.subr.mxu0 0.0
      %996 = vmatpush2.msra.mxu0 0.0
      %997 = vmatprep.subr.mxu0 0.0
      %998 = vmatpush2.msra.mxu0 0.0
      %999 = vmatprep.subr.mxu0 0.0
      %1000 = vmatpush2.msra.mxu0 0.0
      %1001 = vmatprep.subr.mxu0 0.0
      %1002 = vmatpush2.msra.mxu0 0.0
      %1003 = vmatprep.subr.mxu0 0.0
      %1004 = vmatpush2.msra.mxu0 0.0
      %1005 = vmatprep.subr.mxu0 0.0
      %1006 = vmatpush2.msra.mxu0 0.0
      %1007 = vmatprep.subr.mxu0 0.0
      %1008 = vmatpush2.msra.mxu0 0.0
      %1009 = vmatprep.subr.mxu0 0.0
      %1010 = vmatpush2.msra.mxu0 0.0
      %1011 = vmatprep.subr.mxu0 0.0
      %1012 = vmatpush2.msra.mxu0 0.0
      %1013 = vmatprep.subr.mxu0 0.0
      %1014 = vmatpush2.msra.mxu0 0.0
      %1015 = vmatprep.subr.mxu0 0.0
      %1016 = vmatpush2.msra.mxu0 0.0
      %1017 = vmatprep.subr.mxu0 0.0
      %1018 = vmatpush2.msra.mxu0 0.0
      %1019 = vmatprep.subr.mxu0 0.0
      %1020 = vmatpush2.msra.mxu0 0.0
      %1021 = vmatprep.subr.mxu0 0.0
      %1022 = vmatpush2.msra.mxu0 0.0
      %1023 = vmatprep.mubr.f32.mxu0 0.0
      %1024 = vmatmul.mubr.f32.gmra.mxu0 %v667
      %v1025 = vpop.f32.mrf.mxu0
      %v1026 = vadd.f32 0.0, %v1025
      %v1027 = vpop.f32.mrf.mxu0
      %1028 = vmatprep.mubr.f32.mxu0 0.0
      %1029 = vmatmul.mubr.f32.gmra.mxu0 %v669
      %v1030 = vpop.f32.mrf.mxu0
      %v1031 = vadd.f32 0.0, %v1030
      %v1032 = vpop.f32.mrf.mxu0
      %1033 = vmatprep.mubr.f32.mxu0 0.0
      %1034 = vmatmul.mubr.f32.gmra.mxu0 %v671
      %v1035 = vpop.f32.mrf.mxu0
      %v1036 = vadd.f32 0.0, %v1035
      %v1037 = vpop.f32.mrf.mxu0
      %1038 = vmatprep.mubr.f32.mxu0 0.0
      %1039 = vmatmul.mubr.f32.gmra.mxu0 %v673
      %v1040 = vpop.f32.mrf.mxu0
      %v1041 = vadd.f32 0.0, %v1040
      %v1042 = vpop.f32.mrf.mxu0
      %1043 = vmatprep.mubr.f32.mxu0 0.0
      %1044 = vmatmul.mubr.f32.gmra.mxu0 %v675
      %v1045 = vpop.f32.mrf.mxu0
      %v1046 = vadd.f32 0.0, %v1045
      %v1047 = vpop.f32.mrf.mxu0
      %1048 = vmatprep.mubr.f32.mxu0 0.0
      %1049 = vmatmul.mubr.f32.gmra.mxu0 %v677
      %v1050 = vpop.f32.mrf.mxu0
      %v1051 = vadd.f32 0.0, %v1050
      %v1052 = vpop.f32.mrf.mxu0
      %1053 = vmatprep.mubr.f32.mxu0 0.0
      %1054 = vmatmul.mubr.f32.gmra.mxu0 %v679
      %v1055 = vpop.f32.mrf.mxu0
      %v1056 = vadd.f32 0.0, %v1055
      %v1057 = vpop.f32.mrf.mxu0
      %1058 = vmatprep.mubr.f32.mxu0 0.0
      %1059 = vmatmul.mubr.f32.gmra.mxu0 %v957
      %v1060 = vpop.f32.mrf.mxu0
      %v1061 = vadd.f32 0.0, %v1060
      %v1062 = vpop.f32.mrf.mxu0
      %1063 = vdwg.mxu0
      %v1064 = vadd.f32 %v942, %v1026
      %v1065 = vadd.f32 %v943, %v1031
      %v1066 = vadd.f32 %v944, %v1036
      %v1067 = vadd.f32 %v945, %v1041
      %v1068 = vadd.f32 %v946, %v1046
      %v1069 = vadd.f32 %v947, %v1051
      %v1070 = vadd.f32 %v948, %v1056
      %v1071 = vadd.f32 %v949, %v1061
      %s1072 = scalar_lea.vmem %s5, 32
      %v1073 = vld [vmem:[%s1072] sm:$0xff]
      %v1074 = vsel %vm354, %v495, 0
      %1076 = vmatprep.subr.mxu0 0.0
      %1077 = vmatpush1.msra.mxu0 0.0
      %1078 = vmatprep.subr.mxu0 0.0
      %1079 = vmatpush1.msra.mxu0 0.0
      %1080 = vmatprep.subr.mxu0 0.0
      %1081 = vmatpush1.msra.mxu0 0.0
      %1082 = vmatprep.subr.mxu0 0.0
      %1083 = vmatpush1.msra.mxu0 0.0
      %1084 = vmatprep.subr.mxu0 0.0
      %1085 = vmatpush1.msra.mxu0 0.0
      %1086 = vmatprep.subr.mxu0 0.0
      %1087 = vmatpush1.msra.mxu0 0.0
      %1088 = vmatprep.subr.mxu0 0.0
      %1089 = vmatpush1.msra.mxu0 0.0
      %1090 = vmatprep.subr.mxu0 0.0
      %1091 = vmatpush1.msra.mxu0 0.0
      %1092 = vmatprep.subr.mxu0 0.0
      %1093 = vmatpush1.msra.mxu0 0.0
      %1094 = vmatprep.subr.mxu0 0.0
      %1095 = vmatpush1.msra.mxu0 0.0
      %1096 = vmatprep.subr.mxu0 0.0
      %1097 = vmatpush1.msra.mxu0 0.0
      %1098 = vmatprep.subr.mxu0 0.0
      %1099 = vmatpush1.msra.mxu0 0.0
      %1100 = vmatprep.subr.mxu0 0.0
      %1101 = vmatpush1.msra.mxu0 0.0
      %1102 = vmatprep.subr.mxu0 0.0
      %1103 = vmatpush1.msra.mxu0 0.0
      %1104 = vmatprep.subr.mxu0 0.0
      %1105 = vmatpush1.msra.mxu0 0.0
      %1106 = vmatprep.subr.mxu0 0.0
      %1107 = vmatpush1.msra.mxu0 %v1073
      %1108 = vmatprep.subr.mxu0 0.0
      %1109 = vmatpush2.msra.mxu0 0.0
      %1110 = vmatprep.subr.mxu0 0.0
      %1111 = vmatpush2.msra.mxu0 0.0
      %1112 = vmatprep.subr.mxu0 0.0
      %1113 = vmatpush2.msra.mxu0 0.0
      %1114 = vmatprep.subr.mxu0 0.0
      %1115 = vmatpush2.msra.mxu0 0.0
      %1116 = vmatprep.subr.mxu0 0.0
      %1117 = vmatpush2.msra.mxu0 0.0
      %1118 = vmatprep.subr.mxu0 0.0
      %1119 = vmatpush2.msra.mxu0 0.0
      %1120 = vmatprep.subr.mxu0 0.0
      %1121 = vmatpush2.msra.mxu0 0.0
      %1122 = vmatprep.subr.mxu0 0.0
      %1123 = vmatpush2.msra.mxu0 0.0
      %1124 = vmatprep.subr.mxu0 0.0
      %1125 = vmatpush2.msra.mxu0 0.0
      %1126 = vmatprep.subr.mxu0 0.0
      %1127 = vmatpush2.msra.mxu0 0.0
      %1128 = vmatprep.subr.mxu0 0.0
      %1129 = vmatpush2.msra.mxu0 0.0
      %1130 = vmatprep.subr.mxu0 0.0
      %1131 = vmatpush2.msra.mxu0 0.0
      %1132 = vmatprep.subr.mxu0 0.0
      %1133 = vmatpush2.msra.mxu0 0.0
      %1134 = vmatprep.subr.mxu0 0.0
      %1135 = vmatpush2.msra.mxu0 0.0
      %1136 = vmatprep.subr.mxu0 0.0
      %1137 = vmatpush2.msra.mxu0 0.0
      %1138 = vmatprep.subr.mxu0 0.0
      %1139 = vmatpush2.msra.mxu0 0.0
      %1140 = vmatprep.mubr.f32.mxu0 0.0
      %1141 = vmatmul.mubr.f32.gmra.mxu0 %v546
      %v1142 = vpop.f32.mrf.mxu0
      %v1143 = vadd.f32 0.0, %v1142
      %v1144 = vpop.f32.mrf.mxu0
      %1145 = vmatprep.mubr.f32.mxu0 0.0
      %1146 = vmatmul.mubr.f32.gmra.mxu0 %v548
      %v1147 = vpop.f32.mrf.mxu0
      %v1148 = vadd.f32 0.0, %v1147
      %v1149 = vpop.f32.mrf.mxu0
      %1150 = vmatprep.mubr.f32.mxu0 0.0
      %1151 = vmatmul.mubr.f32.gmra.mxu0 %v550
      %v1152 = vpop.f32.mrf.mxu0
      %v1153 = vadd.f32 0.0, %v1152
      %v1154 = vpop.f32.mrf.mxu0
      %1155 = vmatprep.mubr.f32.mxu0 0.0
      %1156 = vmatmul.mubr.f32.gmra.mxu0 %v552
      %v1157 = vpop.f32.mrf.mxu0
      %v1158 = vadd.f32 0.0, %v1157
      %v1159 = vpop.f32.mrf.mxu0
      %1160 = vmatprep.mubr.f32.mxu0 0.0
      %1161 = vmatmul.mubr.f32.gmra.mxu0 %v554
      %v1162 = vpop.f32.mrf.mxu0
      %v1163 = vadd.f32 0.0, %v1162
      %v1164 = vpop.f32.mrf.mxu0
      %1165 = vmatprep.mubr.f32.mxu0 0.0
      %1166 = vmatmul.mubr.f32.gmra.mxu0 %v556
      %v1167 = vpop.f32.mrf.mxu0
      %v1168 = vadd.f32 0.0, %v1167
      %v1169 = vpop.f32.mrf.mxu0
      %1170 = vmatprep.mubr.f32.mxu0 0.0
      %1171 = vmatmul.mubr.f32.gmra.mxu0 %v558
      %v1172 = vpop.f32.mrf.mxu0
      %v1173 = vadd.f32 0.0, %v1172
      %v1174 = vpop.f32.mrf.mxu0
      %1175 = vmatprep.mubr.f32.mxu0 0.0
      %1176 = vmatmul.mubr.f32.gmra.mxu0 %v1074
      %v1177 = vpop.f32.mrf.mxu0
      %v1178 = vadd.f32 0.0, %v1177
      %v1179 = vpop.f32.mrf.mxu0
      %1180 = vdwg.mxu0
      %v1181 = vadd.f32 %v1064, %v1143
      %v1182 = vadd.f32 %v1065, %v1148
      %v1183 = vadd.f32 %v1066, %v1153
      %v1184 = vadd.f32 %v1067, %v1158
      %v1185 = vadd.f32 %v1068, %v1163
      %v1186 = vadd.f32 %v1069, %v1168
      %v1187 = vadd.f32 %v1070, %v1173
      %v1188 = vadd.f32 %v1071, %v1178
      %v1190 = vrot.slane %v495, 1
      %v1191 = vrot.slane %v496, 1
      %v1192 = vsel %vm794, %v1190, %v1191
      %s1193 = scalar_lea.vmem %s5, 40
      %v1194 = vld [vmem:[%s1193] sm:$0xff]
      %v1195 = vsel %vm354, %v1192, 0
      %1197 = vmatprep.subr.mxu0 0.0
      %1198 = vmatpush1.msra.mxu0 0.0
      %1199 = vmatprep.subr.mxu0 0.0
      %1200 = vmatpush1.msra.mxu0 0.0
      %1201 = vmatprep.subr.mxu0 0.0
      %1202 = vmatpush1.msra.mxu0 0.0
      %1203 = vmatprep.subr.mxu0 0.0
      %1204 = vmatpush1.msra.mxu0 0.0
      %1205 = vmatprep.subr.mxu0 0.0
      %1206 = vmatpush1.msra.mxu0 0.0
      %1207 = vmatprep.subr.mxu0 0.0
      %1208 = vmatpush1.msra.mxu0 0.0
      %1209 = vmatprep.subr.mxu0 0.0
      %1210 = vmatpush1.msra.mxu0 0.0
      %1211 = vmatprep.subr.mxu0 0.0
      %1212 = vmatpush1.msra.mxu0 0.0
      %1213 = vmatprep.subr.mxu0 0.0
      %1214 = vmatpush1.msra.mxu0 0.0
      %1215 = vmatprep.subr.mxu0 0.0
      %1216 = vmatpush1.msra.mxu0 0.0
      %1217 = vmatprep.subr.mxu0 0.0
      %1218 = vmatpush1.msra.mxu0 0.0
      %1219 = vmatprep.subr.mxu0 0.0
      %1220 = vmatpush1.msra.mxu0 0.0
      %1221 = vmatprep.subr.mxu0 0.0
      %1222 = vmatpush1.msra.mxu0 0.0
      %1223 = vmatprep.subr.mxu0 0.0
      %1224 = vmatpush1.msra.mxu0 0.0
      %1225 = vmatprep.subr.mxu0 0.0
      %1226 = vmatpush1.msra.mxu0 0.0
      %1227 = vmatprep.subr.mxu0 0.0
      %1228 = vmatpush1.msra.mxu0 %v1194
      %1229 = vmatprep.subr.mxu0 0.0
      %1230 = vmatpush2.msra.mxu0 0.0
      %1231 = vmatprep.subr.mxu0 0.0
      %1232 = vmatpush2.msra.mxu0 0.0
      %1233 = vmatprep.subr.mxu0 0.0
      %1234 = vmatpush2.msra.mxu0 0.0
      %1235 = vmatprep.subr.mxu0 0.0
      %1236 = vmatpush2.msra.mxu0 0.0
      %1237 = vmatprep.subr.mxu0 0.0
      %1238 = vmatpush2.msra.mxu0 0.0
      %1239 = vmatprep.subr.mxu0 0.0
      %1240 = vmatpush2.msra.mxu0 0.0
      %1241 = vmatprep.subr.mxu0 0.0
      %1242 = vmatpush2.msra.mxu0 0.0
      %1243 = vmatprep.subr.mxu0 0.0
      %1244 = vmatpush2.msra.mxu0 0.0
      %1245 = vmatprep.subr.mxu0 0.0
      %1246 = vmatpush2.msra.mxu0 0.0
      %1247 = vmatprep.subr.mxu0 0.0
      %1248 = vmatpush2.msra.mxu0 0.0
      %1249 = vmatprep.subr.mxu0 0.0
      %1250 = vmatpush2.msra.mxu0 0.0
      %1251 = vmatprep.subr.mxu0 0.0
      %1252 = vmatpush2.msra.mxu0 0.0
      %1253 = vmatprep.subr.mxu0 0.0
      %1254 = vmatpush2.msra.mxu0 0.0
      %1255 = vmatprep.subr.mxu0 0.0
      %1256 = vmatpush2.msra.mxu0 0.0
      %1257 = vmatprep.subr.mxu0 0.0
      %1258 = vmatpush2.msra.mxu0 0.0
      %1259 = vmatprep.subr.mxu0 0.0
      %1260 = vmatpush2.msra.mxu0 0.0
      %1261 = vmatprep.mubr.f32.mxu0 0.0
      %1262 = vmatmul.mubr.f32.gmra.mxu0 %v823
      %v1263 = vpop.f32.mrf.mxu0
      %v1264 = vadd.f32 0.0, %v1263
      %v1265 = vpop.f32.mrf.mxu0
      %1266 = vmatprep.mubr.f32.mxu0 0.0
      %1267 = vmatmul.mubr.f32.gmra.mxu0 %v825
      %v1268 = vpop.f32.mrf.mxu0
      %v1269 = vadd.f32 0.0, %v1268
      %v1270 = vpop.f32.mrf.mxu0
      %1271 = vmatprep.mubr.f32.mxu0 0.0
      %1272 = vmatmul.mubr.f32.gmra.mxu0 %v827
      %v1273 = vpop.f32.mrf.mxu0
      %v1274 = vadd.f32 0.0, %v1273
      %v1275 = vpop.f32.mrf.mxu0
      %1276 = vmatprep.mubr.f32.mxu0 0.0
      %1277 = vmatmul.mubr.f32.gmra.mxu0 %v829
      %v1278 = vpop.f32.mrf.mxu0
      %v1279 = vadd.f32 0.0, %v1278
      %v1280 = vpop.f32.mrf.mxu0
      %1281 = vmatprep.mubr.f32.mxu0 0.0
      %1282 = vmatmul.mubr.f32.gmra.mxu0 %v831
      %v1283 = vpop.f32.mrf.mxu0
      %v1284 = vadd.f32 0.0, %v1283
      %v1285 = vpop.f32.mrf.mxu0
      %1286 = vmatprep.mubr.f32.mxu0 0.0
      %1287 = vmatmul.mubr.f32.gmra.mxu0 %v833
      %v1288 = vpop.f32.mrf.mxu0
      %v1289 = vadd.f32 0.0, %v1288
      %v1290 = vpop.f32.mrf.mxu0
      %1291 = vmatprep.mubr.f32.mxu0 0.0
      %1292 = vmatmul.mubr.f32.gmra.mxu0 %v835
      %v1293 = vpop.f32.mrf.mxu0
      %v1294 = vadd.f32 0.0, %v1293
      %v1295 = vpop.f32.mrf.mxu0
      %1296 = vmatprep.mubr.f32.mxu0 0.0
      %1297 = vmatmul.mubr.f32.gmra.mxu0 %v1195
      %v1298 = vpop.f32.mrf.mxu0
      %v1299 = vadd.f32 0.0, %v1298
      %v1300 = vpop.f32.mrf.mxu0
      %1301 = vdwg.mxu0
      %v1302 = vadd.f32 %v1181, %v1264
      %v1303 = vadd.f32 %v1182, %v1269
      %v1304 = vadd.f32 %v1183, %v1274
      %v1305 = vadd.f32 %v1184, %v1279
      %v1306 = vadd.f32 %v1185, %v1284
      %v1307 = vadd.f32 %v1186, %v1289
      %v1308 = vadd.f32 %v1187, %v1294
      %v1309 = vadd.f32 %v1188, %v1299
      %v1312 = vrot.slane %v497, 7
      %v1313 = vrot.slane %v498, 7
      %v1314 = vsel %vm516, %v1312, %v1313
      %s1315 = scalar_lea.vmem %s5, 48
      %v1316 = vld [vmem:[%s1315] sm:$0xff]
      %v1317 = vsel %vm354, %v1314, 0
      %1319 = vmatprep.subr.mxu0 0.0
      %1320 = vmatpush1.msra.mxu0 0.0
      %1321 = vmatprep.subr.mxu0 0.0
      %1322 = vmatpush1.msra.mxu0 0.0
      %1323 = vmatprep.subr.mxu0 0.0
      %1324 = vmatpush1.msra.mxu0 0.0
      %1325 = vmatprep.subr.mxu0 0.0
      %1326 = vmatpush1.msra.mxu0 0.0
      %1327 = vmatprep.subr.mxu0 0.0
      %1328 = vmatpush1.msra.mxu0 0.0
      %1329 = vmatprep.subr.mxu0 0.0
      %1330 = vmatpush1.msra.mxu0 0.0
      %1331 = vmatprep.subr.mxu0 0.0
      %1332 = vmatpush1.msra.mxu0 0.0
      %1333 = vmatprep.subr.mxu0 0.0
      %1334 = vmatpush1.msra.mxu0 0.0
      %1335 = vmatprep.subr.mxu0 0.0
      %1336 = vmatpush1.msra.mxu0 0.0
      %1337 = vmatprep.subr.mxu0 0.0
      %1338 = vmatpush1.msra.mxu0 0.0
      %1339 = vmatprep.subr.mxu0 0.0
      %1340 = vmatpush1.msra.mxu0 0.0
      %1341 = vmatprep.subr.mxu0 0.0
      %1342 = vmatpush1.msra.mxu0 0.0
      %1343 = vmatprep.subr.mxu0 0.0
      %1344 = vmatpush1.msra.mxu0 0.0
      %1345 = vmatprep.subr.mxu0 0.0
      %1346 = vmatpush1.msra.mxu0 0.0
      %1347 = vmatprep.subr.mxu0 0.0
      %1348 = vmatpush1.msra.mxu0 0.0
      %1349 = vmatprep.subr.mxu0 0.0
      %1350 = vmatpush1.msra.mxu0 %v1316
      %1351 = vmatprep.subr.mxu0 0.0
      %1352 = vmatpush2.msra.mxu0 0.0
      %1353 = vmatprep.subr.mxu0 0.0
      %1354 = vmatpush2.msra.mxu0 0.0
      %1355 = vmatprep.subr.mxu0 0.0
      %1356 = vmatpush2.msra.mxu0 0.0
      %1357 = vmatprep.subr.mxu0 0.0
      %1358 = vmatpush2.msra.mxu0 0.0
      %1359 = vmatprep.subr.mxu0 0.0
      %1360 = vmatpush2.msra.mxu0 0.0
      %1361 = vmatprep.subr.mxu0 0.0
      %1362 = vmatpush2.msra.mxu0 0.0
      %1363 = vmatprep.subr.mxu0 0.0
      %1364 = vmatpush2.msra.mxu0 0.0
      %1365 = vmatprep.subr.mxu0 0.0
      %1366 = vmatpush2.msra.mxu0 0.0
      %1367 = vmatprep.subr.mxu0 0.0
      %1368 = vmatpush2.msra.mxu0 0.0
      %1369 = vmatprep.subr.mxu0 0.0
      %1370 = vmatpush2.msra.mxu0 0.0
      %1371 = vmatprep.subr.mxu0 0.0
      %1372 = vmatpush2.msra.mxu0 0.0
      %1373 = vmatprep.subr.mxu0 0.0
      %1374 = vmatpush2.msra.mxu0 0.0
      %1375 = vmatprep.subr.mxu0 0.0
      %1376 = vmatpush2.msra.mxu0 0.0
      %1377 = vmatprep.subr.mxu0 0.0
      %1378 = vmatpush2.msra.mxu0 0.0
      %1379 = vmatprep.subr.mxu0 0.0
      %1380 = vmatpush2.msra.mxu0 0.0
      %1381 = vmatprep.subr.mxu0 0.0
      %1382 = vmatpush2.msra.mxu0 0.0
      %1383 = vmatprep.mubr.f32.mxu0 0.0
      %1384 = vmatmul.mubr.f32.gmra.mxu0 %v669
      %v1385 = vpop.f32.mrf.mxu0
      %v1386 = vadd.f32 0.0, %v1385
      %v1387 = vpop.f32.mrf.mxu0
      %1388 = vmatprep.mubr.f32.mxu0 0.0
      %1389 = vmatmul.mubr.f32.gmra.mxu0 %v671
      %v1390 = vpop.f32.mrf.mxu0
      %v1391 = vadd.f32 0.0, %v1390
      %v1392 = vpop.f32.mrf.mxu0
      %1393 = vmatprep.mubr.f32.mxu0 0.0
      %1394 = vmatmul.mubr.f32.gmra.mxu0 %v673
      %v1395 = vpop.f32.mrf.mxu0
      %v1396 = vadd.f32 0.0, %v1395
      %v1397 = vpop.f32.mrf.mxu0
      %1398 = vmatprep.mubr.f32.mxu0 0.0
      %1399 = vmatmul.mubr.f32.gmra.mxu0 %v675
      %v1400 = vpop.f32.mrf.mxu0
      %v1401 = vadd.f32 0.0, %v1400
      %v1402 = vpop.f32.mrf.mxu0
      %1403 = vmatprep.mubr.f32.mxu0 0.0
      %1404 = vmatmul.mubr.f32.gmra.mxu0 %v677
      %v1405 = vpop.f32.mrf.mxu0
      %v1406 = vadd.f32 0.0, %v1405
      %v1407 = vpop.f32.mrf.mxu0
      %1408 = vmatprep.mubr.f32.mxu0 0.0
      %1409 = vmatmul.mubr.f32.gmra.mxu0 %v679
      %v1410 = vpop.f32.mrf.mxu0
      %v1411 = vadd.f32 0.0, %v1410
      %v1412 = vpop.f32.mrf.mxu0
      %1413 = vmatprep.mubr.f32.mxu0 0.0
      %1414 = vmatmul.mubr.f32.gmra.mxu0 %v957
      %v1415 = vpop.f32.mrf.mxu0
      %v1416 = vadd.f32 0.0, %v1415
      %v1417 = vpop.f32.mrf.mxu0
      %1418 = vmatprep.mubr.f32.mxu0 0.0
      %1419 = vmatmul.mubr.f32.gmra.mxu0 %v1317
      %v1420 = vpop.f32.mrf.mxu0
      %v1421 = vadd.f32 0.0, %v1420
      %v1422 = vpop.f32.mrf.mxu0
      %1423 = vdwg.mxu0
      %v1424 = vadd.f32 %v1302, %v1386
      %v1425 = vadd.f32 %v1303, %v1391
      %v1426 = vadd.f32 %v1304, %v1396
      %v1427 = vadd.f32 %v1305, %v1401
      %v1428 = vadd.f32 %v1306, %v1406
      %v1429 = vadd.f32 %v1307, %v1411
      %v1430 = vadd.f32 %v1308, %v1416
      %v1431 = vadd.f32 %v1309, %v1421
      %s1432 = scalar_lea.vmem %s5, 56
      %v1433 = vld [vmem:[%s1432] sm:$0xff]
      %v1434 = vsel %vm354, %v498, 0
      %1436 = vmatprep.subr.mxu0 0.0
      %1437 = vmatpush1.msra.mxu0 0.0
      %1438 = vmatprep.subr.mxu0 0.0
      %1439 = vmatpush1.msra.mxu0 0.0
      %1440 = vmatprep.subr.mxu0 0.0
      %1441 = vmatpush1.msra.mxu0 0.0
      %1442 = vmatprep.subr.mxu0 0.0
      %1443 = vmatpush1.msra.mxu0 0.0
      %1444 = vmatprep.subr.mxu0 0.0
      %1445 = vmatpush1.msra.mxu0 0.0
      %1446 = vmatprep.subr.mxu0 0.0
      %1447 = vmatpush1.msra.mxu0 0.0
      %1448 = vmatprep.subr.mxu0 0.0
      %1449 = vmatpush1.msra.mxu0 0.0
      %1450 = vmatprep.subr.mxu0 0.0
      %1451 = vmatpush1.msra.mxu0 0.0
      %1452 = vmatprep.subr.mxu0 0.0
      %1453 = vmatpush1.msra.mxu0 0.0
      %1454 = vmatprep.subr.mxu0 0.0
      %1455 = vmatpush1.msra.mxu0 0.0
      %1456 = vmatprep.subr.mxu0 0.0
      %1457 = vmatpush1.msra.mxu0 0.0
      %1458 = vmatprep.subr.mxu0 0.0
      %1459 = vmatpush1.msra.mxu0 0.0
      %1460 = vmatprep.subr.mxu0 0.0
      %1461 = vmatpush1.msra.mxu0 0.0
      %1462 = vmatprep.subr.mxu0 0.0
      %1463 = vmatpush1.msra.mxu0 0.0
      %1464 = vmatprep.subr.mxu0 0.0
      %1465 = vmatpush1.msra.mxu0 0.0
      %1466 = vmatprep.subr.mxu0 0.0
      %1467 = vmatpush1.msra.mxu0 %v1433
      %1468 = vmatprep.subr.mxu0 0.0
      %1469 = vmatpush2.msra.mxu0 0.0
      %1470 = vmatprep.subr.mxu0 0.0
      %1471 = vmatpush2.msra.mxu0 0.0
      %1472 = vmatprep.subr.mxu0 0.0
      %1473 = vmatpush2.msra.mxu0 0.0
      %1474 = vmatprep.subr.mxu0 0.0
      %1475 = vmatpush2.msra.mxu0 0.0
      %1476 = vmatprep.subr.mxu0 0.0
      %1477 = vmatpush2.msra.mxu0 0.0
      %1478 = vmatprep.subr.mxu0 0.0
      %1479 = vmatpush2.msra.mxu0 0.0
      %1480 = vmatprep.subr.mxu0 0.0
      %1481 = vmatpush2.msra.mxu0 0.0
      %1482 = vmatprep.subr.mxu0 0.0
      %1483 = vmatpush2.msra.mxu0 0.0
      %1484 = vmatprep.subr.mxu0 0.0
      %1485 = vmatpush2.msra.mxu0 0.0
      %1486 = vmatprep.subr.mxu0 0.0
      %1487 = vmatpush2.msra.mxu0 0.0
      %1488 = vmatprep.subr.mxu0 0.0
      %1489 = vmatpush2.msra.mxu0 0.0
      %1490 = vmatprep.subr.mxu0 0.0
      %1491 = vmatpush2.msra.mxu0 0.0
      %1492 = vmatprep.subr.mxu0 0.0
      %1493 = vmatpush2.msra.mxu0 0.0
      %1494 = vmatprep.subr.mxu0 0.0
      %1495 = vmatpush2.msra.mxu0 0.0
      %1496 = vmatprep.subr.mxu0 0.0
      %1497 = vmatpush2.msra.mxu0 0.0
      %1498 = vmatprep.subr.mxu0 0.0
      %1499 = vmatpush2.msra.mxu0 0.0
      %1500 = vmatprep.mubr.f32.mxu0 0.0
      %1501 = vmatmul.mubr.f32.gmra.mxu0 %v548
      %v1502 = vpop.f32.mrf.mxu0
      %v1503 = vadd.f32 0.0, %v1502
      %v1504 = vpop.f32.mrf.mxu0
      %1505 = vmatprep.mubr.f32.mxu0 0.0
      %1506 = vmatmul.mubr.f32.gmra.mxu0 %v550
      %v1507 = vpop.f32.mrf.mxu0
      %v1508 = vadd.f32 0.0, %v1507
      %v1509 = vpop.f32.mrf.mxu0
      %1510 = vmatprep.mubr.f32.mxu0 0.0
      %1511 = vmatmul.mubr.f32.gmra.mxu0 %v552
      %v1512 = vpop.f32.mrf.mxu0
      %v1513 = vadd.f32 0.0, %v1512
      %v1514 = vpop.f32.mrf.mxu0
      %1515 = vmatprep.mubr.f32.mxu0 0.0
      %1516 = vmatmul.mubr.f32.gmra.mxu0 %v554
      %v1517 = vpop.f32.mrf.mxu0
      %v1518 = vadd.f32 0.0, %v1517
      %v1519 = vpop.f32.mrf.mxu0
      %1520 = vmatprep.mubr.f32.mxu0 0.0
      %1521 = vmatmul.mubr.f32.gmra.mxu0 %v556
      %v1522 = vpop.f32.mrf.mxu0
      %v1523 = vadd.f32 0.0, %v1522
      %v1524 = vpop.f32.mrf.mxu0
      %1525 = vmatprep.mubr.f32.mxu0 0.0
      %1526 = vmatmul.mubr.f32.gmra.mxu0 %v558
      %v1527 = vpop.f32.mrf.mxu0
      %v1528 = vadd.f32 0.0, %v1527
      %v1529 = vpop.f32.mrf.mxu0
      %1530 = vmatprep.mubr.f32.mxu0 0.0
      %1531 = vmatmul.mubr.f32.gmra.mxu0 %v1074
      %v1532 = vpop.f32.mrf.mxu0
      %v1533 = vadd.f32 0.0, %v1532
      %v1534 = vpop.f32.mrf.mxu0
      %1535 = vmatprep.mubr.f32.mxu0 0.0
      %1536 = vmatmul.mubr.f32.gmra.mxu0 %v1434
      %v1537 = vpop.f32.mrf.mxu0
      %v1538 = vadd.f32 0.0, %v1537
      %v1539 = vpop.f32.mrf.mxu0
      %1540 = vdwg.mxu0
      %v1541 = vadd.f32 %v1424, %v1503
      %v1542 = vadd.f32 %v1425, %v1508
      %v1543 = vadd.f32 %v1426, %v1513
      %v1544 = vadd.f32 %v1427, %v1518
      %v1545 = vadd.f32 %v1428, %v1523
      %v1546 = vadd.f32 %v1429, %v1528
      %v1547 = vadd.f32 %v1430, %v1533
      %v1548 = vadd.f32 %v1431, %v1538
      %v1550 = vrot.slane %v498, 1
      %v1551 = vrot.slane %v499, 1
      %v1552 = vsel %vm794, %v1550, %v1551
      %s1553 = scalar_lea.vmem %s5, 64
      %v1554 = vld [vmem:[%s1553] sm:$0xff]
      %v1555 = vsel %vm354, %v1552, 0
      %1557 = vmatprep.subr.mxu0 0.0
      %1558 = vmatpush1.msra.mxu0 0.0
      %1559 = vmatprep.subr.mxu0 0.0
      %1560 = vmatpush1.msra.mxu0 0.0
      %1561 = vmatprep.subr.mxu0 0.0
      %1562 = vmatpush1.msra.mxu0 0.0
      %1563 = vmatprep.subr.mxu0 0.0
      %1564 = vmatpush1.msra.mxu0 0.0
      %1565 = vmatprep.subr.mxu0 0.0
      %1566 = vmatpush1.msra.mxu0 0.0
      %1567 = vmatprep.subr.mxu0 0.0
      %1568 = vmatpush1.msra.mxu0 0.0
      %1569 = vmatprep.subr.mxu0 0.0
      %1570 = vmatpush1.msra.mxu0 0.0
      %1571 = vmatprep.subr.mxu0 0.0
      %1572 = vmatpush1.msra.mxu0 0.0
      %1573 = vmatprep.subr.mxu0 0.0
      %1574 = vmatpush1.msra.mxu0 0.0
      %1575 = vmatprep.subr.mxu0 0.0
      %1576 = vmatpush1.msra.mxu0 0.0
      %1577 = vmatprep.subr.mxu0 0.0
      %1578 = vmatpush1.msra.mxu0 0.0
      %1579 = vmatprep.subr.mxu0 0.0
      %1580 = vmatpush1.msra.mxu0 0.0
      %1581 = vmatprep.subr.mxu0 0.0
      %1582 = vmatpush1.msra.mxu0 0.0
      %1583 = vmatprep.subr.mxu0 0.0
      %1584 = vmatpush1.msra.mxu0 0.0
      %1585 = vmatprep.subr.mxu0 0.0
      %1586 = vmatpush1.msra.mxu0 0.0
      %1587 = vmatprep.subr.mxu0 0.0
      %1588 = vmatpush1.msra.mxu0 %v1554
      %1589 = vmatprep.subr.mxu0 0.0
      %1590 = vmatpush2.msra.mxu0 0.0
      %1591 = vmatprep.subr.mxu0 0.0
      %1592 = vmatpush2.msra.mxu0 0.0
      %1593 = vmatprep.subr.mxu0 0.0
      %1594 = vmatpush2.msra.mxu0 0.0
      %1595 = vmatprep.subr.mxu0 0.0
      %1596 = vmatpush2.msra.mxu0 0.0
      %1597 = vmatprep.subr.mxu0 0.0
      %1598 = vmatpush2.msra.mxu0 0.0
      %1599 = vmatprep.subr.mxu0 0.0
      %1600 = vmatpush2.msra.mxu0 0.0
      %1601 = vmatprep.subr.mxu0 0.0
      %1602 = vmatpush2.msra.mxu0 0.0
      %1603 = vmatprep.subr.mxu0 0.0
      %1604 = vmatpush2.msra.mxu0 0.0
      %1605 = vmatprep.subr.mxu0 0.0
      %1606 = vmatpush2.msra.mxu0 0.0
      %1607 = vmatprep.subr.mxu0 0.0
      %1608 = vmatpush2.msra.mxu0 0.0
      %1609 = vmatprep.subr.mxu0 0.0
      %1610 = vmatpush2.msra.mxu0 0.0
      %1611 = vmatprep.subr.mxu0 0.0
      %1612 = vmatpush2.msra.mxu0 0.0
      %1613 = vmatprep.subr.mxu0 0.0
      %1614 = vmatpush2.msra.mxu0 0.0
      %1615 = vmatprep.subr.mxu0 0.0
      %1616 = vmatpush2.msra.mxu0 0.0
      %1617 = vmatprep.subr.mxu0 0.0
      %1618 = vmatpush2.msra.mxu0 0.0
      %1619 = vmatprep.subr.mxu0 0.0
      %1620 = vmatpush2.msra.mxu0 0.0
      %1621 = vmatprep.mubr.f32.mxu0 0.0
      %1622 = vmatmul.mubr.f32.gmra.mxu0 %v825
      %v1623 = vpop.f32.mrf.mxu0
      %v1624 = vadd.f32 0.0, %v1623
      %v1625 = vpop.f32.mrf.mxu0
      %1626 = vmatprep.mubr.f32.mxu0 0.0
      %1627 = vmatmul.mubr.f32.gmra.mxu0 %v827
      %v1628 = vpop.f32.mrf.mxu0
      %v1629 = vadd.f32 0.0, %v1628
      %v1630 = vpop.f32.mrf.mxu0
      %1631 = vmatprep.mubr.f32.mxu0 0.0
      %1632 = vmatmul.mubr.f32.gmra.mxu0 %v829
      %v1633 = vpop.f32.mrf.mxu0
      %v1634 = vadd.f32 0.0, %v1633
      %v1635 = vpop.f32.mrf.mxu0
      %1636 = vmatprep.mubr.f32.mxu0 0.0
      %1637 = vmatmul.mubr.f32.gmra.mxu0 %v831
      %v1638 = vpop.f32.mrf.mxu0
      %v1639 = vadd.f32 0.0, %v1638
      %v1640 = vpop.f32.mrf.mxu0
      %1641 = vmatprep.mubr.f32.mxu0 0.0
      %1642 = vmatmul.mubr.f32.gmra.mxu0 %v833
      %v1643 = vpop.f32.mrf.mxu0
      %v1644 = vadd.f32 0.0, %v1643
      %v1645 = vpop.f32.mrf.mxu0
      %1646 = vmatprep.mubr.f32.mxu0 0.0
      %1647 = vmatmul.mubr.f32.gmra.mxu0 %v835
      %v1648 = vpop.f32.mrf.mxu0
      %v1649 = vadd.f32 0.0, %v1648
      %v1650 = vpop.f32.mrf.mxu0
      %1651 = vmatprep.mubr.f32.mxu0 0.0
      %1652 = vmatmul.mubr.f32.gmra.mxu0 %v1195
      %v1653 = vpop.f32.mrf.mxu0
      %v1654 = vadd.f32 0.0, %v1653
      %v1655 = vpop.f32.mrf.mxu0
      %1656 = vmatprep.mubr.f32.mxu0 0.0
      %1657 = vmatmul.mubr.f32.gmra.mxu0 %v1555
      %v1658 = vpop.f32.mrf.mxu0
      %v1659 = vadd.f32 0.0, %v1658
      %v1660 = vpop.f32.mrf.mxu0
      %1661 = vdwg.mxu0
      %v1662 = vadd.f32 %v1541, %v1624
      %v1663 = vadd.f32 %v1542, %v1629
      %v1664 = vadd.f32 %v1543, %v1634
      %v1665 = vadd.f32 %v1544, %v1639
      %v1666 = vadd.f32 %v1545, %v1644
      %v1667 = vadd.f32 %v1546, %v1649
      %v1668 = vadd.f32 %v1547, %v1654
      %v1669 = vadd.f32 %v1548, %v1659
      %v1670 = vld [vmem:[%s6] sm:$0x1]
      %v1672 = vlaneseq
      %v1673 = vshrl.u32 %v1672, 7
      %v1674 = vsub.s32 0, %v1673
      %v1675 = vrot.slane %v1670, %v1674
      %v1677 = vadd.f32 %v1662, %v1675
      %v1678 = vadd.f32 %v1663, %v1675
      %v1679 = vadd.f32 %v1664, %v1675
      %v1680 = vadd.f32 %v1665, %v1675
      %v1681 = vadd.f32 %v1666, %v1675
      %v1682 = vadd.f32 %v1667, %v1675
      %v1683 = vadd.f32 %v1668, %v1675
      %v1684 = vadd.f32 %v1669, %v1675
      %1685 = vst.msk [vmem:[%s345] sm:$0xff] %vm354, %v1677
      %1686 = vst.msk [vmem:[%s345 + $0x8] sm:$0xff] %vm354, %v1678
      %1687 = vst.msk [vmem:[%s345 + $0x10] sm:$0xff] %vm354, %v1679
      %1688 = vst.msk [vmem:[%s345 + $0x18] sm:$0xff] %vm354, %v1680
      %1689 = vst.msk [vmem:[%s345 + $0x20] sm:$0xff] %vm354, %v1681
      %1690 = vst.msk [vmem:[%s345 + $0x28] sm:$0xff] %vm354, %v1682
      %1691 = vst.msk [vmem:[%s345 + $0x30] sm:$0xff] %vm354, %v1683
      %1692 = vst.msk [vmem:[%s345 + $0x38] sm:$0xff] %vm354, %v1684
      %1693 = vst.msk [vmem:[%s349] sm:$0xff] %vm354, 0.0
      %1694 = vst.msk [vmem:[%s353] sm:$0xff] %vm354, 0.0
      %v1695 = vsel %vm354, %v1662, 0.0
      %v1696 = vsel %vm354, %v1663, 0.0
      %v1697 = vadd.f32 %v1695, %v1696
      %v1698 = vsel %vm354, %v1664, 0.0
      %v1699 = vadd.f32 %v1697, %v1698
      %v1700 = vsel %vm354, %v1665, 0.0
      %v1701 = vadd.f32 %v1699, %v1700
      %v1702 = vsel %vm354, %v1666, 0.0
      %v1703 = vadd.f32 %v1701, %v1702
      %v1704 = vsel %vm354, %v1667, 0.0
      %v1705 = vadd.f32 %v1703, %v1704
      %v1706 = vsel %vm354, %v1668, 0.0
      %v1707 = vadd.f32 %v1705, %v1706
      %v1708 = vsel %vm354, %v1669, 0.0
      %v1709 = vadd.f32 %v1707, %v1708
      %v1710 = vrot.slane %v1709, 4
      %v1711 = vadd.f32 %v1709, %v1710
      %v1712 = vrot.slane %v1711, 2
      %v1713 = vadd.f32 %v1711, %v1712
      %v1714 = vrot.slane %v1713, 1
      %v1715 = vadd.f32 %v1713, %v1714
      %1716 = vst.msk [vmem:[%s349] sm:$0x1] %vm357, %v1715
      %v1717 = vmul.f32 %v1662, %v1662
      %v1718 = vmul.f32 %v1663, %v1663
      %v1719 = vmul.f32 %v1664, %v1664
      %v1720 = vmul.f32 %v1665, %v1665
      %v1721 = vmul.f32 %v1666, %v1666
      %v1722 = vmul.f32 %v1667, %v1667
      %v1723 = vmul.f32 %v1668, %v1668
      %v1724 = vmul.f32 %v1669, %v1669
      %v1725 = vsel %vm354, %v1717, 0.0
      %v1726 = vsel %vm354, %v1718, 0.0
      %v1727 = vadd.f32 %v1725, %v1726
      %v1728 = vsel %vm354, %v1719, 0.0
      %v1729 = vadd.f32 %v1727, %v1728
      %v1730 = vsel %vm354, %v1720, 0.0
      %v1731 = vadd.f32 %v1729, %v1730
      %v1732 = vsel %vm354, %v1721, 0.0
      %v1733 = vadd.f32 %v1731, %v1732
      %v1734 = vsel %vm354, %v1722, 0.0
      %v1735 = vadd.f32 %v1733, %v1734
      %v1736 = vsel %vm354, %v1723, 0.0
      %v1737 = vadd.f32 %v1735, %v1736
      %v1738 = vsel %vm354, %v1724, 0.0
      %v1739 = vadd.f32 %v1737, %v1738
      %v1740 = vrot.slane %v1739, 4
      %v1741 = vadd.f32 %v1739, %v1740
      %v1742 = vrot.slane %v1741, 2
      %v1743 = vadd.f32 %v1741, %v1742
      %v1744 = vrot.slane %v1743, 1
      %v1745 = vadd.f32 %v1743, %v1744
      %1746 = vst.msk [vmem:[%s353] sm:$0x1] %vm357, %v1745
      %p1747 = scmp.lt.s32.totalorder %s21, 1
      %s1748 = scalar_select %p1747, %s21, 1
      %s1749 = smul.addr %s1748, 8
      %s1750 = smul.addr %s1749, 8
      %s1751 = scalar_lea.vmem %s7, %s1750
      %p1752 = scmp.lt.s32.totalorder %s21, 1
      %s1753 = scalar_select %p1752, %s21, 1
      %s1754 = smul.addr %s1753, 8
      %s1755 = scalar_lea.vmem %s8, %s1754
      %p1756 = scmp.lt.s32.totalorder %s21, 1
      %s1757 = scalar_select %p1756, %s21, 1
      %s1758 = smul.addr %s1757, 8
      %s1759 = scalar_lea.vmem %s9, %s1758
      // Predicated region
      $region49: #{bottleneck_forward.5} parent=47 // pred_check
        %p1760 = pneg %p191
      $region50: #{bottleneck_forward.5} parent=47 // pred_check_branch
        %1762 = sbr.rel (%p1760) target = $region52
      $region51: #{bottleneck_forward.5} parent=47 // pred_region
        _
      $region52: #{bottleneck_forward.5} parent=47 // pred_fallthru
        _
      // Predicated region
      $region53: #{bottleneck_forward.5} parent=47 // pred_check
        %p1763 = pneg %p217
      $region54: #{bottleneck_forward.5} parent=47 // pred_check_branch
        %1765 = sbr.rel (%p1763) target = $region56
      $region55: #{bottleneck_forward.5} parent=47 // pred_region
        _
      $region56: #{bottleneck_forward.5} parent=47 // pred_fallthru
        _
      // Predicated region
      $region57: #{bottleneck_forward.5} parent=47 // pred_check
        %p1766 = pneg %p243
      $region58: #{bottleneck_forward.5} parent=47 // pred_check_branch
        %1768 = sbr.rel (%p1766) target = $region60
      $region59: #{bottleneck_forward.5} parent=47 // pred_region
        _
      $region60: #{bottleneck_forward.5} parent=47 // pred_fallthru
        _
    $region48: #{bottleneck_forward.5} parent=5 // pred_fallthru
      _
    %p1769 = scmp.le.s32.totalorder 2, %s16
    // Predicated region
    $region61: #{bottleneck_forward.5} parent=5 // pred_check
      %p1770 = pneg %p1769
    $region62: #{bottleneck_forward.5} parent=5 // pred_check_branch
      %1772 = sbr.rel (%p1770) target = $region64
    $region63: #{bottleneck_forward.5} parent=5 // pred_region
      %s1773 = ssub.s32 %s16, 2
      // Predicated region
      $region65: #{bottleneck_forward.5} parent=63 // pred_check
        %p1774 = pneg %p197
      $region66: #{bottleneck_forward.5} parent=63 // pred_check_branch
        %1776 = sbr.rel (%p1774) target = $region68
      $region67: #{bottleneck_forward.5} parent=63 // pred_region
        %p1777 = scmp.lt.s32.totalorder %s22, 1
        %s1778 = scalar_select %p1777, %s22, 1
        %s1779 = smul.addr %s1778, 8
        %s1780 = smul.addr %s1779, 8
        %s1781 = scalar_lea.vmem %s7, %s1780
      $region68: #{bottleneck_forward.5} parent=63 // pred_fallthru
        _
      // Predicated region
      $region69: #{bottleneck_forward.5} parent=63 // pred_check
        %p1782 = pneg %p223
      $region70: #{bottleneck_forward.5} parent=63 // pred_check_branch
        %1784 = sbr.rel (%p1782) target = $region72
      $region71: #{bottleneck_forward.5} parent=63 // pred_region
        %p1785 = scmp.lt.s32.totalorder %s22, 1
        %s1786 = scalar_select %p1785, %s22, 1
        %s1787 = smul.addr %s1786, 8
        %s1788 = scalar_lea.vmem %s8, %s1787
      $region72: #{bottleneck_forward.5} parent=63 // pred_fallthru
        _
      // Predicated region
      $region73: #{bottleneck_forward.5} parent=63 // pred_check
        %p1789 = pneg %p249
      $region74: #{bottleneck_forward.5} parent=63 // pred_check_branch
        %1791 = sbr.rel (%p1789) target = $region76
      $region75: #{bottleneck_forward.5} parent=63 // pred_region
        %p1792 = scmp.lt.s32.totalorder %s22, 1
        %s1793 = scalar_select %p1792, %s22, 1
        %s1794 = smul.addr %s1793, 8
        %s1795 = scalar_lea.vmem %s9, %s1794
      $region76: #{bottleneck_forward.5} parent=63 // pred_fallthru
        _
    $region64: #{bottleneck_forward.5} parent=5 // pred_fallthru
      _
  $region6: #{bottleneck_forward.5} parent=0 // loop_footer
    %s20 = sadd.s32 1, %s16
  $region7: #{bottleneck_forward.5} parent=0 // loop_footer_branch
    %15 = sbr.rel target = $region3
  $region8: #{bottleneck_forward.5} parent=0 // loop_exit
    _

</llo_original>
